<compile_context>
chip_gen: v6e
topology: v6e:2x2x1
jax: 0.10.0
libtpu: 0.0.40
codegen_flags: <defaults>
</compile_context>

<pallas_src>
import functools

import jax
import jax.numpy as jnp
from jax.experimental import pallas as pl
from jax.experimental.pallas import tpu as pltpu

# Logical / padded dims.
D_IN = 784          # 28*28, kept unpadded (full-dim blocks, bf16 sublane-aligned)
D_H, D_H_P = 400, 512
D_Z, D_Z_P = 20, 128
D_ENC = 2 * D_Z_P   # fused encoder head: mu in lanes 0:128, logvar in 128:256


def _round_up(x, m):
    return ((x + m - 1) // m) * m


def _default_tile_and_vmem():
    """Generation-aware (tile_b, vmem_limit_bytes)."""
    try:
        kind = jax.devices()[0].device_kind.lower()
    except Exception:
        kind = ""
    if "v7" in kind:
        return 512, 48 * 1024 * 1024        # 64 MiB physical VMEM: keep headroom
    if "v4" in kind or "v5" in kind or "v6" in kind:
        return 1024, 64 * 1024 * 1024       # 128 MiB physical VMEM
    return 512, 48 * 1024 * 1024            # unknown chip: safe everywhere


def vae_kernel(x_ref, eps_ref,
               w1_ref, b1_ref,
               wenc_ref, benc_ref,
               w3_ref, b3_ref,
               w4_ref, b4_ref,
               out_ref):
    # ---- encode: h1 = relu(x @ W1 + b1) ----------------------------------
    x = x_ref[...].astype(jnp.bfloat16)                               # [TB, 784]
    h1 = jnp.dot(x, w1_ref[...],
                 preferred_element_type=jnp.float32) + b1_ref[...]    # [TB, 512]
    h1 = jnp.maximum(h1, 0.0)
    # W1/b1 cols 400:512 are zero -> h1 padded lanes are exactly 0.

    # ---- fused fc21/fc22 head: one lane-dense (512, 256) matmul ----------
    enc = jnp.dot(h1.astype(jnp.bfloat16), wenc_ref[...],
                  preferred_element_type=jnp.float32) + benc_ref[...]  # [TB, 256]
    mu = enc[:, :D_Z_P]          # lanes 0:128   (mu in 0:20, rest exactly 0)
    logvar = enc[:, D_Z_P:]      # lanes 128:256 (logvar in 0:20, rest exactly 0)

    # ---- reparameterize: z = mu + eps * exp(0.5 * logvar) ----------------
    std = jnp.exp(0.5 * logvar)                 # padded lanes -> exp(0) = 1
    z = mu + eps_ref[...] * std                 # eps padded with 0 -> z padded = 0

    # ---- decode: h3 = relu(z @ W3 + b3); out = sigmoid(h3 @ W4 + b4) -----
    h3 = jnp.dot(z.astype(jnp.bfloat16), w3_ref[...],
                 preferred_element_type=jnp.float32) + b3_ref[...]     # [TB, 512]
    h3 = jnp.maximum(h3, 0.0)
    logits = jnp.dot(h3.astype(jnp.bfloat16), w4_ref[...],
                     preferred_element_type=jnp.float32) + b4_ref[...]  # [TB, 784]
    out_ref[...] = jax.nn.sigmoid(logits)


def pack_params(params):
    """Pad to lane-dense shapes where needed, fuse fc21/fc22, weights -> bf16."""
    (w1, b1, w21, b21, w22, b22, w3, b3, w4, b4) = params   # (in, out) layout, f32

    w1p = (jnp.zeros((D_IN, D_H_P), jnp.float32)
           .at[:, :D_H].set(w1).astype(jnp.bfloat16))                     # (784, 512)
    b1p = jnp.zeros((1, D_H_P), jnp.float32).at[:, :D_H].set(b1)

    wenc = jnp.zeros((D_H_P, D_ENC), jnp.float32)
    wenc = wenc.at[:D_H, :D_Z].set(w21)                                   # mu head
    wenc = wenc.at[:D_H, D_Z_P:D_Z_P + D_Z].set(w22)                      # logvar head
    wencp = wenc.astype(jnp.bfloat16)                                     # (512, 256)
    benc = (jnp.zeros((1, D_ENC), jnp.float32)
            .at[:, :D_Z].set(b21).at[:, D_Z_P:D_Z_P + D_Z].set(b22))

    w3p = (jnp.zeros((D_Z_P, D_H_P), jnp.float32)
           .at[:D_Z, :D_H].set(w3).astype(jnp.bfloat16))                  # (128, 512)
    b3p = jnp.zeros((1, D_H_P), jnp.float32).at[:, :D_H].set(b3)

    w4p = (jnp.zeros((D_H_P, D_IN), jnp.float32)
           .at[:D_H, :].set(w4).astype(jnp.bfloat16))                     # (512, 784)
    b4p = b4.astype(jnp.float32).reshape(1, D_IN)

    return (w1p, b1p, wencp, benc, w3p, b3p, w4p, b4p)


@functools.partial(jax.jit, static_argnames=("tile_b", "vmem_limit_bytes"))
def _vae_forward_impl(x_nchw, eps, packed, tile_b, vmem_limit_bytes):
    B = x_nchw.shape[0]
    x2d = x_nchw.reshape(B, D_IN).astype(jnp.float32)   # contiguous reshape: free

    # Adaptive batch tile: number of tiles from the requested tile size, then
    # the smallest multiple-of-16 tile that covers B with those tiles (keeps
    # row padding minimal for awkward batch sizes; 16 = bf16 sublane packing).
    n_tiles = -(-B // tile_b)
    tb = _round_up(-(-B // n_tiles), 16)
    b_pad = n_tiles * tb

    if b_pad == B:
        x_p = x2d                                        # zero wrapper passes
    else:
        x_p = jnp.zeros((b_pad, D_IN), jnp.float32).at[:B].set(x2d)
    eps_p = jnp.zeros((b_pad, D_Z_P), jnp.float32).at[:B, :D_Z].set(eps)

    (w1p, b1p, wencp, benc, w3p, b3p, w4p, b4p) = packed

    def row_spec(n):                     # tiled over the batch grid
        return pl.BlockSpec((tb, n), lambda i: (i, 0))

    def const_spec(shape):               # VMEM-resident for the whole grid
        return pl.BlockSpec(shape, lambda i: (0, 0))

    out = pl.pallas_call(
        vae_kernel,
        out_shape=jax.ShapeDtypeStruct((b_pad, D_IN), jnp.float32),
        grid=(n_tiles,),
        in_specs=[
            row_spec(D_IN),                    # x        (tb, 784)
            row_spec(D_Z_P),                   # eps      (tb, 128)
            const_spec((D_IN, D_H_P)),         # W1       (784, 512) bf16
            const_spec((1, D_H_P)),            # b1
            const_spec((D_H_P, D_ENC)),        # W21|W22  (512, 256) bf16
            const_spec((1, D_ENC)),            # b21|b22
            const_spec((D_Z_P, D_H_P)),        # W3       (128, 512) bf16
            const_spec((1, D_H_P)),            # b3
            const_spec((D_H_P, D_IN)),         # W4       (512, 784) bf16
            const_spec((1, D_IN)),             # b4
        ],
        out_specs=row_spec(D_IN),
        compiler_params=pltpu.CompilerParams(
            dimension_semantics=("parallel",),   # shards batch tiles across v7x's 2 TCs
            vmem_limit_bytes=vmem_limit_bytes,
        ),
    )(x_p, eps_p, w1p, b1p, wencp, benc, w3p, b3p, w4p, b4p)

    return out if b_pad == B else out[:B]


def vae_forward(x_nchw, eps, packed, tile_b=None, vmem_limit_bytes=None):
    if tile_b is None or vmem_limit_bytes is None:
        d_tile, d_vmem = _default_tile_and_vmem()
        tile_b = d_tile if tile_b is None else tile_b
        vmem_limit_bytes = d_vmem if vmem_limit_bytes is None else vmem_limit_bytes
    return _vae_forward_impl(x_nchw, eps, packed, tile_b, vmem_limit_bytes)


def init_params(key):
    """Deterministic synthetic parameter init (shapes from the nn.Module)."""
    ks = jax.random.split(key, 10)

    def linear(kw, kb, fan_in, fan_out):
        bound = 1.0 / jnp.sqrt(fan_in)
        # Stored as (in, out): equivalent to PyTorch weight.T
        w = jax.random.uniform(kw, (fan_in, fan_out), jnp.float32, -bound, bound)
        b = jax.random.uniform(kb, (1, fan_out), jnp.float32, -bound, bound)
        return w, b

    w1,  b1  = linear(ks[0], ks[1], 784, 400)   # fc1
    w21, b21 = linear(ks[2], ks[3], 400, 20)    # fc21
    w22, b22 = linear(ks[4], ks[5], 400, 20)    # fc22
    w3,  b3  = linear(ks[6], ks[7], 20, 400)    # fc3
    w4,  b4  = linear(ks[8], ks[9], 400, 784)   # fc4
    return (w1, b1, w21, b21, w22, b22, w3, b3, w4, b4)


def vae_reference(x_nchw, eps, params):
    """Pure-JAX f32 reference matching the PyTorch forward (training mode)."""
    (w1, b1, w21, b21, w22, b22, w3, b3, w4, b4) = params
    x = x_nchw.reshape(x_nchw.shape[0], D_IN)
    h1 = jax.nn.relu(x @ w1 + b1)
    mu = h1 @ w21 + b21
    logvar = h1 @ w22 + b22
    z = mu + eps * jnp.exp(0.5 * logvar)
    h3 = jax.nn.relu(z @ w3 + b3)
    return jax.nn.sigmoid(h3 @ w4 + b4)


if __name__ == "__main__":
    key = jax.random.PRNGKey(0)
    k_params, k_x, k_eps = jax.random.split(key, 3)

    B = 8
    # NCHW input, like an MNIST batch
    x = jax.random.normal(k_x, (B, 1, 28, 28), dtype=jnp.float32)
    params = init_params(k_params)

    # eps ~ N(0, 1) for the reparameterization trick (torch.randn_like(std));
    # generated deterministically in-script and passed into the kernel.
    # TODO(synk): in-kernel pltpu.prng_* could generate eps on-chip, but it
    # would not be bit-comparable with the host reference, so eps is an input.
    eps = jax.random.normal(k_eps, (B, 20), dtype=jnp.float32)

    packed = pack_params(params)
    recon = vae_forward(x, eps, packed)
    recon = jax.block_until_ready(recon)

    # Sanity checks: shape, dtype, sigmoid range, agreement with f32 reference
    # (weights/activation dots are bf16 inside the kernel -> loose tolerance).
    ref = vae_reference(x, eps, params)
    max_err = float(jnp.max(jnp.abs(recon - ref)))

    assert recon.shape == (B, 784)
    assert recon.dtype == jnp.float32
    assert bool(jnp.all(recon >= 0.0)) and bool(jnp.all(recon <= 1.0))
    assert max_err < 5e-2, f"max abs err vs reference: {max_err}"

    print("KERNEL_OK")
</pallas_src>

<mosaic_0001>
module attributes {stable_mosaic.version = 11 : i64} {
  func.func @vae_kernel(%arg0: i32, %arg1: memref<16x784xf32, #tpu.memory_space<vmem>>, %arg2: memref<16x128xf32, #tpu.memory_space<vmem>>, %arg3: memref<784x512xbf16, #tpu.memory_space<vmem>>, %arg4: memref<1x512xf32, #tpu.memory_space<vmem>>, %arg5: memref<512x256xbf16, #tpu.memory_space<vmem>>, %arg6: memref<1x256xf32, #tpu.memory_space<vmem>>, %arg7: memref<128x512xbf16, #tpu.memory_space<vmem>>, %arg8: memref<1x512xf32, #tpu.memory_space<vmem>>, %arg9: memref<512x784xbf16, #tpu.memory_space<vmem>>, %arg10: memref<1x784xf32, #tpu.memory_space<vmem>>, %arg11: memref<16x784xf32, #tpu.memory_space<vmem>>) attributes {dimension_semantics = [#tpu.dimension_semantics<parallel>], iteration_bounds = array<i64: 1>, scalar_prefetch = 0 : i64, scratch_operands = 0 : i64, tpu.core_type = #tpu.core_type<tc>, window_params = [{transform_indices = @transform_0, window_bounds = array<i64: 16, 784>}, {transform_indices = @transform_1, window_bounds = array<i64: 16, 128>}, {pipeline_mode = #tpu.pipeline_mode<synchronous>, transform_indices = @transform_2, window_bounds = array<i64: 784, 512>}, {pipeline_mode = #tpu.pipeline_mode<synchronous>, transform_indices = @transform_3, window_bounds = array<i64: 1, 512>}, {pipeline_mode = #tpu.pipeline_mode<synchronous>, transform_indices = @transform_4, window_bounds = array<i64: 512, 256>}, {pipeline_mode = #tpu.pipeline_mode<synchronous>, transform_indices = @transform_5, window_bounds = array<i64: 1, 256>}, {pipeline_mode = #tpu.pipeline_mode<synchronous>, transform_indices = @transform_6, window_bounds = array<i64: 128, 512>}, {pipeline_mode = #tpu.pipeline_mode<synchronous>, transform_indices = @transform_7, window_bounds = array<i64: 1, 512>}, {pipeline_mode = #tpu.pipeline_mode<synchronous>, transform_indices = @transform_8, window_bounds = array<i64: 512, 784>}, {pipeline_mode = #tpu.pipeline_mode<synchronous>, transform_indices = @transform_9, window_bounds = array<i64: 1, 784>}, {transform_indices = @transform_10, window_bounds = array<i64: 16, 784>}]} {
    %c0 = arith.constant 0 : index
    %c0_0 = arith.constant 0 : index
    %0 = vector.load %arg1[%c0, %c0_0] : memref<16x784xf32, #tpu.memory_space<vmem>>, vector<16x784xf32>
    %1 = arith.truncf %0 : vector<16x784xf32> to vector<16x784xbf16>
    %c0_1 = arith.constant 0 : index
    %c0_2 = arith.constant 0 : index
    %2 = vector.load %arg3[%c0_1, %c0_2] : memref<784x512xbf16, #tpu.memory_space<vmem>>, vector<784x512xbf16>
    %cst = arith.constant dense<0.000000e+00> : vector<16x512xf32>
    %3 = tpu.matmul %1, %2, %cst {dimension_numbers = #tpu.dot_dimension_numbers<[1], [0], [0], [1], [0, 0, 1, 1], [], []>} : vector<16x784xbf16>, vector<784x512xbf16>, vector<16x512xf32> -> vector<16x512xf32>
    %c0_3 = arith.constant 0 : index
    %c0_4 = arith.constant 0 : index
    %4 = vector.load %arg4[%c0_3, %c0_4] : memref<1x512xf32, #tpu.memory_space<vmem>>, vector<1x512xf32>
    %5 = vector.broadcast %4 : vector<1x512xf32> to vector<16x512xf32>
    %6 = arith.addf %3, %5 : vector<16x512xf32>
    %cst_5 = arith.constant 0.000000e+00 : f32
    %7 = vector.broadcast %cst_5 : f32 to vector<16x512xf32>
    %8 = arith.maximumf %6, %7 : vector<16x512xf32>
    %9 = arith.truncf %8 : vector<16x512xf32> to vector<16x512xbf16>
    %c0_6 = arith.constant 0 : index
    %c0_7 = arith.constant 0 : index
    %10 = vector.load %arg5[%c0_6, %c0_7] : memref<512x256xbf16, #tpu.memory_space<vmem>>, vector<512x256xbf16>
    %cst_8 = arith.constant dense<0.000000e+00> : vector<16x256xf32>
    %11 = tpu.matmul %9, %10, %cst_8 {dimension_numbers = #tpu.dot_dimension_numbers<[1], [0], [0], [1], [0, 0, 1, 1], [], []>} : vector<16x512xbf16>, vector<512x256xbf16>, vector<16x256xf32> -> vector<16x256xf32>
    %c0_9 = arith.constant 0 : index
    %c0_10 = arith.constant 0 : index
    %12 = vector.load %arg6[%c0_9, %c0_10] : memref<1x256xf32, #tpu.memory_space<vmem>>, vector<1x256xf32>
    %13 = vector.broadcast %12 : vector<1x256xf32> to vector<16x256xf32>
    %14 = arith.addf %11, %13 : vector<16x256xf32>
    %15 = vector.extract_strided_slice %14 {offsets = [0, 0], sizes = [16, 128], strides = [1, 1]} : vector<16x256xf32> to vector<16x128xf32>
    %16 = vector.extract_strided_slice %14 {offsets = [0, 128], sizes = [16, 128], strides = [1, 1]} : vector<16x256xf32> to vector<16x128xf32>
    %cst_11 = arith.constant 5.000000e-01 : f32
    %17 = vector.broadcast %cst_11 : f32 to vector<16x128xf32>
    %18 = arith.mulf %17, %16 : vector<16x128xf32>
    %19 = math.exp %18 : vector<16x128xf32>
    %c0_12 = arith.constant 0 : index
    %c0_13 = arith.constant 0 : index
    %20 = vector.load %arg2[%c0_12, %c0_13] : memref<16x128xf32, #tpu.memory_space<vmem>>, vector<16x128xf32>
    %21 = arith.mulf %20, %19 : vector<16x128xf32>
    %22 = arith.addf %15, %21 : vector<16x128xf32>
    %23 = arith.truncf %22 : vector<16x128xf32> to vector<16x128xbf16>
    %c0_14 = arith.constant 0 : index
    %c0_15 = arith.constant 0 : index
    %24 = vector.load %arg7[%c0_14, %c0_15] : memref<128x512xbf16, #tpu.memory_space<vmem>>, vector<128x512xbf16>
    %cst_16 = arith.constant dense<0.000000e+00> : vector<16x512xf32>
    %25 = tpu.matmul %23, %24, %cst_16 {dimension_numbers = #tpu.dot_dimension_numbers<[1], [0], [0], [1], [0, 0, 1, 1], [], []>} : vector<16x128xbf16>, vector<128x512xbf16>, vector<16x512xf32> -> vector<16x512xf32>
    %c0_17 = arith.constant 0 : index
    %c0_18 = arith.constant 0 : index
    %26 = vector.load %arg8[%c0_17, %c0_18] : memref<1x512xf32, #tpu.memory_space<vmem>>, vector<1x512xf32>
    %27 = vector.broadcast %26 : vector<1x512xf32> to vector<16x512xf32>
    %28 = arith.addf %25, %27 : vector<16x512xf32>
    %cst_19 = arith.constant 0.000000e+00 : f32
    %29 = vector.broadcast %cst_19 : f32 to vector<16x512xf32>
    %30 = arith.maximumf %28, %29 : vector<16x512xf32>
    %31 = arith.truncf %30 : vector<16x512xf32> to vector<16x512xbf16>
    %c0_20 = arith.constant 0 : index
    %c0_21 = arith.constant 0 : index
    %32 = vector.load %arg9[%c0_20, %c0_21] : memref<512x784xbf16, #tpu.memory_space<vmem>>, vector<512x784xbf16>
    %cst_22 = arith.constant dense<0.000000e+00> : vector<16x784xf32>
    %33 = tpu.matmul %31, %32, %cst_22 {dimension_numbers = #tpu.dot_dimension_numbers<[1], [0], [0], [1], [0, 0, 1, 1], [], []>} : vector<16x512xbf16>, vector<512x784xbf16>, vector<16x784xf32> -> vector<16x784xf32>
    %c0_23 = arith.constant 0 : index
    %c0_24 = arith.constant 0 : index
    %34 = vector.load %arg10[%c0_23, %c0_24] : memref<1x784xf32, #tpu.memory_space<vmem>>, vector<1x784xf32>
    %35 = vector.broadcast %34 : vector<1x784xf32> to vector<16x784xf32>
    %36 = arith.addf %33, %35 : vector<16x784xf32>
    %37 = arith.negf %36 : vector<16x784xf32>
    %38 = math.exp %37 : vector<16x784xf32>
    %cst_25 = arith.constant 1.000000e+00 : f32
    %39 = vector.broadcast %cst_25 : f32 to vector<16x784xf32>
    %40 = arith.addf %39, %38 : vector<16x784xf32>
    %41 = arith.divf %39, %40 : vector<16x784xf32>
    %c0_26 = arith.constant 0 : index
    %c0_27 = arith.constant 0 : index
    %42 = vector.load %arg11[%c0_26, %c0_27] : memref<16x784xf32, #tpu.memory_space<vmem>>, vector<16x784xf32>
    tpu.vector_store %arg11[%c0_26, %c0_27], %41 {strides = array<i32>} : memref<16x784xf32, #tpu.memory_space<vmem>>, vector<16x784xf32>,
    return
  }
  func.func @transform_0(%arg0: i32) -> (i32, i32) {
    %c0_i32 = arith.constant 0 : i32
    %c0_i32_0 = arith.constant 0 : i32
    return %arg0, %c0_i32 : i32, i32
  }
  func.func @transform_1(%arg0: i32) -> (i32, i32) {
    %c0_i32 = arith.constant 0 : i32
    %c0_i32_0 = arith.constant 0 : i32
    return %arg0, %c0_i32 : i32, i32
  }
  func.func @transform_2(%arg0: i32) -> (i32, i32) {
    %c0_i32 = arith.constant 0 : i32
    %c0_i32_0 = arith.constant 0 : i32
    %c0_i32_1 = arith.constant 0 : i32
    return %c0_i32, %c0_i32_0 : i32, i32
  }
  func.func @transform_3(%arg0: i32) -> (i32, i32) {
    %c0_i32 = arith.constant 0 : i32
    %c0_i32_0 = arith.constant 0 : i32
    %c0_i32_1 = arith.constant 0 : i32
    return %c0_i32, %c0_i32_0 : i32, i32
  }
  func.func @transform_4(%arg0: i32) -> (i32, i32) {
    %c0_i32 = arith.constant 0 : i32
    %c0_i32_0 = arith.constant 0 : i32
    %c0_i32_1 = arith.constant 0 : i32
    return %c0_i32, %c0_i32_0 : i32, i32
  }
  func.func @transform_5(%arg0: i32) -> (i32, i32) {
    %c0_i32 = arith.constant 0 : i32
    %c0_i32_0 = arith.constant 0 : i32
    %c0_i32_1 = arith.constant 0 : i32
    return %c0_i32, %c0_i32_0 : i32, i32
  }
  func.func @transform_6(%arg0: i32) -> (i32, i32) {
    %c0_i32 = arith.constant 0 : i32
    %c0_i32_0 = arith.constant 0 : i32
    %c0_i32_1 = arith.constant 0 : i32
    return %c0_i32, %c0_i32_0 : i32, i32
  }
  func.func @transform_7(%arg0: i32) -> (i32, i32) {
    %c0_i32 = arith.constant 0 : i32
    %c0_i32_0 = arith.constant 0 : i32
    %c0_i32_1 = arith.constant 0 : i32
    return %c0_i32, %c0_i32_0 : i32, i32
  }
  func.func @transform_8(%arg0: i32) -> (i32, i32) {
    %c0_i32 = arith.constant 0 : i32
    %c0_i32_0 = arith.constant 0 : i32
    %c0_i32_1 = arith.constant 0 : i32
    return %c0_i32, %c0_i32_0 : i32, i32
  }
  func.func @transform_9(%arg0: i32) -> (i32, i32) {
    %c0_i32 = arith.constant 0 : i32
    %c0_i32_0 = arith.constant 0 : i32
    %c0_i32_1 = arith.constant 0 : i32
    return %c0_i32, %c0_i32_0 : i32, i32
  }
  func.func @transform_10(%arg0: i32) -> (i32, i32) {
    %c0_i32 = arith.constant 0 : i32
    %c0_i32_0 = arith.constant 0 : i32
    return %arg0, %c0_i32 : i32, i32
  }
}

</mosaic_0001>

<llo_original>
// kernel: _vae_forward_impl.1
$region0: #{_vae_forward_impl.1}
  #allocation0 [shape = 'u32[]', space=smem, size = 0x4, offset = 0x4, fixed_abs, tag = 'smem constant byte address 0x4 - core index']
  #allocation1 [shape = 'u32[144,128]{1,0:T(1,128)}', space=vmem, size = 0x12000, scoped, tag = 'internal scratch']
  %s0 = inlined_call_operand.vmem [shape: f32[16,784], index: 0, kind: input, shape index: {}]
  %s1 = inlined_call_operand.vmem [shape: f32[16,128], index: 1, kind: input, shape index: {}]
  %s2 = inlined_call_operand.vmem [shape: bf16[784,512], index: 2, kind: input, shape index: {}]
  %s3 = inlined_call_operand.vmem [shape: f32[1,512], index: 3, kind: input, shape index: {}]
  %s4 = inlined_call_operand.vmem [shape: bf16[512,256], index: 4, kind: input, shape index: {}]
  %s5 = inlined_call_operand.vmem [shape: f32[1,256], index: 5, kind: input, shape index: {}]
  %s6 = inlined_call_operand.vmem [shape: bf16[128,512], index: 6, kind: input, shape index: {}]
  %s7 = inlined_call_operand.vmem [shape: f32[1,512], index: 7, kind: input, shape index: {}]
  %s8 = inlined_call_operand.vmem [shape: bf16[512,784], index: 8, kind: input, shape index: {}]
  %s9 = inlined_call_operand.vmem [shape: f32[1,784], index: 9, kind: input, shape index: {}]
  %s10 = inlined_call_operand.vmem [shape: f32[16,784], index: 10, kind: output, shape index: {}]
  %s11 = sld [smem:[#allocation0]]
  $region50: #{_vae_forward_impl.1} parent=0
    _
  %s13 = ssub.s32 1, %s11
  %s14 = scalar_select 0, %s13, %s11
  // Predicated region
  $region2: #{_vae_forward_impl.1} parent=0 // pred_check
    _
  $region3: #{_vae_forward_impl.1} parent=0 // pred_check_branch
    %16 = sbr.rel (0) target = $region5
  $region4: #{_vae_forward_impl.1} parent=0 // pred_region
    _
  $region5: #{_vae_forward_impl.1} parent=0 // pred_fallthru
    _
  // Predicated region
  $region6: #{_vae_forward_impl.1} parent=0 // pred_check
    _
  $region7: #{_vae_forward_impl.1} parent=0 // pred_check_branch
    %18 = sbr.rel (0) target = $region9
  $region8: #{_vae_forward_impl.1} parent=0 // pred_region
    _
  $region9: #{_vae_forward_impl.1} parent=0 // pred_fallthru
    _
  // Predicated region
  $region10: #{_vae_forward_impl.1} parent=0 // pred_check
    _
  $region11: #{_vae_forward_impl.1} parent=0 // pred_check_branch
    %20 = sbr.rel (0) target = $region13
  $region12: #{_vae_forward_impl.1} parent=0 // pred_region
    _
  $region13: #{_vae_forward_impl.1} parent=0 // pred_fallthru
    _
  // Predicated region
  $region14: #{_vae_forward_impl.1} parent=0 // pred_check
    _
  $region15: #{_vae_forward_impl.1} parent=0 // pred_check_branch
    %22 = sbr.rel (0) target = $region17
  $region16: #{_vae_forward_impl.1} parent=0 // pred_region
    _
  $region17: #{_vae_forward_impl.1} parent=0 // pred_fallthru
    _
  // Predicated region
  $region18: #{_vae_forward_impl.1} parent=0 // pred_check
    _
  $region19: #{_vae_forward_impl.1} parent=0 // pred_check_branch
    %24 = sbr.rel (0) target = $region21
  $region20: #{_vae_forward_impl.1} parent=0 // pred_region
    _
  $region21: #{_vae_forward_impl.1} parent=0 // pred_fallthru
    _
  // Predicated region
  $region22: #{_vae_forward_impl.1} parent=0 // pred_check
    _
  $region23: #{_vae_forward_impl.1} parent=0 // pred_check_branch
    %26 = sbr.rel (0) target = $region25
  $region24: #{_vae_forward_impl.1} parent=0 // pred_region
    _
  $region25: #{_vae_forward_impl.1} parent=0 // pred_fallthru
    _
  // Predicated region
  $region26: #{_vae_forward_impl.1} parent=0 // pred_check
    _
  $region27: #{_vae_forward_impl.1} parent=0 // pred_check_branch
    %28 = sbr.rel (0) target = $region29
  $region28: #{_vae_forward_impl.1} parent=0 // pred_region
    _
  $region29: #{_vae_forward_impl.1} parent=0 // pred_fallthru
    _
  // Predicated region
  $region30: #{_vae_forward_impl.1} parent=0 // pred_check
    _
  $region31: #{_vae_forward_impl.1} parent=0 // pred_check_branch
    %30 = sbr.rel (0) target = $region33
  $region32: #{_vae_forward_impl.1} parent=0 // pred_region
    _
  $region33: #{_vae_forward_impl.1} parent=0 // pred_fallthru
    _
  // Predicated region
  $region34: #{_vae_forward_impl.1} parent=0 // pred_check
    _
  $region35: #{_vae_forward_impl.1} parent=0 // pred_check_branch
    %32 = sbr.rel (0) target = $region37
  $region36: #{_vae_forward_impl.1} parent=0 // pred_region
    _
  $region37: #{_vae_forward_impl.1} parent=0 // pred_fallthru
    _
  // Predicated region
  $region38: #{_vae_forward_impl.1} parent=0 // pred_check
    _
  $region39: #{_vae_forward_impl.1} parent=0 // pred_check_branch
    %34 = sbr.rel (0) target = $region41
  $region40: #{_vae_forward_impl.1} parent=0 // pred_region
    _
  $region41: #{_vae_forward_impl.1} parent=0 // pred_fallthru
    _
  %v36 = vld [vmem:[%s0] sm:$0xff]
  %v37 = vld [vmem:[%s0 + $0x8] sm:$0xff]
  %v38 = vld [vmem:[%s0 + $0x10] sm:$0xff]
  %v39 = vld [vmem:[%s0 + $0x18] sm:$0xff]
  %v40 = vld [vmem:[%s0 + $0x20] sm:$0xff]
  %v41 = vld [vmem:[%s0 + $0x28] sm:$0xff]
  %v42 = vld [vmem:[%s0 + $0x30] sm:$0xff]
  %v43 = vld [vmem:[%s0 + $0x38] sm:$0xff]
  %v44 = vld [vmem:[%s0 + $0x40] sm:$0xff]
  %v45 = vld [vmem:[%s0 + $0x48] sm:$0xff]
  %v46 = vld [vmem:[%s0 + $0x50] sm:$0xff]
  %v47 = vld [vmem:[%s0 + $0x58] sm:$0xff]
  %v48 = vld [vmem:[%s0 + $0x60] sm:$0xff]
  %v49 = vld [vmem:[%s0 + $0x68] sm:$0xff]
  %v50 = vpack.c.bf16 %v43, %v36
  %v51 = vpack.c.bf16 %v44, %v37
  %v52 = vpack.c.bf16 %v45, %v38
  %v53 = vpack.c.bf16 %v46, %v39
  %v54 = vpack.c.bf16 %v47, %v40
  %v55 = vpack.c.bf16 %v48, %v41
  %v56 = vpack.c.bf16 %v49, %v42
  %v57 = vld [vmem:[%s2] sm:$0xff]
  %v58 = vld [vmem:[%s2 + $0x8] sm:$0xff]
  %v59 = vld [vmem:[%s2 + $0x10] sm:$0xff]
  %v60 = vld [vmem:[%s2 + $0x18] sm:$0xff]
  %v61 = vld [vmem:[%s2 + $0x20] sm:$0xff]
  %v62 = vld [vmem:[%s2 + $0x28] sm:$0xff]
  %v63 = vld [vmem:[%s2 + $0x30] sm:$0xff]
  %v64 = vld [vmem:[%s2 + $0x38] sm:$0xff]
  %v65 = vld [vmem:[%s2 + $0x40] sm:$0xff]
  %v66 = vld [vmem:[%s2 + $0x48] sm:$0xff]
  %v67 = vld [vmem:[%s2 + $0x50] sm:$0xff]
  %v68 = vld [vmem:[%s2 + $0x58] sm:$0xff]
  %v69 = vld [vmem:[%s2 + $0x60] sm:$0xff]
  %v70 = vld [vmem:[%s2 + $0x68] sm:$0xff]
  %v71 = vld [vmem:[%s2 + $0x70] sm:$0xff]
  %v72 = vld [vmem:[%s2 + $0x78] sm:$0xff]
  %v73 = vld [vmem:[%s2 + $0x80] sm:$0xff]
  %v74 = vld [vmem:[%s2 + $0x88] sm:$0xff]
  %v75 = vld [vmem:[%s2 + $0x90] sm:$0xff]
  %v76 = vld [vmem:[%s2 + $0x98] sm:$0xff]
  %v77 = vld [vmem:[%s2 + $0xa0] sm:$0xff]
  %v78 = vld [vmem:[%s2 + $0xa8] sm:$0xff]
  %v79 = vld [vmem:[%s2 + $0xb0] sm:$0xff]
  %v80 = vld [vmem:[%s2 + $0xb8] sm:$0xff]
  %v81 = vld [vmem:[%s2 + $0xc0] sm:$0xff]
  %v82 = vld [vmem:[%s2 + $0xc8] sm:$0xff]
  %v83 = vld [vmem:[%s2 + $0xd0] sm:$0xff]
  %v84 = vld [vmem:[%s2 + $0xd8] sm:$0xff]
  %v85 = vld [vmem:[%s2 + $0xe0] sm:$0xff]
  %v86 = vld [vmem:[%s2 + $0xe8] sm:$0xff]
  %v87 = vld [vmem:[%s2 + $0xf0] sm:$0xff]
  %v88 = vld [vmem:[%s2 + $0xf8] sm:$0xff]
  %v89 = vld [vmem:[%s2 + $0x100] sm:$0xff]
  %v90 = vld [vmem:[%s2 + $0x108] sm:$0xff]
  %v91 = vld [vmem:[%s2 + $0x110] sm:$0xff]
  %v92 = vld [vmem:[%s2 + $0x118] sm:$0xff]
  %v93 = vld [vmem:[%s2 + $0x120] sm:$0xff]
  %v94 = vld [vmem:[%s2 + $0x128] sm:$0xff]
  %v95 = vld [vmem:[%s2 + $0x130] sm:$0xff]
  %v96 = vld [vmem:[%s2 + $0x138] sm:$0xff]
  %v97 = vld [vmem:[%s2 + $0x140] sm:$0xff]
  %v98 = vld [vmem:[%s2 + $0x148] sm:$0xff]
  %v99 = vld [vmem:[%s2 + $0x150] sm:$0xff]
  %v100 = vld [vmem:[%s2 + $0x158] sm:$0xff]
  %v101 = vld [vmem:[%s2 + $0x160] sm:$0xff]
  %v102 = vld [vmem:[%s2 + $0x168] sm:$0xff]
  %v103 = vld [vmem:[%s2 + $0x170] sm:$0xff]
  %v104 = vld [vmem:[%s2 + $0x178] sm:$0xff]
  %v105 = vld [vmem:[%s2 + $0x180] sm:$0xff]
  %v106 = vld [vmem:[%s2 + $0x188] sm:$0xff]
  %v107 = vld [vmem:[%s2 + $0x190] sm:$0xff]
  %v108 = vld [vmem:[%s2 + $0x198] sm:$0xff]
  %v109 = vld [vmem:[%s2 + $0x1a0] sm:$0xff]
  %v110 = vld [vmem:[%s2 + $0x1a8] sm:$0xff]
  %v111 = vld [vmem:[%s2 + $0x1b0] sm:$0xff]
  %v112 = vld [vmem:[%s2 + $0x1b8] sm:$0xff]
  %v113 = vld [vmem:[%s2 + $0x1c0] sm:$0xff]
  %v114 = vld [vmem:[%s2 + $0x1c8] sm:$0xff]
  %v115 = vld [vmem:[%s2 + $0x1d0] sm:$0xff]
  %v116 = vld [vmem:[%s2 + $0x1d8] sm:$0xff]
  %v117 = vld [vmem:[%s2 + $0x1e0] sm:$0xff]
  %v118 = vld [vmem:[%s2 + $0x1e8] sm:$0xff]
  %v119 = vld [vmem:[%s2 + $0x1f0] sm:$0xff]
  %v120 = vld [vmem:[%s2 + $0x1f8] sm:$0xff]
  %v121 = vld [vmem:[%s2 + $0x200] sm:$0xff]
  %v122 = vld [vmem:[%s2 + $0x208] sm:$0xff]
  %v123 = vld [vmem:[%s2 + $0x210] sm:$0xff]
  %v124 = vld [vmem:[%s2 + $0x218] sm:$0xff]
  %v125 = vld [vmem:[%s2 + $0x220] sm:$0xff]
  %v126 = vld [vmem:[%s2 + $0x228] sm:$0xff]
  %v127 = vld [vmem:[%s2 + $0x230] sm:$0xff]
  %v128 = vld [vmem:[%s2 + $0x238] sm:$0xff]
  %v129 = vld [vmem:[%s2 + $0x240] sm:$0xff]
  %v130 = vld [vmem:[%s2 + $0x248] sm:$0xff]
  %v131 = vld [vmem:[%s2 + $0x250] sm:$0xff]
  %v132 = vld [vmem:[%s2 + $0x258] sm:$0xff]
  %v133 = vld [vmem:[%s2 + $0x260] sm:$0xff]
  %v134 = vld [vmem:[%s2 + $0x268] sm:$0xff]
  %v135 = vld [vmem:[%s2 + $0x270] sm:$0xff]
  %v136 = vld [vmem:[%s2 + $0x278] sm:$0xff]
  %v137 = vld [vmem:[%s2 + $0x280] sm:$0xff]
  %v138 = vld [vmem:[%s2 + $0x288] sm:$0xff]
  %v139 = vld [vmem:[%s2 + $0x290] sm:$0xff]
  %v140 = vld [vmem:[%s2 + $0x298] sm:$0xff]
  %v141 = vld [vmem:[%s2 + $0x2a0] sm:$0xff]
  %v142 = vld [vmem:[%s2 + $0x2a8] sm:$0xff]
  %v143 = vld [vmem:[%s2 + $0x2b0] sm:$0xff]
  %v144 = vld [vmem:[%s2 + $0x2b8] sm:$0xff]
  %v145 = vld [vmem:[%s2 + $0x2c0] sm:$0xff]
  %v146 = vld [vmem:[%s2 + $0x2c8] sm:$0xff]
  %v147 = vld [vmem:[%s2 + $0x2d0] sm:$0xff]
  %v148 = vld [vmem:[%s2 + $0x2d8] sm:$0xff]
  %v149 = vld [vmem:[%s2 + $0x2e0] sm:$0xff]
  %v150 = vld [vmem:[%s2 + $0x2e8] sm:$0xff]
  %v151 = vld [vmem:[%s2 + $0x2f0] sm:$0xff]
  %v152 = vld [vmem:[%s2 + $0x2f8] sm:$0xff]
  %v153 = vld [vmem:[%s2 + $0x300] sm:$0xff]
  %v154 = vld [vmem:[%s2 + $0x308] sm:$0xff]
  %v155 = vld [vmem:[%s2 + $0x310] sm:$0xff]
  %v156 = vld [vmem:[%s2 + $0x318] sm:$0xff]
  %v157 = vld [vmem:[%s2 + $0x320] sm:$0xff]
  %v158 = vld [vmem:[%s2 + $0x328] sm:$0xff]
  %v159 = vld [vmem:[%s2 + $0x330] sm:$0xff]
  %v160 = vld [vmem:[%s2 + $0x338] sm:$0xff]
  %v161 = vld [vmem:[%s2 + $0x340] sm:$0xff]
  %v162 = vld [vmem:[%s2 + $0x348] sm:$0xff]
  %v163 = vld [vmem:[%s2 + $0x350] sm:$0xff]
  %v164 = vld [vmem:[%s2 + $0x358] sm:$0xff]
  %v165 = vld [vmem:[%s2 + $0x360] sm:$0xff]
  %v166 = vld [vmem:[%s2 + $0x368] sm:$0xff]
  %v167 = vld [vmem:[%s2 + $0x370] sm:$0xff]
  %v168 = vld [vmem:[%s2 + $0x378] sm:$0xff]
  %v169 = vld [vmem:[%s2 + $0x380] sm:$0xff]
  %v170 = vld [vmem:[%s2 + $0x388] sm:$0xff]
  %v171 = vld [vmem:[%s2 + $0x390] sm:$0xff]
  %v172 = vld [vmem:[%s2 + $0x398] sm:$0xff]
  %v173 = vld [vmem:[%s2 + $0x3a0] sm:$0xff]
  %v174 = vld [vmem:[%s2 + $0x3a8] sm:$0xff]
  %v175 = vld [vmem:[%s2 + $0x3b0] sm:$0xff]
  %v176 = vld [vmem:[%s2 + $0x3b8] sm:$0xff]
  %v177 = vld [vmem:[%s2 + $0x3c0] sm:$0xff]
  %v178 = vld [vmem:[%s2 + $0x3c8] sm:$0xff]
  %v179 = vld [vmem:[%s2 + $0x3d0] sm:$0xff]
  %v180 = vld [vmem:[%s2 + $0x3d8] sm:$0xff]
  %v181 = vld [vmem:[%s2 + $0x3e0] sm:$0xff]
  %v182 = vld [vmem:[%s2 + $0x3e8] sm:$0xff]
  %v183 = vld [vmem:[%s2 + $0x3f0] sm:$0xff]
  %v184 = vld [vmem:[%s2 + $0x3f8] sm:$0xff]
  %v185 = vld [vmem:[%s2 + $0x400] sm:$0xff]
  %v186 = vld [vmem:[%s2 + $0x408] sm:$0xff]
  %v187 = vld [vmem:[%s2 + $0x410] sm:$0xff]
  %v188 = vld [vmem:[%s2 + $0x418] sm:$0xff]
  %v189 = vld [vmem:[%s2 + $0x420] sm:$0xff]
  %v190 = vld [vmem:[%s2 + $0x428] sm:$0xff]
  %v191 = vld [vmem:[%s2 + $0x430] sm:$0xff]
  %v192 = vld [vmem:[%s2 + $0x438] sm:$0xff]
  %v193 = vld [vmem:[%s2 + $0x440] sm:$0xff]
  %v194 = vld [vmem:[%s2 + $0x448] sm:$0xff]
  %v195 = vld [vmem:[%s2 + $0x450] sm:$0xff]
  %v196 = vld [vmem:[%s2 + $0x458] sm:$0xff]
  %v197 = vld [vmem:[%s2 + $0x460] sm:$0xff]
  %v198 = vld [vmem:[%s2 + $0x468] sm:$0xff]
  %v199 = vld [vmem:[%s2 + $0x470] sm:$0xff]
  %v200 = vld [vmem:[%s2 + $0x478] sm:$0xff]
  %v201 = vld [vmem:[%s2 + $0x480] sm:$0xff]
  %v202 = vld [vmem:[%s2 + $0x488] sm:$0xff]
  %v203 = vld [vmem:[%s2 + $0x490] sm:$0xff]
  %v204 = vld [vmem:[%s2 + $0x498] sm:$0xff]
  %v205 = vld [vmem:[%s2 + $0x4a0] sm:$0xff]
  %v206 = vld [vmem:[%s2 + $0x4a8] sm:$0xff]
  %v207 = vld [vmem:[%s2 + $0x4b0] sm:$0xff]
  %v208 = vld [vmem:[%s2 + $0x4b8] sm:$0xff]
  %v209 = vld [vmem:[%s2 + $0x4c0] sm:$0xff]
  %v210 = vld [vmem:[%s2 + $0x4c8] sm:$0xff]
  %v211 = vld [vmem:[%s2 + $0x4d0] sm:$0xff]
  %v212 = vld [vmem:[%s2 + $0x4d8] sm:$0xff]
  %v213 = vld [vmem:[%s2 + $0x4e0] sm:$0xff]
  %v214 = vld [vmem:[%s2 + $0x4e8] sm:$0xff]
  %v215 = vld [vmem:[%s2 + $0x4f0] sm:$0xff]
  %v216 = vld [vmem:[%s2 + $0x4f8] sm:$0xff]
  %v217 = vld [vmem:[%s2 + $0x500] sm:$0xff]
  %v218 = vld [vmem:[%s2 + $0x508] sm:$0xff]
  %v219 = vld [vmem:[%s2 + $0x510] sm:$0xff]
  %v220 = vld [vmem:[%s2 + $0x518] sm:$0xff]
  %v221 = vld [vmem:[%s2 + $0x520] sm:$0xff]
  %v222 = vld [vmem:[%s2 + $0x528] sm:$0xff]
  %v223 = vld [vmem:[%s2 + $0x530] sm:$0xff]
  %v224 = vld [vmem:[%s2 + $0x538] sm:$0xff]
  %v225 = vld [vmem:[%s2 + $0x540] sm:$0xff]
  %v226 = vld [vmem:[%s2 + $0x548] sm:$0xff]
  %v227 = vld [vmem:[%s2 + $0x550] sm:$0xff]
  %v228 = vld [vmem:[%s2 + $0x558] sm:$0xff]
  %v229 = vld [vmem:[%s2 + $0x560] sm:$0xff]
  %v230 = vld [vmem:[%s2 + $0x568] sm:$0xff]
  %v231 = vld [vmem:[%s2 + $0x570] sm:$0xff]
  %v232 = vld [vmem:[%s2 + $0x578] sm:$0xff]
  %v233 = vld [vmem:[%s2 + $0x580] sm:$0xff]
  %v234 = vld [vmem:[%s2 + $0x588] sm:$0xff]
  %v235 = vld [vmem:[%s2 + $0x590] sm:$0xff]
  %v236 = vld [vmem:[%s2 + $0x598] sm:$0xff]
  %v237 = vld [vmem:[%s2 + $0x5a0] sm:$0xff]
  %v238 = vld [vmem:[%s2 + $0x5a8] sm:$0xff]
  %v239 = vld [vmem:[%s2 + $0x5b0] sm:$0xff]
  %v240 = vld [vmem:[%s2 + $0x5b8] sm:$0xff]
  %v241 = vld [vmem:[%s2 + $0x5c0] sm:$0xff]
  %v242 = vld [vmem:[%s2 + $0x5c8] sm:$0xff]
  %v243 = vld [vmem:[%s2 + $0x5d0] sm:$0xff]
  %v244 = vld [vmem:[%s2 + $0x5d8] sm:$0xff]
  %v245 = vld [vmem:[%s2 + $0x5e0] sm:$0xff]
  %v246 = vld [vmem:[%s2 + $0x5e8] sm:$0xff]
  %v247 = vld [vmem:[%s2 + $0x5f0] sm:$0xff]
  %v248 = vld [vmem:[%s2 + $0x5f8] sm:$0xff]
  %v249 = vld [vmem:[%s2 + $0x600] sm:$0xff]
  %v250 = vld [vmem:[%s2 + $0x608] sm:$0xff]
  %v251 = vld [vmem:[%s2 + $0x610] sm:$0xff]
  %v252 = vld [vmem:[%s2 + $0x618] sm:$0xff]
  %v253 = vld [vmem:[%s3] sm:$0xf]
  %v255 = vlaneseq
  %v256 = vshrl.u32 %v255, 7
  %v257 = vsub.s32 0, %v256
  %v258 = vrot.slane %v253, %v257
  %v259 = vlaneseq
  %v260 = vshrl.u32 %v259, 7
  %v261 = vsub.s32 1, %v260
  %v262 = vrot.slane %v253, %v261
  %v263 = vlaneseq
  %v264 = vshrl.u32 %v263, 7
  %v265 = vsub.s32 2, %v264
  %v266 = vrot.slane %v253, %v265
  %v267 = vlaneseq
  %v268 = vshrl.u32 %v267, 7
  %v269 = vsub.s32 3, %v268
  %v270 = vrot.slane %v253, %v269
  %v471 = vunpack.c.l.b16 %v57
  %v472 = vunpack.c.h.b16 %v57
  %v473 = vunpack.c.l.b16 %v58
  %v474 = vunpack.c.h.b16 %v58
  %v475 = vunpack.c.l.b16 %v59
  %v476 = vunpack.c.h.b16 %v59
  %v477 = vunpack.c.l.b16 %v60
  %v478 = vunpack.c.h.b16 %v60
  %v479 = vunpack.c.l.b16 %v61
  %v480 = vunpack.c.h.b16 %v61
  %v481 = vunpack.c.l.b16 %v62
  %v482 = vunpack.c.h.b16 %v62
  %v483 = vunpack.c.l.b16 %v63
  %v484 = vunpack.c.h.b16 %v63
  %v485 = vunpack.c.l.b16 %v64
  %v486 = vunpack.c.h.b16 %v64
  %v487 = vunpack.c.l.b16 %v65
  %v488 = vunpack.c.h.b16 %v65
  %v489 = vunpack.c.l.b16 %v66
  %v490 = vunpack.c.h.b16 %v66
  %v491 = vunpack.c.l.b16 %v67
  %v492 = vunpack.c.h.b16 %v67
  %v493 = vunpack.c.l.b16 %v68
  %v494 = vunpack.c.h.b16 %v68
  %v495 = vunpack.c.l.b16 %v69
  %v496 = vunpack.c.h.b16 %v69
  %v497 = vunpack.c.l.b16 %v70
  %v498 = vunpack.c.h.b16 %v70
  %v499 = vunpack.c.l.b16 %v71
  %v500 = vunpack.c.h.b16 %v71
  %v501 = vunpack.c.l.b16 %v72
  %v502 = vunpack.c.h.b16 %v72
  %v503 = vunpack.c.l.b16 %v73
  %v504 = vunpack.c.h.b16 %v73
  %v505 = vunpack.c.l.b16 %v74
  %v506 = vunpack.c.h.b16 %v74
  %v507 = vunpack.c.l.b16 %v75
  %v508 = vunpack.c.h.b16 %v75
  %v509 = vunpack.c.l.b16 %v76
  %v510 = vunpack.c.h.b16 %v76
  %v511 = vunpack.c.l.b16 %v77
  %v512 = vunpack.c.h.b16 %v77
  %v513 = vunpack.c.l.b16 %v78
  %v514 = vunpack.c.h.b16 %v78
  %v515 = vunpack.c.l.b16 %v79
  %v516 = vunpack.c.h.b16 %v79
  %v517 = vunpack.c.l.b16 %v80
  %v518 = vunpack.c.h.b16 %v80
  %v519 = vunpack.c.l.b16 %v81
  %v520 = vunpack.c.h.b16 %v81
  %v521 = vunpack.c.l.b16 %v82
  %v522 = vunpack.c.h.b16 %v82
  %v523 = vunpack.c.l.b16 %v83
  %v524 = vunpack.c.h.b16 %v83
  %v525 = vunpack.c.l.b16 %v84
  %v526 = vunpack.c.h.b16 %v84
  %v527 = vunpack.c.l.b16 %v85
  %v528 = vunpack.c.h.b16 %v85
  %v529 = vunpack.c.l.b16 %v86
  %v530 = vunpack.c.h.b16 %v86
  %v531 = vunpack.c.l.b16 %v87
  %v532 = vunpack.c.h.b16 %v87
  %v533 = vunpack.c.l.b16 %v88
  %v534 = vunpack.c.h.b16 %v88
  %v535 = vunpack.c.l.b16 %v89
  %v536 = vunpack.c.h.b16 %v89
  %v537 = vunpack.c.l.b16 %v90
  %v538 = vunpack.c.h.b16 %v90
  %v539 = vunpack.c.l.b16 %v91
  %v540 = vunpack.c.h.b16 %v91
  %v541 = vunpack.c.l.b16 %v92
  %v542 = vunpack.c.h.b16 %v92
  %v543 = vunpack.c.l.b16 %v93
  %v544 = vunpack.c.h.b16 %v93
  %v545 = vunpack.c.l.b16 %v94
  %v546 = vunpack.c.h.b16 %v94
  %v547 = vunpack.c.l.b16 %v95
  %v548 = vunpack.c.h.b16 %v95
  %v549 = vunpack.c.l.b16 %v96
  %v550 = vunpack.c.h.b16 %v96
  %v551 = vunpack.c.l.b16 %v97
  %v552 = vunpack.c.h.b16 %v97
  %v553 = vunpack.c.l.b16 %v98
  %v554 = vunpack.c.h.b16 %v98
  %v555 = vunpack.c.l.b16 %v99
  %v556 = vunpack.c.h.b16 %v99
  %v557 = vunpack.c.l.b16 %v100
  %v558 = vunpack.c.h.b16 %v100
  %v559 = vunpack.c.l.b16 %v101
  %v560 = vunpack.c.h.b16 %v101
  %v561 = vunpack.c.l.b16 %v102
  %v562 = vunpack.c.h.b16 %v102
  %v563 = vunpack.c.l.b16 %v103
  %v564 = vunpack.c.h.b16 %v103
  %v565 = vunpack.c.l.b16 %v104
  %v566 = vunpack.c.h.b16 %v104
  %v567 = vunpack.c.l.b16 %v105
  %v568 = vunpack.c.h.b16 %v105
  %v569 = vunpack.c.l.b16 %v106
  %v570 = vunpack.c.h.b16 %v106
  %v571 = vunpack.c.l.b16 %v107
  %v572 = vunpack.c.h.b16 %v107
  %v573 = vunpack.c.l.b16 %v108
  %v574 = vunpack.c.h.b16 %v108
  %v575 = vunpack.c.l.b16 %v109
  %v576 = vunpack.c.h.b16 %v109
  %v577 = vunpack.c.l.b16 %v110
  %v578 = vunpack.c.h.b16 %v110
  %v579 = vunpack.c.l.b16 %v111
  %v580 = vunpack.c.h.b16 %v111
  %v581 = vunpack.c.l.b16 %v112
  %v582 = vunpack.c.h.b16 %v112
  %v583 = vunpack.c.l.b16 %v113
  %v584 = vunpack.c.h.b16 %v113
  %v585 = vunpack.c.l.b16 %v114
  %v586 = vunpack.c.h.b16 %v114
  %v587 = vunpack.c.l.b16 %v115
  %v588 = vunpack.c.h.b16 %v115
  %v589 = vunpack.c.l.b16 %v116
  %v590 = vunpack.c.h.b16 %v116
  %v591 = vunpack.c.l.b16 %v117
  %v592 = vunpack.c.h.b16 %v117
  %v593 = vunpack.c.l.b16 %v118
  %v594 = vunpack.c.h.b16 %v118
  %v595 = vunpack.c.l.b16 %v119
  %v596 = vunpack.c.h.b16 %v119
  %v597 = vunpack.c.l.b16 %v120
  %v598 = vunpack.c.h.b16 %v120
  %v599 = vunpack.c.l.b16 %v121
  %v600 = vunpack.c.h.b16 %v121
  %v601 = vunpack.c.l.b16 %v122
  %v602 = vunpack.c.h.b16 %v122
  %v603 = vunpack.c.l.b16 %v123
  %v604 = vunpack.c.h.b16 %v123
  %v605 = vunpack.c.l.b16 %v124
  %v606 = vunpack.c.h.b16 %v124
  %v607 = vunpack.c.l.b16 %v125
  %v608 = vunpack.c.h.b16 %v125
  %v609 = vunpack.c.l.b16 %v126
  %v610 = vunpack.c.h.b16 %v126
  %v611 = vunpack.c.l.b16 %v127
  %v612 = vunpack.c.h.b16 %v127
  %v613 = vunpack.c.l.b16 %v128
  %v614 = vunpack.c.h.b16 %v128
  %v615 = vunpack.c.l.b16 %v129
  %v616 = vunpack.c.h.b16 %v129
  %v617 = vunpack.c.l.b16 %v130
  %v618 = vunpack.c.h.b16 %v130
  %v619 = vunpack.c.l.b16 %v131
  %v620 = vunpack.c.h.b16 %v131
  %v621 = vunpack.c.l.b16 %v132
  %v622 = vunpack.c.h.b16 %v132
  %v623 = vunpack.c.l.b16 %v133
  %v624 = vunpack.c.h.b16 %v133
  %v625 = vunpack.c.l.b16 %v134
  %v626 = vunpack.c.h.b16 %v134
  %v627 = vunpack.c.l.b16 %v135
  %v628 = vunpack.c.h.b16 %v135
  %v629 = vunpack.c.l.b16 %v136
  %v630 = vunpack.c.h.b16 %v136
  %v631 = vunpack.c.l.b16 %v137
  %v632 = vunpack.c.h.b16 %v137
  %v633 = vunpack.c.l.b16 %v138
  %v634 = vunpack.c.h.b16 %v138
  %v635 = vunpack.c.l.b16 %v139
  %v636 = vunpack.c.h.b16 %v139
  %v637 = vunpack.c.l.b16 %v140
  %v638 = vunpack.c.h.b16 %v140
  %v639 = vunpack.c.l.b16 %v141
  %v640 = vunpack.c.h.b16 %v141
  %v641 = vunpack.c.l.b16 %v142
  %v642 = vunpack.c.h.b16 %v142
  %v643 = vunpack.c.l.b16 %v143
  %v644 = vunpack.c.h.b16 %v143
  %v645 = vunpack.c.l.b16 %v144
  %v646 = vunpack.c.h.b16 %v144
  %v647 = vunpack.c.l.b16 %v145
  %v648 = vunpack.c.h.b16 %v145
  %v649 = vunpack.c.l.b16 %v146
  %v650 = vunpack.c.h.b16 %v146
  %v651 = vunpack.c.l.b16 %v147
  %v652 = vunpack.c.h.b16 %v147
  %v653 = vunpack.c.l.b16 %v148
  %v654 = vunpack.c.h.b16 %v148
  %v655 = vunpack.c.l.b16 %v149
  %v656 = vunpack.c.h.b16 %v149
  %v657 = vunpack.c.l.b16 %v150
  %v658 = vunpack.c.h.b16 %v150
  %v659 = vunpack.c.l.b16 %v151
  %v660 = vunpack.c.h.b16 %v151
  %v661 = vunpack.c.l.b16 %v152
  %v662 = vunpack.c.h.b16 %v152
  %v663 = vunpack.c.l.b16 %v153
  %v664 = vunpack.c.h.b16 %v153
  %v665 = vunpack.c.l.b16 %v154
  %v666 = vunpack.c.h.b16 %v154
  %v667 = vunpack.c.l.b16 %v155
  %v668 = vunpack.c.h.b16 %v155
  %v669 = vunpack.c.l.b16 %v156
  %v670 = vunpack.c.h.b16 %v156
  %v671 = vunpack.c.l.b16 %v157
  %v672 = vunpack.c.h.b16 %v157
  %v673 = vunpack.c.l.b16 %v158
  %v674 = vunpack.c.h.b16 %v158
  %v675 = vunpack.c.l.b16 %v159
  %v676 = vunpack.c.h.b16 %v159
  %v677 = vunpack.c.l.b16 %v160
  %v678 = vunpack.c.h.b16 %v160
  %v679 = vunpack.c.l.b16 %v161
  %v680 = vunpack.c.h.b16 %v161
  %v681 = vunpack.c.l.b16 %v162
  %v682 = vunpack.c.h.b16 %v162
  %v683 = vunpack.c.l.b16 %v163
  %v684 = vunpack.c.h.b16 %v163
  %v685 = vunpack.c.l.b16 %v164
  %v686 = vunpack.c.h.b16 %v164
  %v687 = vunpack.c.l.b16 %v165
  %v688 = vunpack.c.h.b16 %v165
  %v689 = vunpack.c.l.b16 %v166
  %v690 = vunpack.c.h.b16 %v166
  %v691 = vunpack.c.l.b16 %v167
  %v692 = vunpack.c.h.b16 %v167
  %v693 = vunpack.c.l.b16 %v168
  %v694 = vunpack.c.h.b16 %v168
  %v695 = vunpack.c.l.b16 %v169
  %v696 = vunpack.c.h.b16 %v169
  %v697 = vunpack.c.l.b16 %v170
  %v698 = vunpack.c.h.b16 %v170
  %v699 = vunpack.c.l.b16 %v171
  %v700 = vunpack.c.h.b16 %v171
  %v701 = vunpack.c.l.b16 %v172
  %v702 = vunpack.c.h.b16 %v172
  %v703 = vunpack.c.l.b16 %v173
  %v704 = vunpack.c.h.b16 %v173
  %v705 = vunpack.c.l.b16 %v174
  %v706 = vunpack.c.h.b16 %v174
  %v707 = vunpack.c.l.b16 %v175
  %v708 = vunpack.c.h.b16 %v175
  %v709 = vunpack.c.l.b16 %v176
  %v710 = vunpack.c.h.b16 %v176
  %v711 = vunpack.c.l.b16 %v177
  %v712 = vunpack.c.h.b16 %v177
  %v713 = vunpack.c.l.b16 %v178
  %v714 = vunpack.c.h.b16 %v178
  %v715 = vunpack.c.l.b16 %v179
  %v716 = vunpack.c.h.b16 %v179
  %v717 = vunpack.c.l.b16 %v180
  %v718 = vunpack.c.h.b16 %v180
  %v719 = vunpack.c.l.b16 %v181
  %v720 = vunpack.c.h.b16 %v181
  %v721 = vunpack.c.l.b16 %v182
  %v722 = vunpack.c.h.b16 %v182
  %v723 = vunpack.c.l.b16 %v183
  %v724 = vunpack.c.h.b16 %v183
  %v725 = vunpack.c.l.b16 %v184
  %v726 = vunpack.c.h.b16 %v184
  %v727 = vunpack.c.l.b16 %v185
  %v728 = vunpack.c.h.b16 %v185
  %v729 = vunpack.c.l.b16 %v186
  %v730 = vunpack.c.h.b16 %v186
  %v731 = vunpack.c.l.b16 %v187
  %v732 = vunpack.c.h.b16 %v187
  %v733 = vunpack.c.l.b16 %v188
  %v734 = vunpack.c.h.b16 %v188
  %v735 = vunpack.c.l.b16 %v189
  %v736 = vunpack.c.h.b16 %v189
  %v737 = vunpack.c.l.b16 %v190
  %v738 = vunpack.c.h.b16 %v190
  %v739 = vunpack.c.l.b16 %v191
  %v740 = vunpack.c.h.b16 %v191
  %v741 = vunpack.c.l.b16 %v192
  %v742 = vunpack.c.h.b16 %v192
  %v743 = vunpack.c.l.b16 %v193
  %v744 = vunpack.c.h.b16 %v193
  %v745 = vunpack.c.l.b16 %v194
  %v746 = vunpack.c.h.b16 %v194
  %v747 = vunpack.c.l.b16 %v195
  %v748 = vunpack.c.h.b16 %v195
  %v749 = vunpack.c.l.b16 %v196
  %v750 = vunpack.c.h.b16 %v196
  %v751 = vunpack.c.l.b16 %v197
  %v752 = vunpack.c.h.b16 %v197
  %v753 = vunpack.c.l.b16 %v198
  %v754 = vunpack.c.h.b16 %v198
  %v755 = vunpack.c.l.b16 %v199
  %v756 = vunpack.c.h.b16 %v199
  %v757 = vunpack.c.l.b16 %v200
  %v758 = vunpack.c.h.b16 %v200
  %v759 = vunpack.c.l.b16 %v201
  %v760 = vunpack.c.h.b16 %v201
  %v761 = vunpack.c.l.b16 %v202
  %v762 = vunpack.c.h.b16 %v202
  %v763 = vunpack.c.l.b16 %v203
  %v764 = vunpack.c.h.b16 %v203
  %v765 = vunpack.c.l.b16 %v204
  %v766 = vunpack.c.h.b16 %v204
  %v767 = vunpack.c.l.b16 %v205
  %v768 = vunpack.c.h.b16 %v205
  %v769 = vunpack.c.l.b16 %v206
  %v770 = vunpack.c.h.b16 %v206
  %v771 = vunpack.c.l.b16 %v207
  %v772 = vunpack.c.h.b16 %v207
  %v773 = vunpack.c.l.b16 %v208
  %v774 = vunpack.c.h.b16 %v208
  %v775 = vunpack.c.l.b16 %v209
  %v776 = vunpack.c.h.b16 %v209
  %v777 = vunpack.c.l.b16 %v210
  %v778 = vunpack.c.h.b16 %v210
  %v779 = vunpack.c.l.b16 %v211
  %v780 = vunpack.c.h.b16 %v211
  %v781 = vunpack.c.l.b16 %v212
  %v782 = vunpack.c.h.b16 %v212
  %v783 = vunpack.c.l.b16 %v213
  %v784 = vunpack.c.h.b16 %v213
  %v785 = vunpack.c.l.b16 %v214
  %v786 = vunpack.c.h.b16 %v214
  %v787 = vunpack.c.l.b16 %v215
  %v788 = vunpack.c.h.b16 %v215
  %v789 = vunpack.c.l.b16 %v216
  %v790 = vunpack.c.h.b16 %v216
  %v791 = vunpack.c.l.b16 %v217
  %v792 = vunpack.c.h.b16 %v217
  %v793 = vunpack.c.l.b16 %v218
  %v794 = vunpack.c.h.b16 %v218
  %v795 = vunpack.c.l.b16 %v219
  %v796 = vunpack.c.h.b16 %v219
  %v797 = vunpack.c.l.b16 %v220
  %v798 = vunpack.c.h.b16 %v220
  %v799 = vunpack.c.l.b16 %v221
  %v800 = vunpack.c.h.b16 %v221
  %v801 = vunpack.c.l.b16 %v222
  %v802 = vunpack.c.h.b16 %v222
  %v803 = vunpack.c.l.b16 %v223
  %v804 = vunpack.c.h.b16 %v223
  %v805 = vunpack.c.l.b16 %v224
  %v806 = vunpack.c.h.b16 %v224
  %v807 = vunpack.c.l.b16 %v225
  %v808 = vunpack.c.h.b16 %v225
  %v809 = vunpack.c.l.b16 %v226
  %v810 = vunpack.c.h.b16 %v226
  %v811 = vunpack.c.l.b16 %v227
  %v812 = vunpack.c.h.b16 %v227
  %v813 = vunpack.c.l.b16 %v228
  %v814 = vunpack.c.h.b16 %v228
  %v815 = vunpack.c.l.b16 %v229
  %v816 = vunpack.c.h.b16 %v229
  %v817 = vunpack.c.l.b16 %v230
  %v818 = vunpack.c.h.b16 %v230
  %v819 = vunpack.c.l.b16 %v231
  %v820 = vunpack.c.h.b16 %v231
  %v821 = vunpack.c.l.b16 %v232
  %v822 = vunpack.c.h.b16 %v232
  %v823 = vunpack.c.l.b16 %v233
  %v824 = vunpack.c.h.b16 %v233
  %v825 = vunpack.c.l.b16 %v234
  %v826 = vunpack.c.h.b16 %v234
  %v827 = vunpack.c.l.b16 %v235
  %v828 = vunpack.c.h.b16 %v235
  %v829 = vunpack.c.l.b16 %v236
  %v830 = vunpack.c.h.b16 %v236
  %v831 = vunpack.c.l.b16 %v237
  %v832 = vunpack.c.h.b16 %v237
  %v833 = vunpack.c.l.b16 %v238
  %v834 = vunpack.c.h.b16 %v238
  %v835 = vunpack.c.l.b16 %v239
  %v836 = vunpack.c.h.b16 %v239
  %v837 = vunpack.c.l.b16 %v240
  %v838 = vunpack.c.h.b16 %v240
  %v839 = vunpack.c.l.b16 %v241
  %v840 = vunpack.c.h.b16 %v241
  %v841 = vunpack.c.l.b16 %v242
  %v842 = vunpack.c.h.b16 %v242
  %v843 = vunpack.c.l.b16 %v243
  %v844 = vunpack.c.h.b16 %v243
  %v845 = vunpack.c.l.b16 %v244
  %v846 = vunpack.c.h.b16 %v244
  %v847 = vunpack.c.l.b16 %v245
  %v848 = vunpack.c.h.b16 %v245
  %v849 = vunpack.c.l.b16 %v246
  %v850 = vunpack.c.h.b16 %v246
  %v851 = vunpack.c.l.b16 %v247
  %v852 = vunpack.c.h.b16 %v247
  %v853 = vunpack.c.l.b16 %v248
  %v854 = vunpack.c.h.b16 %v248
  %v855 = vunpack.c.l.b16 %v249
  %v856 = vunpack.c.h.b16 %v249
  %v857 = vunpack.c.l.b16 %v250
  %v858 = vunpack.c.h.b16 %v250
  %v859 = vunpack.c.l.b16 %v251
  %v860 = vunpack.c.h.b16 %v251
  %v861 = vunpack.c.l.b16 %v252
  %v862 = vunpack.c.h.b16 %v252
  %v863 = vpack.c.b16 %v475, %v471
  %v864 = vpack.c.b16 %v476, %v472
  %v865 = vpack.c.b16 %v477, %v473
  %v866 = vpack.c.b16 %v478, %v474
  %v867 = vpack.c.b16 %v483, %v479
  %v868 = vpack.c.b16 %v484, %v480
  %v869 = vpack.c.b16 %v485, %v481
  %v870 = vpack.c.b16 %v486, %v482
  %v871 = vpack.c.b16 %v491, %v487
  %v872 = vpack.c.b16 %v492, %v488
  %v873 = vpack.c.b16 %v493, %v489
  %v874 = vpack.c.b16 %v494, %v490
  %v875 = vpack.c.b16 %v499, %v495
  %v876 = vpack.c.b16 %v500, %v496
  %v877 = vpack.c.b16 %v501, %v497
  %v878 = vpack.c.b16 %v502, %v498
  %v879 = vpack.c.b16 %v507, %v503
  %v880 = vpack.c.b16 %v508, %v504
  %v881 = vpack.c.b16 %v509, %v505
  %v882 = vpack.c.b16 %v510, %v506
  %v883 = vpack.c.b16 %v515, %v511
  %v884 = vpack.c.b16 %v516, %v512
  %v885 = vpack.c.b16 %v517, %v513
  %v886 = vpack.c.b16 %v518, %v514
  %v887 = vpack.c.b16 %v523, %v519
  %v888 = vpack.c.b16 %v524, %v520
  %v889 = vpack.c.b16 %v525, %v521
  %v890 = vpack.c.b16 %v526, %v522
  %v891 = vpack.c.b16 %v531, %v527
  %v892 = vpack.c.b16 %v532, %v528
  %v893 = vpack.c.b16 %v533, %v529
  %v894 = vpack.c.b16 %v534, %v530
  %v895 = vpack.c.b16 %v539, %v535
  %v896 = vpack.c.b16 %v540, %v536
  %v897 = vpack.c.b16 %v541, %v537
  %v898 = vpack.c.b16 %v542, %v538
  %v899 = vpack.c.b16 %v547, %v543
  %v900 = vpack.c.b16 %v548, %v544
  %v901 = vpack.c.b16 %v549, %v545
  %v902 = vpack.c.b16 %v550, %v546
  %v903 = vpack.c.b16 %v555, %v551
  %v904 = vpack.c.b16 %v556, %v552
  %v905 = vpack.c.b16 %v557, %v553
  %v906 = vpack.c.b16 %v558, %v554
  %v907 = vpack.c.b16 %v563, %v559
  %v908 = vpack.c.b16 %v564, %v560
  %v909 = vpack.c.b16 %v565, %v561
  %v910 = vpack.c.b16 %v566, %v562
  %v911 = vpack.c.b16 %v571, %v567
  %v912 = vpack.c.b16 %v572, %v568
  %v913 = vpack.c.b16 %v573, %v569
  %v914 = vpack.c.b16 %v574, %v570
  %v915 = vpack.c.b16 %v579, %v575
  %v916 = vpack.c.b16 %v580, %v576
  %v917 = vpack.c.b16 %v581, %v577
  %v918 = vpack.c.b16 %v582, %v578
  %v919 = vpack.c.b16 %v587, %v583
  %v920 = vpack.c.b16 %v588, %v584
  %v921 = vpack.c.b16 %v589, %v585
  %v922 = vpack.c.b16 %v590, %v586
  %v923 = vpack.c.b16 %v595, %v591
  %v924 = vpack.c.b16 %v596, %v592
  %v925 = vpack.c.b16 %v597, %v593
  %v926 = vpack.c.b16 %v598, %v594
  %v927 = vpack.c.b16 %v603, %v599
  %v928 = vpack.c.b16 %v604, %v600
  %v929 = vpack.c.b16 %v605, %v601
  %v930 = vpack.c.b16 %v606, %v602
  %v931 = vpack.c.b16 %v611, %v607
  %v932 = vpack.c.b16 %v612, %v608
  %v933 = vpack.c.b16 %v613, %v609
  %v934 = vpack.c.b16 %v614, %v610
  %v935 = vpack.c.b16 %v619, %v615
  %v936 = vpack.c.b16 %v620, %v616
  %v937 = vpack.c.b16 %v621, %v617
  %v938 = vpack.c.b16 %v622, %v618
  %v939 = vpack.c.b16 %v627, %v623
  %v940 = vpack.c.b16 %v628, %v624
  %v941 = vpack.c.b16 %v629, %v625
  %v942 = vpack.c.b16 %v630, %v626
  %v943 = vpack.c.b16 %v635, %v631
  %v944 = vpack.c.b16 %v636, %v632
  %v945 = vpack.c.b16 %v637, %v633
  %v946 = vpack.c.b16 %v638, %v634
  %v947 = vpack.c.b16 %v643, %v639
  %v948 = vpack.c.b16 %v644, %v640
  %v949 = vpack.c.b16 %v645, %v641
  %v950 = vpack.c.b16 %v646, %v642
  %v951 = vpack.c.b16 %v651, %v647
  %v952 = vpack.c.b16 %v652, %v648
  %v953 = vpack.c.b16 %v653, %v649
  %v954 = vpack.c.b16 %v654, %v650
  %v955 = vpack.c.b16 %v659, %v655
  %v956 = vpack.c.b16 %v660, %v656
  %v957 = vpack.c.b16 %v661, %v657
  %v958 = vpack.c.b16 %v662, %v658
  %v959 = vpack.c.b16 %v667, %v663
  %v960 = vpack.c.b16 %v668, %v664
  %v961 = vpack.c.b16 %v669, %v665
  %v962 = vpack.c.b16 %v670, %v666
  %v963 = vpack.c.b16 %v675, %v671
  %v964 = vpack.c.b16 %v676, %v672
  %v965 = vpack.c.b16 %v677, %v673
  %v966 = vpack.c.b16 %v678, %v674
  %v967 = vpack.c.b16 %v683, %v679
  %v968 = vpack.c.b16 %v684, %v680
  %v969 = vpack.c.b16 %v685, %v681
  %v970 = vpack.c.b16 %v686, %v682
  %v971 = vpack.c.b16 %v691, %v687
  %v972 = vpack.c.b16 %v692, %v688
  %v973 = vpack.c.b16 %v693, %v689
  %v974 = vpack.c.b16 %v694, %v690
  %v975 = vpack.c.b16 %v699, %v695
  %v976 = vpack.c.b16 %v700, %v696
  %v977 = vpack.c.b16 %v701, %v697
  %v978 = vpack.c.b16 %v702, %v698
  %v979 = vpack.c.b16 %v707, %v703
  %v980 = vpack.c.b16 %v708, %v704
  %v981 = vpack.c.b16 %v709, %v705
  %v982 = vpack.c.b16 %v710, %v706
  %v983 = vpack.c.b16 %v715, %v711
  %v984 = vpack.c.b16 %v716, %v712
  %v985 = vpack.c.b16 %v717, %v713
  %v986 = vpack.c.b16 %v718, %v714
  %v987 = vpack.c.b16 %v723, %v719
  %v988 = vpack.c.b16 %v724, %v720
  %v989 = vpack.c.b16 %v725, %v721
  %v990 = vpack.c.b16 %v726, %v722
  %v991 = vpack.c.b16 %v731, %v727
  %v992 = vpack.c.b16 %v732, %v728
  %v993 = vpack.c.b16 %v733, %v729
  %v994 = vpack.c.b16 %v734, %v730
  %v995 = vpack.c.b16 %v739, %v735
  %v996 = vpack.c.b16 %v740, %v736
  %v997 = vpack.c.b16 %v741, %v737
  %v998 = vpack.c.b16 %v742, %v738
  %v999 = vpack.c.b16 %v747, %v743
  %v1000 = vpack.c.b16 %v748, %v744
  %v1001 = vpack.c.b16 %v749, %v745
  %v1002 = vpack.c.b16 %v750, %v746
  %v1003 = vpack.c.b16 %v755, %v751
  %v1004 = vpack.c.b16 %v756, %v752
  %v1005 = vpack.c.b16 %v757, %v753
  %v1006 = vpack.c.b16 %v758, %v754
  %v1007 = vpack.c.b16 %v763, %v759
  %v1008 = vpack.c.b16 %v764, %v760
  %v1009 = vpack.c.b16 %v765, %v761
  %v1010 = vpack.c.b16 %v766, %v762
  %v1011 = vpack.c.b16 %v771, %v767
  %v1012 = vpack.c.b16 %v772, %v768
  %v1013 = vpack.c.b16 %v773, %v769
  %v1014 = vpack.c.b16 %v774, %v770
  %v1015 = vpack.c.b16 %v779, %v775
  %v1016 = vpack.c.b16 %v780, %v776
  %v1017 = vpack.c.b16 %v781, %v777
  %v1018 = vpack.c.b16 %v782, %v778
  %v1019 = vpack.c.b16 %v787, %v783
  %v1020 = vpack.c.b16 %v788, %v784
  %v1021 = vpack.c.b16 %v789, %v785
  %v1022 = vpack.c.b16 %v790, %v786
  %v1023 = vpack.c.b16 %v795, %v791
  %v1024 = vpack.c.b16 %v796, %v792
  %v1025 = vpack.c.b16 %v797, %v793
  %v1026 = vpack.c.b16 %v798, %v794
  %v1027 = vpack.c.b16 %v803, %v799
  %v1028 = vpack.c.b16 %v804, %v800
  %v1029 = vpack.c.b16 %v805, %v801
  %v1030 = vpack.c.b16 %v806, %v802
  %v1031 = vpack.c.b16 %v811, %v807
  %v1032 = vpack.c.b16 %v812, %v808
  %v1033 = vpack.c.b16 %v813, %v809
  %v1034 = vpack.c.b16 %v814, %v810
  %v1035 = vpack.c.b16 %v819, %v815
  %v1036 = vpack.c.b16 %v820, %v816
  %v1037 = vpack.c.b16 %v821, %v817
  %v1038 = vpack.c.b16 %v822, %v818
  %v1039 = vpack.c.b16 %v827, %v823
  %v1040 = vpack.c.b16 %v828, %v824
  %v1041 = vpack.c.b16 %v829, %v825
  %v1042 = vpack.c.b16 %v830, %v826
  %v1043 = vpack.c.b16 %v835, %v831
  %v1044 = vpack.c.b16 %v836, %v832
  %v1045 = vpack.c.b16 %v837, %v833
  %v1046 = vpack.c.b16 %v838, %v834
  %v1047 = vpack.c.b16 %v843, %v839
  %v1048 = vpack.c.b16 %v844, %v840
  %v1049 = vpack.c.b16 %v845, %v841
  %v1050 = vpack.c.b16 %v846, %v842
  %v1051 = vpack.c.b16 %v851, %v847
  %v1052 = vpack.c.b16 %v852, %v848
  %v1053 = vpack.c.b16 %v853, %v849
  %v1054 = vpack.c.b16 %v854, %v850
  %v1055 = vpack.c.b16 %v859, %v855
  %v1056 = vpack.c.b16 %v860, %v856
  %v1057 = vpack.c.b16 %v861, %v857
  %v1058 = vpack.c.b16 %v862, %v858
  %vm1255 = vcmask 130048
  %v1257 = vsel %vm1255, %v56, 0
  %1259 = vmatprep.subr.bf16.mxu0 %v892
  %1260 = vmatpush1.bf16.msra.mxu0 %v891
  %1261 = vmatprep.subr.bf16.mxu0 %v888
  %1262 = vmatpush1.bf16.msra.mxu0 %v887
  %1263 = vmatprep.subr.bf16.mxu0 %v884
  %1264 = vmatpush1.bf16.msra.mxu0 %v883
  %1265 = vmatprep.subr.bf16.mxu0 %v880
  %1266 = vmatpush1.bf16.msra.mxu0 %v879
  %1267 = vmatprep.subr.bf16.mxu0 %v876
  %1268 = vmatpush1.bf16.msra.mxu0 %v875
  %1269 = vmatprep.subr.bf16.mxu0 %v872
  %1270 = vmatpush1.bf16.msra.mxu0 %v871
  %1271 = vmatprep.subr.bf16.mxu0 %v868
  %1272 = vmatpush1.bf16.msra.mxu0 %v867
  %1273 = vmatprep.subr.bf16.mxu0 %v864
  %1274 = vmatpush1.bf16.msra.mxu0 %v863
  %1275 = vmatprep.subr.bf16.mxu0 %v924
  %1276 = vmatpush2.bf16.msra.mxu0 %v923
  %1277 = vmatprep.subr.bf16.mxu0 %v920
  %1278 = vmatpush2.bf16.msra.mxu0 %v919
  %1279 = vmatprep.subr.bf16.mxu0 %v916
  %1280 = vmatpush2.bf16.msra.mxu0 %v915
  %1281 = vmatprep.subr.bf16.mxu0 %v912
  %1282 = vmatpush2.bf16.msra.mxu0 %v911
  %1283 = vmatprep.subr.bf16.mxu0 %v908
  %1284 = vmatpush2.bf16.msra.mxu0 %v907
  %1285 = vmatprep.subr.bf16.mxu0 %v904
  %1286 = vmatpush2.bf16.msra.mxu0 %v903
  %1287 = vmatprep.subr.bf16.mxu0 %v900
  %1288 = vmatpush2.bf16.msra.mxu0 %v899
  %1289 = vmatprep.subr.bf16.mxu0 %v896
  %1290 = vmatpush2.bf16.msra.mxu0 %v895
  %1291 = vmatprep.mubr.bf16.mxu0 %v51
  %1292 = vmatmul.mubr.bf16.gmra.mxu0 %v50
  %v1293 = vpop.f32.mrf.mxu0
  %v1294 = vadd.f32 %v258, %v1293
  %v1295 = vpop.f32.mrf.mxu0
  %v1296 = vadd.f32 %v262, %v1295
  %v1297 = vpop.f32.mrf.mxu0
  %v1298 = vadd.f32 %v258, %v1297
  %v1299 = vpop.f32.mrf.mxu0
  %v1300 = vadd.f32 %v262, %v1299
  %1301 = vdwg.mxu0
  %1302 = vmatprep.subr.bf16.mxu0 %v956
  %1303 = vmatpush1.bf16.msra.mxu0 %v955
  %1304 = vmatprep.subr.bf16.mxu0 %v952
  %1305 = vmatpush1.bf16.msra.mxu0 %v951
  %1306 = vmatprep.subr.bf16.mxu0 %v948
  %1307 = vmatpush1.bf16.msra.mxu0 %v947
  %1308 = vmatprep.subr.bf16.mxu0 %v944
  %1309 = vmatpush1.bf16.msra.mxu0 %v943
  %1310 = vmatprep.subr.bf16.mxu0 %v940
  %1311 = vmatpush1.bf16.msra.mxu0 %v939
  %1312 = vmatprep.subr.bf16.mxu0 %v936
  %1313 = vmatpush1.bf16.msra.mxu0 %v935
  %1314 = vmatprep.subr.bf16.mxu0 %v932
  %1315 = vmatpush1.bf16.msra.mxu0 %v931
  %1316 = vmatprep.subr.bf16.mxu0 %v928
  %1317 = vmatpush1.bf16.msra.mxu0 %v927
  %1318 = vmatprep.subr.bf16.mxu0 %v988
  %1319 = vmatpush2.bf16.msra.mxu0 %v987
  %1320 = vmatprep.subr.bf16.mxu0 %v984
  %1321 = vmatpush2.bf16.msra.mxu0 %v983
  %1322 = vmatprep.subr.bf16.mxu0 %v980
  %1323 = vmatpush2.bf16.msra.mxu0 %v979
  %1324 = vmatprep.subr.bf16.mxu0 %v976
  %1325 = vmatpush2.bf16.msra.mxu0 %v975
  %1326 = vmatprep.subr.bf16.mxu0 %v972
  %1327 = vmatpush2.bf16.msra.mxu0 %v971
  %1328 = vmatprep.subr.bf16.mxu0 %v968
  %1329 = vmatpush2.bf16.msra.mxu0 %v967
  %1330 = vmatprep.subr.bf16.mxu0 %v964
  %1331 = vmatpush2.bf16.msra.mxu0 %v963
  %1332 = vmatprep.subr.bf16.mxu0 %v960
  %1333 = vmatpush2.bf16.msra.mxu0 %v959
  %1334 = vmatprep.mubr.bf16.mxu0 %v53
  %1335 = vmatmul.mubr.bf16.gmra.mxu0 %v52
  %v1336 = vpop.f32.mrf.mxu0
  %v1337 = vadd.f32 %v1294, %v1336
  %v1338 = vpop.f32.mrf.mxu0
  %v1339 = vadd.f32 %v1296, %v1338
  %v1340 = vpop.f32.mrf.mxu0
  %v1341 = vadd.f32 %v1298, %v1340
  %v1342 = vpop.f32.mrf.mxu0
  %v1343 = vadd.f32 %v1300, %v1342
  %1344 = vdwg.mxu0
  %1345 = vmatprep.subr.bf16.mxu0 %v1020
  %1346 = vmatpush1.bf16.msra.mxu0 %v1019
  %1347 = vmatprep.subr.bf16.mxu0 %v1016
  %1348 = vmatpush1.bf16.msra.mxu0 %v1015
  %1349 = vmatprep.subr.bf16.mxu0 %v1012
  %1350 = vmatpush1.bf16.msra.mxu0 %v1011
  %1351 = vmatprep.subr.bf16.mxu0 %v1008
  %1352 = vmatpush1.bf16.msra.mxu0 %v1007
  %1353 = vmatprep.subr.bf16.mxu0 %v1004
  %1354 = vmatpush1.bf16.msra.mxu0 %v1003
  %1355 = vmatprep.subr.bf16.mxu0 %v1000
  %1356 = vmatpush1.bf16.msra.mxu0 %v999
  %1357 = vmatprep.subr.bf16.mxu0 %v996
  %1358 = vmatpush1.bf16.msra.mxu0 %v995
  %1359 = vmatprep.subr.bf16.mxu0 %v992
  %1360 = vmatpush1.bf16.msra.mxu0 %v991
  %1361 = vmatprep.subr.bf16.mxu0 %v1052
  %1362 = vmatpush2.bf16.msra.mxu0 %v1051
  %1363 = vmatprep.subr.bf16.mxu0 %v1048
  %1364 = vmatpush2.bf16.msra.mxu0 %v1047
  %1365 = vmatprep.subr.bf16.mxu0 %v1044
  %1366 = vmatpush2.bf16.msra.mxu0 %v1043
  %1367 = vmatprep.subr.bf16.mxu0 %v1040
  %1368 = vmatpush2.bf16.msra.mxu0 %v1039
  %1369 = vmatprep.subr.bf16.mxu0 %v1036
  %1370 = vmatpush2.bf16.msra.mxu0 %v1035
  %1371 = vmatprep.subr.bf16.mxu0 %v1032
  %1372 = vmatpush2.bf16.msra.mxu0 %v1031
  %1373 = vmatprep.subr.bf16.mxu0 %v1028
  %1374 = vmatpush2.bf16.msra.mxu0 %v1027
  %1375 = vmatprep.subr.bf16.mxu0 %v1024
  %1376 = vmatpush2.bf16.msra.mxu0 %v1023
  %1377 = vmatprep.mubr.bf16.mxu0 %v55
  %1378 = vmatmul.mubr.bf16.gmra.mxu0 %v54
  %v1379 = vpop.f32.mrf.mxu0
  %v1380 = vadd.f32 %v1337, %v1379
  %v1381 = vpop.f32.mrf.mxu0
  %v1382 = vadd.f32 %v1339, %v1381
  %v1383 = vpop.f32.mrf.mxu0
  %v1384 = vadd.f32 %v1341, %v1383
  %v1385 = vpop.f32.mrf.mxu0
  %v1386 = vadd.f32 %v1343, %v1385
  %1387 = vdwg.mxu0
  %1388 = vmatprep.subr.bf16.mxu0 0
  %1389 = vmatpush1.bf16.msra.mxu0 0
  %1390 = vmatprep.subr.bf16.mxu0 0
  %1391 = vmatpush1.bf16.msra.mxu0 0
  %1392 = vmatprep.subr.bf16.mxu0 0
  %1393 = vmatpush1.bf16.msra.mxu0 0
  %1394 = vmatprep.subr.bf16.mxu0 0
  %1395 = vmatpush1.bf16.msra.mxu0 0
  %1396 = vmatprep.subr.bf16.mxu0 0
  %1397 = vmatpush1.bf16.msra.mxu0 0
  %1398 = vmatprep.subr.bf16.mxu0 0
  %1399 = vmatpush1.bf16.msra.mxu0 0
  %1400 = vmatprep.subr.bf16.mxu0 0
  %1401 = vmatpush1.bf16.msra.mxu0 0
  %1402 = vmatprep.subr.bf16.mxu0 %v1056
  %1403 = vmatpush1.bf16.msra.mxu0 %v1055
  %1404 = vmatprep.subr.bf16.mxu0 0
  %1405 = vmatpush2.bf16.msra.mxu0 0
  %1406 = vmatprep.subr.bf16.mxu0 0
  %1407 = vmatpush2.bf16.msra.mxu0 0
  %1408 = vmatprep.subr.bf16.mxu0 0
  %1409 = vmatpush2.bf16.msra.mxu0 0
  %1410 = vmatprep.subr.bf16.mxu0 0
  %1411 = vmatpush2.bf16.msra.mxu0 0
  %1412 = vmatprep.subr.bf16.mxu0 0
  %1413 = vmatpush2.bf16.msra.mxu0 0
  %1414 = vmatprep.subr.bf16.mxu0 0
  %1415 = vmatpush2.bf16.msra.mxu0 0
  %1416 = vmatprep.subr.bf16.mxu0 0
  %1417 = vmatpush2.bf16.msra.mxu0 0
  %1418 = vmatprep.subr.bf16.mxu0 0
  %1419 = vmatpush2.bf16.msra.mxu0 0
  %1420 = vmatprep.mubr.bf16.mxu0 0
  %1421 = vmatmul.mubr.bf16.gmra.mxu0 %v1257
  %v1422 = vpop.f32.mrf.mxu0
  %v1423 = vadd.f32 %v1380, %v1422
  %v1424 = vpop.f32.mrf.mxu0
  %v1425 = vadd.f32 %v1382, %v1424
  %v1426 = vpop.f32.mrf.mxu0
  %v1427 = vadd.f32 %v1384, %v1426
  %v1428 = vpop.f32.mrf.mxu0
  %v1429 = vadd.f32 %v1386, %v1428
  %1430 = vdwg.mxu0
  %1431 = vmatprep.subr.bf16.mxu0 %v894
  %1432 = vmatpush1.bf16.msra.mxu0 %v893
  %1433 = vmatprep.subr.bf16.mxu0 %v890
  %1434 = vmatpush1.bf16.msra.mxu0 %v889
  %1435 = vmatprep.subr.bf16.mxu0 %v886
  %1436 = vmatpush1.bf16.msra.mxu0 %v885
  %1437 = vmatprep.subr.bf16.mxu0 %v882
  %1438 = vmatpush1.bf16.msra.mxu0 %v881
  %1439 = vmatprep.subr.bf16.mxu0 %v878
  %1440 = vmatpush1.bf16.msra.mxu0 %v877
  %1441 = vmatprep.subr.bf16.mxu0 %v874
  %1442 = vmatpush1.bf16.msra.mxu0 %v873
  %1443 = vmatprep.subr.bf16.mxu0 %v870
  %1444 = vmatpush1.bf16.msra.mxu0 %v869
  %1445 = vmatprep.subr.bf16.mxu0 %v866
  %1446 = vmatpush1.bf16.msra.mxu0 %v865
  %1447 = vmatprep.subr.bf16.mxu0 %v926
  %1448 = vmatpush2.bf16.msra.mxu0 %v925
  %1449 = vmatprep.subr.bf16.mxu0 %v922
  %1450 = vmatpush2.bf16.msra.mxu0 %v921
  %1451 = vmatprep.subr.bf16.mxu0 %v918
  %1452 = vmatpush2.bf16.msra.mxu0 %v917
  %1453 = vmatprep.subr.bf16.mxu0 %v914
  %1454 = vmatpush2.bf16.msra.mxu0 %v913
  %1455 = vmatprep.subr.bf16.mxu0 %v910
  %1456 = vmatpush2.bf16.msra.mxu0 %v909
  %1457 = vmatprep.subr.bf16.mxu0 %v906
  %1458 = vmatpush2.bf16.msra.mxu0 %v905
  %1459 = vmatprep.subr.bf16.mxu0 %v902
  %1460 = vmatpush2.bf16.msra.mxu0 %v901
  %1461 = vmatprep.subr.bf16.mxu0 %v898
  %1462 = vmatpush2.bf16.msra.mxu0 %v897
  %1463 = vmatprep.mubr.bf16.mxu0 %v51
  %1464 = vmatmul.mubr.bf16.gmra.mxu0 %v50
  %v1465 = vpop.f32.mrf.mxu0
  %v1466 = vadd.f32 %v266, %v1465
  %v1467 = vpop.f32.mrf.mxu0
  %v1468 = vadd.f32 %v270, %v1467
  %v1469 = vpop.f32.mrf.mxu0
  %v1470 = vadd.f32 %v266, %v1469
  %v1471 = vpop.f32.mrf.mxu0
  %v1472 = vadd.f32 %v270, %v1471
  %1473 = vdwg.mxu0
  %1474 = vmatprep.subr.bf16.mxu0 %v958
  %1475 = vmatpush1.bf16.msra.mxu0 %v957
  %1476 = vmatprep.subr.bf16.mxu0 %v954
  %1477 = vmatpush1.bf16.msra.mxu0 %v953
  %1478 = vmatprep.subr.bf16.mxu0 %v950
  %1479 = vmatpush1.bf16.msra.mxu0 %v949
  %1480 = vmatprep.subr.bf16.mxu0 %v946
  %1481 = vmatpush1.bf16.msra.mxu0 %v945
  %1482 = vmatprep.subr.bf16.mxu0 %v942
  %1483 = vmatpush1.bf16.msra.mxu0 %v941
  %1484 = vmatprep.subr.bf16.mxu0 %v938
  %1485 = vmatpush1.bf16.msra.mxu0 %v937
  %1486 = vmatprep.subr.bf16.mxu0 %v934
  %1487 = vmatpush1.bf16.msra.mxu0 %v933
  %1488 = vmatprep.subr.bf16.mxu0 %v930
  %1489 = vmatpush1.bf16.msra.mxu0 %v929
  %1490 = vmatprep.subr.bf16.mxu0 %v990
  %1491 = vmatpush2.bf16.msra.mxu0 %v989
  %1492 = vmatprep.subr.bf16.mxu0 %v986
  %1493 = vmatpush2.bf16.msra.mxu0 %v985
  %1494 = vmatprep.subr.bf16.mxu0 %v982
  %1495 = vmatpush2.bf16.msra.mxu0 %v981
  %1496 = vmatprep.subr.bf16.mxu0 %v978
  %1497 = vmatpush2.bf16.msra.mxu0 %v977
  %1498 = vmatprep.subr.bf16.mxu0 %v974
  %1499 = vmatpush2.bf16.msra.mxu0 %v973
  %1500 = vmatprep.subr.bf16.mxu0 %v970
  %1501 = vmatpush2.bf16.msra.mxu0 %v969
  %1502 = vmatprep.subr.bf16.mxu0 %v966
  %1503 = vmatpush2.bf16.msra.mxu0 %v965
  %1504 = vmatprep.subr.bf16.mxu0 %v962
  %1505 = vmatpush2.bf16.msra.mxu0 %v961
  %1506 = vmatprep.mubr.bf16.mxu0 %v53
  %1507 = vmatmul.mubr.bf16.gmra.mxu0 %v52
  %v1508 = vpop.f32.mrf.mxu0
  %v1509 = vadd.f32 %v1466, %v1508
  %v1510 = vpop.f32.mrf.mxu0
  %v1511 = vadd.f32 %v1468, %v1510
  %v1512 = vpop.f32.mrf.mxu0
  %v1513 = vadd.f32 %v1470, %v1512
  %v1514 = vpop.f32.mrf.mxu0
  %v1515 = vadd.f32 %v1472, %v1514
  %1516 = vdwg.mxu0
  %1517 = vmatprep.subr.bf16.mxu0 %v1022
  %1518 = vmatpush1.bf16.msra.mxu0 %v1021
  %1519 = vmatprep.subr.bf16.mxu0 %v1018
  %1520 = vmatpush1.bf16.msra.mxu0 %v1017
  %1521 = vmatprep.subr.bf16.mxu0 %v1014
  %1522 = vmatpush1.bf16.msra.mxu0 %v1013
  %1523 = vmatprep.subr.bf16.mxu0 %v1010
  %1524 = vmatpush1.bf16.msra.mxu0 %v1009
  %1525 = vmatprep.subr.bf16.mxu0 %v1006
  %1526 = vmatpush1.bf16.msra.mxu0 %v1005
  %1527 = vmatprep.subr.bf16.mxu0 %v1002
  %1528 = vmatpush1.bf16.msra.mxu0 %v1001
  %1529 = vmatprep.subr.bf16.mxu0 %v998
  %1530 = vmatpush1.bf16.msra.mxu0 %v997
  %1531 = vmatprep.subr.bf16.mxu0 %v994
  %1532 = vmatpush1.bf16.msra.mxu0 %v993
  %1533 = vmatprep.subr.bf16.mxu0 %v1054
  %1534 = vmatpush2.bf16.msra.mxu0 %v1053
  %1535 = vmatprep.subr.bf16.mxu0 %v1050
  %1536 = vmatpush2.bf16.msra.mxu0 %v1049
  %1537 = vmatprep.subr.bf16.mxu0 %v1046
  %1538 = vmatpush2.bf16.msra.mxu0 %v1045
  %1539 = vmatprep.subr.bf16.mxu0 %v1042
  %1540 = vmatpush2.bf16.msra.mxu0 %v1041
  %1541 = vmatprep.subr.bf16.mxu0 %v1038
  %1542 = vmatpush2.bf16.msra.mxu0 %v1037
  %1543 = vmatprep.subr.bf16.mxu0 %v1034
  %1544 = vmatpush2.bf16.msra.mxu0 %v1033
  %1545 = vmatprep.subr.bf16.mxu0 %v1030
  %1546 = vmatpush2.bf16.msra.mxu0 %v1029
  %1547 = vmatprep.subr.bf16.mxu0 %v1026
  %1548 = vmatpush2.bf16.msra.mxu0 %v1025
  %1549 = vmatprep.mubr.bf16.mxu0 %v55
  %1550 = vmatmul.mubr.bf16.gmra.mxu0 %v54
  %v1551 = vpop.f32.mrf.mxu0
  %v1552 = vadd.f32 %v1509, %v1551
  %v1553 = vpop.f32.mrf.mxu0
  %v1554 = vadd.f32 %v1511, %v1553
  %v1555 = vpop.f32.mrf.mxu0
  %v1556 = vadd.f32 %v1513, %v1555
  %v1557 = vpop.f32.mrf.mxu0
  %v1558 = vadd.f32 %v1515, %v1557
  %1559 = vdwg.mxu0
  %1560 = vmatprep.subr.bf16.mxu0 0
  %1561 = vmatpush1.bf16.msra.mxu0 0
  %1562 = vmatprep.subr.bf16.mxu0 0
  %1563 = vmatpush1.bf16.msra.mxu0 0
  %1564 = vmatprep.subr.bf16.mxu0 0
  %1565 = vmatpush1.bf16.msra.mxu0 0
  %1566 = vmatprep.subr.bf16.mxu0 0
  %1567 = vmatpush1.bf16.msra.mxu0 0
  %1568 = vmatprep.subr.bf16.mxu0 0
  %1569 = vmatpush1.bf16.msra.mxu0 0
  %1570 = vmatprep.subr.bf16.mxu0 0
  %1571 = vmatpush1.bf16.msra.mxu0 0
  %1572 = vmatprep.subr.bf16.mxu0 0
  %1573 = vmatpush1.bf16.msra.mxu0 0
  %1574 = vmatprep.subr.bf16.mxu0 %v1058
  %1575 = vmatpush1.bf16.msra.mxu0 %v1057
  %1576 = vmatprep.subr.bf16.mxu0 0
  %1577 = vmatpush2.bf16.msra.mxu0 0
  %1578 = vmatprep.subr.bf16.mxu0 0
  %1579 = vmatpush2.bf16.msra.mxu0 0
  %1580 = vmatprep.subr.bf16.mxu0 0
  %1581 = vmatpush2.bf16.msra.mxu0 0
  %1582 = vmatprep.subr.bf16.mxu0 0
  %1583 = vmatpush2.bf16.msra.mxu0 0
  %1584 = vmatprep.subr.bf16.mxu0 0
  %1585 = vmatpush2.bf16.msra.mxu0 0
  %1586 = vmatprep.subr.bf16.mxu0 0
  %1587 = vmatpush2.bf16.msra.mxu0 0
  %1588 = vmatprep.subr.bf16.mxu0 0
  %1589 = vmatpush2.bf16.msra.mxu0 0
  %1590 = vmatprep.subr.bf16.mxu0 0
  %1591 = vmatpush2.bf16.msra.mxu0 0
  %1592 = vmatprep.mubr.bf16.mxu0 0
  %1593 = vmatmul.mubr.bf16.gmra.mxu0 %v1257
  %v1594 = vpop.f32.mrf.mxu0
  %v1595 = vadd.f32 %v1552, %v1594
  %v1596 = vpop.f32.mrf.mxu0
  %v1597 = vadd.f32 %v1554, %v1596
  %v1598 = vpop.f32.mrf.mxu0
  %v1599 = vadd.f32 %v1556, %v1598
  %v1600 = vpop.f32.mrf.mxu0
  %v1601 = vadd.f32 %v1558, %v1600
  %1602 = vdwg.mxu0
  %v1603 = vmax.f32 %v1423, 0.0
  %v1604 = vmax.f32 %v1425, 0.0
  %v1605 = vmax.f32 %v1595, 0.0
  %v1606 = vmax.f32 %v1597, 0.0
  %v1607 = vmax.f32 %v1427, 0.0
  %v1608 = vmax.f32 %v1429, 0.0
  %v1609 = vmax.f32 %v1599, 0.0
  %v1610 = vmax.f32 %v1601, 0.0
  %v1611 = vpack.c.bf16 %v1607, %v1603
  %v1612 = vpack.c.bf16 %v1608, %v1604
  %v1613 = vpack.c.bf16 %v1609, %v1605
  %v1614 = vpack.c.bf16 %v1610, %v1606
  %v1615 = vld [vmem:[%s4] sm:$0xff]
  %v1616 = vld [vmem:[%s4 + $0x8] sm:$0xff]
  %v1617 = vld [vmem:[%s4 + $0x10] sm:$0xff]
  %v1618 = vld [vmem:[%s4 + $0x18] sm:$0xff]
  %v1619 = vld [vmem:[%s4 + $0x20] sm:$0xff]
  %v1620 = vld [vmem:[%s4 + $0x28] sm:$0xff]
  %v1621 = vld [vmem:[%s4 + $0x30] sm:$0xff]
  %v1622 = vld [vmem:[%s4 + $0x38] sm:$0xff]
  %v1623 = vld [vmem:[%s4 + $0x40] sm:$0xff]
  %v1624 = vld [vmem:[%s4 + $0x48] sm:$0xff]
  %v1625 = vld [vmem:[%s4 + $0x50] sm:$0xff]
  %v1626 = vld [vmem:[%s4 + $0x58] sm:$0xff]
  %v1627 = vld [vmem:[%s4 + $0x60] sm:$0xff]
  %v1628 = vld [vmem:[%s4 + $0x68] sm:$0xff]
  %v1629 = vld [vmem:[%s4 + $0x70] sm:$0xff]
  %v1630 = vld [vmem:[%s4 + $0x78] sm:$0xff]
  %v1631 = vld [vmem:[%s4 + $0x80] sm:$0xff]
  %v1632 = vld [vmem:[%s4 + $0x88] sm:$0xff]
  %v1633 = vld [vmem:[%s4 + $0x90] sm:$0xff]
  %v1634 = vld [vmem:[%s4 + $0x98] sm:$0xff]
  %v1635 = vld [vmem:[%s4 + $0xa0] sm:$0xff]
  %v1636 = vld [vmem:[%s4 + $0xa8] sm:$0xff]
  %v1637 = vld [vmem:[%s4 + $0xb0] sm:$0xff]
  %v1638 = vld [vmem:[%s4 + $0xb8] sm:$0xff]
  %v1639 = vld [vmem:[%s4 + $0xc0] sm:$0xff]
  %v1640 = vld [vmem:[%s4 + $0xc8] sm:$0xff]
  %v1641 = vld [vmem:[%s4 + $0xd0] sm:$0xff]
  %v1642 = vld [vmem:[%s4 + $0xd8] sm:$0xff]
  %v1643 = vld [vmem:[%s4 + $0xe0] sm:$0xff]
  %v1644 = vld [vmem:[%s4 + $0xe8] sm:$0xff]
  %v1645 = vld [vmem:[%s4 + $0xf0] sm:$0xff]
  %v1646 = vld [vmem:[%s4 + $0xf8] sm:$0xff]
  %v1647 = vld [vmem:[%s4 + $0x100] sm:$0xff]
  %v1648 = vld [vmem:[%s4 + $0x108] sm:$0xff]
  %v1649 = vld [vmem:[%s4 + $0x110] sm:$0xff]
  %v1650 = vld [vmem:[%s4 + $0x118] sm:$0xff]
  %v1651 = vld [vmem:[%s4 + $0x120] sm:$0xff]
  %v1652 = vld [vmem:[%s4 + $0x128] sm:$0xff]
  %v1653 = vld [vmem:[%s4 + $0x130] sm:$0xff]
  %v1654 = vld [vmem:[%s4 + $0x138] sm:$0xff]
  %v1655 = vld [vmem:[%s4 + $0x140] sm:$0xff]
  %v1656 = vld [vmem:[%s4 + $0x148] sm:$0xff]
  %v1657 = vld [vmem:[%s4 + $0x150] sm:$0xff]
  %v1658 = vld [vmem:[%s4 + $0x158] sm:$0xff]
  %v1659 = vld [vmem:[%s4 + $0x160] sm:$0xff]
  %v1660 = vld [vmem:[%s4 + $0x168] sm:$0xff]
  %v1661 = vld [vmem:[%s4 + $0x170] sm:$0xff]
  %v1662 = vld [vmem:[%s4 + $0x178] sm:$0xff]
  %v1663 = vld [vmem:[%s4 + $0x180] sm:$0xff]
  %v1664 = vld [vmem:[%s4 + $0x188] sm:$0xff]
  %v1665 = vld [vmem:[%s4 + $0x190] sm:$0xff]
  %v1666 = vld [vmem:[%s4 + $0x198] sm:$0xff]
  %v1667 = vld [vmem:[%s4 + $0x1a0] sm:$0xff]
  %v1668 = vld [vmem:[%s4 + $0x1a8] sm:$0xff]
  %v1669 = vld [vmem:[%s4 + $0x1b0] sm:$0xff]
  %v1670 = vld [vmem:[%s4 + $0x1b8] sm:$0xff]
  %v1671 = vld [vmem:[%s4 + $0x1c0] sm:$0xff]
  %v1672 = vld [vmem:[%s4 + $0x1c8] sm:$0xff]
  %v1673 = vld [vmem:[%s4 + $0x1d0] sm:$0xff]
  %v1674 = vld [vmem:[%s4 + $0x1d8] sm:$0xff]
  %v1675 = vld [vmem:[%s4 + $0x1e0] sm:$0xff]
  %v1676 = vld [vmem:[%s4 + $0x1e8] sm:$0xff]
  %v1677 = vld [vmem:[%s4 + $0x1f0] sm:$0xff]
  %v1678 = vld [vmem:[%s4 + $0x1f8] sm:$0xff]
  %v1679 = vld [vmem:[%s5] sm:$0x3]
  %v1681 = vlaneseq
  %v1682 = vshrl.u32 %v1681, 7
  %v1683 = vsub.s32 0, %v1682
  %v1684 = vrot.slane %v1679, %v1683
  %v1685 = vlaneseq
  %v1686 = vshrl.u32 %v1685, 7
  %v1687 = vsub.s32 1, %v1686
  %v1688 = vrot.slane %v1679, %v1687
  %v1755 = vunpack.c.l.b16 %v1615
  %v1756 = vunpack.c.h.b16 %v1615
  %v1757 = vunpack.c.l.b16 %v1616
  %v1758 = vunpack.c.h.b16 %v1616
  %v1759 = vunpack.c.l.b16 %v1617
  %v1760 = vunpack.c.h.b16 %v1617
  %v1761 = vunpack.c.l.b16 %v1618
  %v1762 = vunpack.c.h.b16 %v1618
  %v1763 = vunpack.c.l.b16 %v1619
  %v1764 = vunpack.c.h.b16 %v1619
  %v1765 = vunpack.c.l.b16 %v1620
  %v1766 = vunpack.c.h.b16 %v1620
  %v1767 = vunpack.c.l.b16 %v1621
  %v1768 = vunpack.c.h.b16 %v1621
  %v1769 = vunpack.c.l.b16 %v1622
  %v1770 = vunpack.c.h.b16 %v1622
  %v1771 = vunpack.c.l.b16 %v1623
  %v1772 = vunpack.c.h.b16 %v1623
  %v1773 = vunpack.c.l.b16 %v1624
  %v1774 = vunpack.c.h.b16 %v1624
  %v1775 = vunpack.c.l.b16 %v1625
  %v1776 = vunpack.c.h.b16 %v1625
  %v1777 = vunpack.c.l.b16 %v1626
  %v1778 = vunpack.c.h.b16 %v1626
  %v1779 = vunpack.c.l.b16 %v1627
  %v1780 = vunpack.c.h.b16 %v1627
  %v1781 = vunpack.c.l.b16 %v1628
  %v1782 = vunpack.c.h.b16 %v1628
  %v1783 = vunpack.c.l.b16 %v1629
  %v1784 = vunpack.c.h.b16 %v1629
  %v1785 = vunpack.c.l.b16 %v1630
  %v1786 = vunpack.c.h.b16 %v1630
  %v1787 = vunpack.c.l.b16 %v1631
  %v1788 = vunpack.c.h.b16 %v1631
  %v1789 = vunpack.c.l.b16 %v1632
  %v1790 = vunpack.c.h.b16 %v1632
  %v1791 = vunpack.c.l.b16 %v1633
  %v1792 = vunpack.c.h.b16 %v1633
  %v1793 = vunpack.c.l.b16 %v1634
  %v1794 = vunpack.c.h.b16 %v1634
  %v1795 = vunpack.c.l.b16 %v1635
  %v1796 = vunpack.c.h.b16 %v1635
  %v1797 = vunpack.c.l.b16 %v1636
  %v1798 = vunpack.c.h.b16 %v1636
  %v1799 = vunpack.c.l.b16 %v1637
  %v1800 = vunpack.c.h.b16 %v1637
  %v1801 = vunpack.c.l.b16 %v1638
  %v1802 = vunpack.c.h.b16 %v1638
  %v1803 = vunpack.c.l.b16 %v1639
  %v1804 = vunpack.c.h.b16 %v1639
  %v1805 = vunpack.c.l.b16 %v1640
  %v1806 = vunpack.c.h.b16 %v1640
  %v1807 = vunpack.c.l.b16 %v1641
  %v1808 = vunpack.c.h.b16 %v1641
  %v1809 = vunpack.c.l.b16 %v1642
  %v1810 = vunpack.c.h.b16 %v1642
  %v1811 = vunpack.c.l.b16 %v1643
  %v1812 = vunpack.c.h.b16 %v1643
  %v1813 = vunpack.c.l.b16 %v1644
  %v1814 = vunpack.c.h.b16 %v1644
  %v1815 = vunpack.c.l.b16 %v1645
  %v1816 = vunpack.c.h.b16 %v1645
  %v1817 = vunpack.c.l.b16 %v1646
  %v1818 = vunpack.c.h.b16 %v1646
  %v1819 = vunpack.c.l.b16 %v1647
  %v1820 = vunpack.c.h.b16 %v1647
  %v1821 = vunpack.c.l.b16 %v1648
  %v1822 = vunpack.c.h.b16 %v1648
  %v1823 = vunpack.c.l.b16 %v1649
  %v1824 = vunpack.c.h.b16 %v1649
  %v1825 = vunpack.c.l.b16 %v1650
  %v1826 = vunpack.c.h.b16 %v1650
  %v1827 = vunpack.c.l.b16 %v1651
  %v1828 = vunpack.c.h.b16 %v1651
  %v1829 = vunpack.c.l.b16 %v1652
  %v1830 = vunpack.c.h.b16 %v1652
  %v1831 = vunpack.c.l.b16 %v1653
  %v1832 = vunpack.c.h.b16 %v1653
  %v1833 = vunpack.c.l.b16 %v1654
  %v1834 = vunpack.c.h.b16 %v1654
  %v1835 = vunpack.c.l.b16 %v1655
  %v1836 = vunpack.c.h.b16 %v1655
  %v1837 = vunpack.c.l.b16 %v1656
  %v1838 = vunpack.c.h.b16 %v1656
  %v1839 = vunpack.c.l.b16 %v1657
  %v1840 = vunpack.c.h.b16 %v1657
  %v1841 = vunpack.c.l.b16 %v1658
  %v1842 = vunpack.c.h.b16 %v1658
  %v1843 = vunpack.c.l.b16 %v1659
  %v1844 = vunpack.c.h.b16 %v1659
  %v1845 = vunpack.c.l.b16 %v1660
  %v1846 = vunpack.c.h.b16 %v1660
  %v1847 = vunpack.c.l.b16 %v1661
  %v1848 = vunpack.c.h.b16 %v1661
  %v1849 = vunpack.c.l.b16 %v1662
  %v1850 = vunpack.c.h.b16 %v1662
  %v1851 = vunpack.c.l.b16 %v1663
  %v1852 = vunpack.c.h.b16 %v1663
  %v1853 = vunpack.c.l.b16 %v1664
  %v1854 = vunpack.c.h.b16 %v1664
  %v1855 = vunpack.c.l.b16 %v1665
  %v1856 = vunpack.c.h.b16 %v1665
  %v1857 = vunpack.c.l.b16 %v1666
  %v1858 = vunpack.c.h.b16 %v1666
  %v1859 = vunpack.c.l.b16 %v1667
  %v1860 = vunpack.c.h.b16 %v1667
  %v1861 = vunpack.c.l.b16 %v1668
  %v1862 = vunpack.c.h.b16 %v1668
  %v1863 = vunpack.c.l.b16 %v1669
  %v1864 = vunpack.c.h.b16 %v1669
  %v1865 = vunpack.c.l.b16 %v1670
  %v1866 = vunpack.c.h.b16 %v1670
  %v1867 = vunpack.c.l.b16 %v1671
  %v1868 = vunpack.c.h.b16 %v1671
  %v1869 = vunpack.c.l.b16 %v1672
  %v1870 = vunpack.c.h.b16 %v1672
  %v1871 = vunpack.c.l.b16 %v1673
  %v1872 = vunpack.c.h.b16 %v1673
  %v1873 = vunpack.c.l.b16 %v1674
  %v1874 = vunpack.c.h.b16 %v1674
  %v1875 = vunpack.c.l.b16 %v1675
  %v1876 = vunpack.c.h.b16 %v1675
  %v1877 = vunpack.c.l.b16 %v1676
  %v1878 = vunpack.c.h.b16 %v1676
  %v1879 = vunpack.c.l.b16 %v1677
  %v1880 = vunpack.c.h.b16 %v1677
  %v1881 = vunpack.c.l.b16 %v1678
  %v1882 = vunpack.c.h.b16 %v1678
  %v1883 = vpack.c.b16 %v1757, %v1755
  %v1884 = vpack.c.b16 %v1758, %v1756
  %v1885 = vpack.c.b16 %v1761, %v1759
  %v1886 = vpack.c.b16 %v1762, %v1760
  %v1887 = vpack.c.b16 %v1765, %v1763
  %v1888 = vpack.c.b16 %v1766, %v1764
  %v1889 = vpack.c.b16 %v1769, %v1767
  %v1890 = vpack.c.b16 %v1770, %v1768
  %v1891 = vpack.c.b16 %v1773, %v1771
  %v1892 = vpack.c.b16 %v1774, %v1772
  %v1893 = vpack.c.b16 %v1777, %v1775
  %v1894 = vpack.c.b16 %v1778, %v1776
  %v1895 = vpack.c.b16 %v1781, %v1779
  %v1896 = vpack.c.b16 %v1782, %v1780
  %v1897 = vpack.c.b16 %v1785, %v1783
  %v1898 = vpack.c.b16 %v1786, %v1784
  %v1899 = vpack.c.b16 %v1789, %v1787
  %v1900 = vpack.c.b16 %v1790, %v1788
  %v1901 = vpack.c.b16 %v1793, %v1791
  %v1902 = vpack.c.b16 %v1794, %v1792
  %v1903 = vpack.c.b16 %v1797, %v1795
  %v1904 = vpack.c.b16 %v1798, %v1796
  %v1905 = vpack.c.b16 %v1801, %v1799
  %v1906 = vpack.c.b16 %v1802, %v1800
  %v1907 = vpack.c.b16 %v1805, %v1803
  %v1908 = vpack.c.b16 %v1806, %v1804
  %v1909 = vpack.c.b16 %v1809, %v1807
  %v1910 = vpack.c.b16 %v1810, %v1808
  %v1911 = vpack.c.b16 %v1813, %v1811
  %v1912 = vpack.c.b16 %v1814, %v1812
  %v1913 = vpack.c.b16 %v1817, %v1815
  %v1914 = vpack.c.b16 %v1818, %v1816
  %v1915 = vpack.c.b16 %v1821, %v1819
  %v1916 = vpack.c.b16 %v1822, %v1820
  %v1917 = vpack.c.b16 %v1825, %v1823
  %v1918 = vpack.c.b16 %v1826, %v1824
  %v1919 = vpack.c.b16 %v1829, %v1827
  %v1920 = vpack.c.b16 %v1830, %v1828
  %v1921 = vpack.c.b16 %v1833, %v1831
  %v1922 = vpack.c.b16 %v1834, %v1832
  %v1923 = vpack.c.b16 %v1837, %v1835
  %v1924 = vpack.c.b16 %v1838, %v1836
  %v1925 = vpack.c.b16 %v1841, %v1839
  %v1926 = vpack.c.b16 %v1842, %v1840
  %v1927 = vpack.c.b16 %v1845, %v1843
  %v1928 = vpack.c.b16 %v1846, %v1844
  %v1929 = vpack.c.b16 %v1849, %v1847
  %v1930 = vpack.c.b16 %v1850, %v1848
  %v1931 = vpack.c.b16 %v1853, %v1851
  %v1932 = vpack.c.b16 %v1854, %v1852
  %v1933 = vpack.c.b16 %v1857, %v1855
  %v1934 = vpack.c.b16 %v1858, %v1856
  %v1935 = vpack.c.b16 %v1861, %v1859
  %v1936 = vpack.c.b16 %v1862, %v1860
  %v1937 = vpack.c.b16 %v1865, %v1863
  %v1938 = vpack.c.b16 %v1866, %v1864
  %v1939 = vpack.c.b16 %v1869, %v1867
  %v1940 = vpack.c.b16 %v1870, %v1868
  %v1941 = vpack.c.b16 %v1873, %v1871
  %v1942 = vpack.c.b16 %v1874, %v1872
  %v1943 = vpack.c.b16 %v1877, %v1875
  %v1944 = vpack.c.b16 %v1878, %v1876
  %v1945 = vpack.c.b16 %v1881, %v1879
  %v1946 = vpack.c.b16 %v1882, %v1880
  %2011 = vmatprep.subr.bf16.mxu0 %v1898
  %2012 = vmatpush1.bf16.msra.mxu0 %v1897
  %2013 = vmatprep.subr.bf16.mxu0 %v1896
  %2014 = vmatpush1.bf16.msra.mxu0 %v1895
  %2015 = vmatprep.subr.bf16.mxu0 %v1894
  %2016 = vmatpush1.bf16.msra.mxu0 %v1893
  %2017 = vmatprep.subr.bf16.mxu0 %v1892
  %2018 = vmatpush1.bf16.msra.mxu0 %v1891
  %2019 = vmatprep.subr.bf16.mxu0 %v1890
  %2020 = vmatpush1.bf16.msra.mxu0 %v1889
  %2021 = vmatprep.subr.bf16.mxu0 %v1888
  %2022 = vmatpush1.bf16.msra.mxu0 %v1887
  %2023 = vmatprep.subr.bf16.mxu0 %v1886
  %2024 = vmatpush1.bf16.msra.mxu0 %v1885
  %2025 = vmatprep.subr.bf16.mxu0 %v1884
  %2026 = vmatpush1.bf16.msra.mxu0 %v1883
  %2027 = vmatprep.subr.bf16.mxu0 %v1914
  %2028 = vmatpush2.bf16.msra.mxu0 %v1913
  %2029 = vmatprep.subr.bf16.mxu0 %v1912
  %2030 = vmatpush2.bf16.msra.mxu0 %v1911
  %2031 = vmatprep.subr.bf16.mxu0 %v1910
  %2032 = vmatpush2.bf16.msra.mxu0 %v1909
  %2033 = vmatprep.subr.bf16.mxu0 %v1908
  %2034 = vmatpush2.bf16.msra.mxu0 %v1907
  %2035 = vmatprep.subr.bf16.mxu0 %v1906
  %2036 = vmatpush2.bf16.msra.mxu0 %v1905
  %2037 = vmatprep.subr.bf16.mxu0 %v1904
  %2038 = vmatpush2.bf16.msra.mxu0 %v1903
  %2039 = vmatprep.subr.bf16.mxu0 %v1902
  %2040 = vmatpush2.bf16.msra.mxu0 %v1901
  %2041 = vmatprep.subr.bf16.mxu0 %v1900
  %2042 = vmatpush2.bf16.msra.mxu0 %v1899
  %2043 = vmatprep.mubr.bf16.mxu0 %v1612
  %2044 = vmatmul.mubr.bf16.gmra.mxu0 %v1611
  %v2045 = vpop.f32.mrf.mxu0
  %v2046 = vadd.f32 %v1684, %v2045
  %v2047 = vpop.f32.mrf.mxu0
  %v2048 = vadd.f32 %v1688, %v2047
  %v2049 = vpop.f32.mrf.mxu0
  %v2050 = vadd.f32 %v1684, %v2049
  %v2051 = vpop.f32.mrf.mxu0
  %v2052 = vadd.f32 %v1688, %v2051
  %2053 = vdwg.mxu0
  %2054 = vmatprep.subr.bf16.mxu0 %v1930
  %2055 = vmatpush1.bf16.msra.mxu0 %v1929
  %2056 = vmatprep.subr.bf16.mxu0 %v1928
  %2057 = vmatpush1.bf16.msra.mxu0 %v1927
  %2058 = vmatprep.subr.bf16.mxu0 %v1926
  %2059 = vmatpush1.bf16.msra.mxu0 %v1925
  %2060 = vmatprep.subr.bf16.mxu0 %v1924
  %2061 = vmatpush1.bf16.msra.mxu0 %v1923
  %2062 = vmatprep.subr.bf16.mxu0 %v1922
  %2063 = vmatpush1.bf16.msra.mxu0 %v1921
  %2064 = vmatprep.subr.bf16.mxu0 %v1920
  %2065 = vmatpush1.bf16.msra.mxu0 %v1919
  %2066 = vmatprep.subr.bf16.mxu0 %v1918
  %2067 = vmatpush1.bf16.msra.mxu0 %v1917
  %2068 = vmatprep.subr.bf16.mxu0 %v1916
  %2069 = vmatpush1.bf16.msra.mxu0 %v1915
  %2070 = vmatprep.subr.bf16.mxu0 %v1946
  %2071 = vmatpush2.bf16.msra.mxu0 %v1945
  %2072 = vmatprep.subr.bf16.mxu0 %v1944
  %2073 = vmatpush2.bf16.msra.mxu0 %v1943
  %2074 = vmatprep.subr.bf16.mxu0 %v1942
  %2075 = vmatpush2.bf16.msra.mxu0 %v1941
  %2076 = vmatprep.subr.bf16.mxu0 %v1940
  %2077 = vmatpush2.bf16.msra.mxu0 %v1939
  %2078 = vmatprep.subr.bf16.mxu0 %v1938
  %2079 = vmatpush2.bf16.msra.mxu0 %v1937
  %2080 = vmatprep.subr.bf16.mxu0 %v1936
  %2081 = vmatpush2.bf16.msra.mxu0 %v1935
  %2082 = vmatprep.subr.bf16.mxu0 %v1934
  %2083 = vmatpush2.bf16.msra.mxu0 %v1933
  %2084 = vmatprep.subr.bf16.mxu0 %v1932
  %2085 = vmatpush2.bf16.msra.mxu0 %v1931
  %2086 = vmatprep.mubr.bf16.mxu0 %v1614
  %2087 = vmatmul.mubr.bf16.gmra.mxu0 %v1613
  %v2088 = vpop.f32.mrf.mxu0
  %v2089 = vadd.f32 %v2046, %v2088
  %v2090 = vpop.f32.mrf.mxu0
  %v2091 = vadd.f32 %v2048, %v2090
  %v2092 = vpop.f32.mrf.mxu0
  %v2093 = vadd.f32 %v2050, %v2092
  %v2094 = vpop.f32.mrf.mxu0
  %v2095 = vadd.f32 %v2052, %v2094
  %2096 = vdwg.mxu0
  %v2097 = vmul.f32 %v2091, 0.5
  %v2098 = vmul.f32 %v2095, 0.5
  %v2099 = vmul.f32 %v2097, 1.442695
  %v2100 = vpow.pop %v2099
  %v2101 = vmul.f32 %v2098, 1.442695
  %v2102 = vpow.pop %v2101
  %v2103 = vld [vmem:[%s1] sm:$0xff]
  %v2104 = vld [vmem:[%s1 + $0x8] sm:$0xff]
  %v2105 = vmul.f32 %v2103, %v2100
  %v2106 = vmul.f32 %v2104, %v2102
  %v2107 = vadd.f32 %v2089, %v2105
  %v2108 = vadd.f32 %v2093, %v2106
  %v2109 = vpack.c.bf16 %v2108, %v2107
  %v2110 = vld [vmem:[%s6] sm:$0xff]
  %v2111 = vld [vmem:[%s6 + $0x8] sm:$0xff]
  %v2112 = vld [vmem:[%s6 + $0x10] sm:$0xff]
  %v2113 = vld [vmem:[%s6 + $0x18] sm:$0xff]
  %v2114 = vld [vmem:[%s6 + $0x20] sm:$0xff]
  %v2115 = vld [vmem:[%s6 + $0x28] sm:$0xff]
  %v2116 = vld [vmem:[%s6 + $0x30] sm:$0xff]
  %v2117 = vld [vmem:[%s6 + $0x38] sm:$0xff]
  %v2118 = vld [vmem:[%s6 + $0x40] sm:$0xff]
  %v2119 = vld [vmem:[%s6 + $0x48] sm:$0xff]
  %v2120 = vld [vmem:[%s6 + $0x50] sm:$0xff]
  %v2121 = vld [vmem:[%s6 + $0x58] sm:$0xff]
  %v2122 = vld [vmem:[%s6 + $0x60] sm:$0xff]
  %v2123 = vld [vmem:[%s6 + $0x68] sm:$0xff]
  %v2124 = vld [vmem:[%s6 + $0x70] sm:$0xff]
  %v2125 = vld [vmem:[%s6 + $0x78] sm:$0xff]
  %v2126 = vld [vmem:[%s6 + $0x80] sm:$0xff]
  %v2127 = vld [vmem:[%s6 + $0x88] sm:$0xff]
  %v2128 = vld [vmem:[%s6 + $0x90] sm:$0xff]
  %v2129 = vld [vmem:[%s6 + $0x98] sm:$0xff]
  %v2130 = vld [vmem:[%s6 + $0xa0] sm:$0xff]
  %v2131 = vld [vmem:[%s6 + $0xa8] sm:$0xff]
  %v2132 = vld [vmem:[%s6 + $0xb0] sm:$0xff]
  %v2133 = vld [vmem:[%s6 + $0xb8] sm:$0xff]
  %v2134 = vld [vmem:[%s6 + $0xc0] sm:$0xff]
  %v2135 = vld [vmem:[%s6 + $0xc8] sm:$0xff]
  %v2136 = vld [vmem:[%s6 + $0xd0] sm:$0xff]
  %v2137 = vld [vmem:[%s6 + $0xd8] sm:$0xff]
  %v2138 = vld [vmem:[%s6 + $0xe0] sm:$0xff]
  %v2139 = vld [vmem:[%s6 + $0xe8] sm:$0xff]
  %v2140 = vld [vmem:[%s6 + $0xf0] sm:$0xff]
  %v2141 = vld [vmem:[%s6 + $0xf8] sm:$0xff]
  %v2142 = vld [vmem:[%s7] sm:$0xf]
  %v2144 = vlaneseq
  %v2145 = vshrl.u32 %v2144, 7
  %v2146 = vsub.s32 0, %v2145
  %v2147 = vrot.slane %v2142, %v2146
  %v2148 = vlaneseq
  %v2149 = vshrl.u32 %v2148, 7
  %v2150 = vsub.s32 1, %v2149
  %v2151 = vrot.slane %v2142, %v2150
  %v2152 = vlaneseq
  %v2153 = vshrl.u32 %v2152, 7
  %v2154 = vsub.s32 2, %v2153
  %v2155 = vrot.slane %v2142, %v2154
  %v2156 = vlaneseq
  %v2157 = vshrl.u32 %v2156, 7
  %v2158 = vsub.s32 3, %v2157
  %v2159 = vrot.slane %v2142, %v2158
  %v2196 = vunpack.c.l.b16 %v2110
  %v2197 = vunpack.c.h.b16 %v2110
  %v2198 = vunpack.c.l.b16 %v2111
  %v2199 = vunpack.c.h.b16 %v2111
  %v2200 = vunpack.c.l.b16 %v2112
  %v2201 = vunpack.c.h.b16 %v2112
  %v2202 = vunpack.c.l.b16 %v2113
  %v2203 = vunpack.c.h.b16 %v2113
  %v2204 = vunpack.c.l.b16 %v2114
  %v2205 = vunpack.c.h.b16 %v2114
  %v2206 = vunpack.c.l.b16 %v2115
  %v2207 = vunpack.c.h.b16 %v2115
  %v2208 = vunpack.c.l.b16 %v2116
  %v2209 = vunpack.c.h.b16 %v2116
  %v2210 = vunpack.c.l.b16 %v2117
  %v2211 = vunpack.c.h.b16 %v2117
  %v2212 = vunpack.c.l.b16 %v2118
  %v2213 = vunpack.c.h.b16 %v2118
  %v2214 = vunpack.c.l.b16 %v2119
  %v2215 = vunpack.c.h.b16 %v2119
  %v2216 = vunpack.c.l.b16 %v2120
  %v2217 = vunpack.c.h.b16 %v2120
  %v2218 = vunpack.c.l.b16 %v2121
  %v2219 = vunpack.c.h.b16 %v2121
  %v2220 = vunpack.c.l.b16 %v2122
  %v2221 = vunpack.c.h.b16 %v2122
  %v2222 = vunpack.c.l.b16 %v2123
  %v2223 = vunpack.c.h.b16 %v2123
  %v2224 = vunpack.c.l.b16 %v2124
  %v2225 = vunpack.c.h.b16 %v2124
  %v2226 = vunpack.c.l.b16 %v2125
  %v2227 = vunpack.c.h.b16 %v2125
  %v2228 = vunpack.c.l.b16 %v2126
  %v2229 = vunpack.c.h.b16 %v2126
  %v2230 = vunpack.c.l.b16 %v2127
  %v2231 = vunpack.c.h.b16 %v2127
  %v2232 = vunpack.c.l.b16 %v2128
  %v2233 = vunpack.c.h.b16 %v2128
  %v2234 = vunpack.c.l.b16 %v2129
  %v2235 = vunpack.c.h.b16 %v2129
  %v2236 = vunpack.c.l.b16 %v2130
  %v2237 = vunpack.c.h.b16 %v2130
  %v2238 = vunpack.c.l.b16 %v2131
  %v2239 = vunpack.c.h.b16 %v2131
  %v2240 = vunpack.c.l.b16 %v2132
  %v2241 = vunpack.c.h.b16 %v2132
  %v2242 = vunpack.c.l.b16 %v2133
  %v2243 = vunpack.c.h.b16 %v2133
  %v2244 = vunpack.c.l.b16 %v2134
  %v2245 = vunpack.c.h.b16 %v2134
  %v2246 = vunpack.c.l.b16 %v2135
  %v2247 = vunpack.c.h.b16 %v2135
  %v2248 = vunpack.c.l.b16 %v2136
  %v2249 = vunpack.c.h.b16 %v2136
  %v2250 = vunpack.c.l.b16 %v2137
  %v2251 = vunpack.c.h.b16 %v2137
  %v2252 = vunpack.c.l.b16 %v2138
  %v2253 = vunpack.c.h.b16 %v2138
  %v2254 = vunpack.c.l.b16 %v2139
  %v2255 = vunpack.c.h.b16 %v2139
  %v2256 = vunpack.c.l.b16 %v2140
  %v2257 = vunpack.c.h.b16 %v2140
  %v2258 = vunpack.c.l.b16 %v2141
  %v2259 = vunpack.c.h.b16 %v2141
  %v2260 = vpack.c.b16 %v2200, %v2196
  %v2261 = vpack.c.b16 %v2201, %v2197
  %v2262 = vpack.c.b16 %v2202, %v2198
  %v2263 = vpack.c.b16 %v2203, %v2199
  %v2264 = vpack.c.b16 %v2208, %v2204
  %v2265 = vpack.c.b16 %v2209, %v2205
  %v2266 = vpack.c.b16 %v2210, %v2206
  %v2267 = vpack.c.b16 %v2211, %v2207
  %v2268 = vpack.c.b16 %v2216, %v2212
  %v2269 = vpack.c.b16 %v2217, %v2213
  %v2270 = vpack.c.b16 %v2218, %v2214
  %v2271 = vpack.c.b16 %v2219, %v2215
  %v2272 = vpack.c.b16 %v2224, %v2220
  %v2273 = vpack.c.b16 %v2225, %v2221
  %v2274 = vpack.c.b16 %v2226, %v2222
  %v2275 = vpack.c.b16 %v2227, %v2223
  %v2276 = vpack.c.b16 %v2232, %v2228
  %v2277 = vpack.c.b16 %v2233, %v2229
  %v2278 = vpack.c.b16 %v2234, %v2230
  %v2279 = vpack.c.b16 %v2235, %v2231
  %v2280 = vpack.c.b16 %v2240, %v2236
  %v2281 = vpack.c.b16 %v2241, %v2237
  %v2282 = vpack.c.b16 %v2242, %v2238
  %v2283 = vpack.c.b16 %v2243, %v2239
  %v2284 = vpack.c.b16 %v2248, %v2244
  %v2285 = vpack.c.b16 %v2249, %v2245
  %v2286 = vpack.c.b16 %v2250, %v2246
  %v2287 = vpack.c.b16 %v2251, %v2247
  %v2288 = vpack.c.b16 %v2256, %v2252
  %v2289 = vpack.c.b16 %v2257, %v2253
  %v2290 = vpack.c.b16 %v2258, %v2254
  %v2291 = vpack.c.b16 %v2259, %v2255
  %2324 = vmatprep.subr.bf16.mxu0 %v2289
  %2325 = vmatpush1.bf16.msra.mxu0 %v2288
  %2326 = vmatprep.subr.bf16.mxu0 %v2285
  %2327 = vmatpush1.bf16.msra.mxu0 %v2284
  %2328 = vmatprep.subr.bf16.mxu0 %v2281
  %2329 = vmatpush1.bf16.msra.mxu0 %v2280
  %2330 = vmatprep.subr.bf16.mxu0 %v2277
  %2331 = vmatpush1.bf16.msra.mxu0 %v2276
  %2332 = vmatprep.subr.bf16.mxu0 %v2273
  %2333 = vmatpush1.bf16.msra.mxu0 %v2272
  %2334 = vmatprep.subr.bf16.mxu0 %v2269
  %2335 = vmatpush1.bf16.msra.mxu0 %v2268
  %2336 = vmatprep.subr.bf16.mxu0 %v2265
  %2337 = vmatpush1.bf16.msra.mxu0 %v2264
  %2338 = vmatprep.subr.bf16.mxu0 %v2261
  %2339 = vmatpush1.bf16.msra.mxu0 %v2260
  %2340 = vmatprep.subr.bf16.mxu0 0
  %2341 = vmatpush2.bf16.msra.mxu0 0
  %2342 = vmatprep.subr.bf16.mxu0 0
  %2343 = vmatpush2.bf16.msra.mxu0 0
  %2344 = vmatprep.subr.bf16.mxu0 0
  %2345 = vmatpush2.bf16.msra.mxu0 0
  %2346 = vmatprep.subr.bf16.mxu0 0
  %2347 = vmatpush2.bf16.msra.mxu0 0
  %2348 = vmatprep.subr.bf16.mxu0 0
  %2349 = vmatpush2.bf16.msra.mxu0 0
  %2350 = vmatprep.subr.bf16.mxu0 0
  %2351 = vmatpush2.bf16.msra.mxu0 0
  %2352 = vmatprep.subr.bf16.mxu0 0
  %2353 = vmatpush2.bf16.msra.mxu0 0
  %2354 = vmatprep.subr.bf16.mxu0 0
  %2355 = vmatpush2.bf16.msra.mxu0 0
  %2356 = vmatprep.mubr.bf16.mxu0 0
  %2357 = vmatmul.mubr.bf16.gmra.mxu0 %v2109
  %v2358 = vpop.f32.mrf.mxu0
  %v2359 = vadd.f32 %v2147, %v2358
  %v2360 = vpop.f32.mrf.mxu0
  %v2361 = vadd.f32 %v2151, %v2360
  %v2362 = vpop.f32.mrf.mxu0
  %v2363 = vadd.f32 %v2147, %v2362
  %v2364 = vpop.f32.mrf.mxu0
  %v2365 = vadd.f32 %v2151, %v2364
  %2366 = vdwg.mxu0
  %2367 = vmatprep.subr.bf16.mxu0 %v2291
  %2368 = vmatpush1.bf16.msra.mxu0 %v2290
  %2369 = vmatprep.subr.bf16.mxu0 %v2287
  %2370 = vmatpush1.bf16.msra.mxu0 %v2286
  %2371 = vmatprep.subr.bf16.mxu0 %v2283
  %2372 = vmatpush1.bf16.msra.mxu0 %v2282
  %2373 = vmatprep.subr.bf16.mxu0 %v2279
  %2374 = vmatpush1.bf16.msra.mxu0 %v2278
  %2375 = vmatprep.subr.bf16.mxu0 %v2275
  %2376 = vmatpush1.bf16.msra.mxu0 %v2274
  %2377 = vmatprep.subr.bf16.mxu0 %v2271
  %2378 = vmatpush1.bf16.msra.mxu0 %v2270
  %2379 = vmatprep.subr.bf16.mxu0 %v2267
  %2380 = vmatpush1.bf16.msra.mxu0 %v2266
  %2381 = vmatprep.subr.bf16.mxu0 %v2263
  %2382 = vmatpush1.bf16.msra.mxu0 %v2262
  %2383 = vmatprep.subr.bf16.mxu0 0
  %2384 = vmatpush2.bf16.msra.mxu0 0
  %2385 = vmatprep.subr.bf16.mxu0 0
  %2386 = vmatpush2.bf16.msra.mxu0 0
  %2387 = vmatprep.subr.bf16.mxu0 0
  %2388 = vmatpush2.bf16.msra.mxu0 0
  %2389 = vmatprep.subr.bf16.mxu0 0
  %2390 = vmatpush2.bf16.msra.mxu0 0
  %2391 = vmatprep.subr.bf16.mxu0 0
  %2392 = vmatpush2.bf16.msra.mxu0 0
  %2393 = vmatprep.subr.bf16.mxu0 0
  %2394 = vmatpush2.bf16.msra.mxu0 0
  %2395 = vmatprep.subr.bf16.mxu0 0
  %2396 = vmatpush2.bf16.msra.mxu0 0
  %2397 = vmatprep.subr.bf16.mxu0 0
  %2398 = vmatpush2.bf16.msra.mxu0 0
  %2399 = vmatprep.mubr.bf16.mxu0 0
  %2400 = vmatmul.mubr.bf16.gmra.mxu0 %v2109
  %v2401 = vpop.f32.mrf.mxu0
  %v2402 = vadd.f32 %v2155, %v2401
  %v2403 = vpop.f32.mrf.mxu0
  %v2404 = vadd.f32 %v2159, %v2403
  %v2405 = vpop.f32.mrf.mxu0
  %v2406 = vadd.f32 %v2155, %v2405
  %v2407 = vpop.f32.mrf.mxu0
  %v2408 = vadd.f32 %v2159, %v2407
  %2409 = vdwg.mxu0
  %v2410 = vmax.f32 %v2359, 0.0
  %v2411 = vmax.f32 %v2361, 0.0
  %v2412 = vmax.f32 %v2402, 0.0
  %v2413 = vmax.f32 %v2404, 0.0
  %v2414 = vmax.f32 %v2363, 0.0
  %v2415 = vmax.f32 %v2365, 0.0
  %v2416 = vmax.f32 %v2406, 0.0
  %v2417 = vmax.f32 %v2408, 0.0
  %v2418 = vpack.c.bf16 %v2414, %v2410
  %v2419 = vpack.c.bf16 %v2415, %v2411
  %v2420 = vpack.c.bf16 %v2416, %v2412
  %v2421 = vpack.c.bf16 %v2417, %v2413
  %v2422 = vld [vmem:[%s8] sm:$0xff]
  %v2423 = vld [vmem:[%s8 + $0x8] sm:$0xff]
  %v2424 = vld [vmem:[%s8 + $0x10] sm:$0xff]
  %v2425 = vld [vmem:[%s8 + $0x18] sm:$0xf]
  %v2426 = vld [vmem:[%s8 + $0x1c] sm:$0xff]
  %v2427 = vld [vmem:[%s8 + $0x24] sm:$0xff]
  %v2428 = vld [vmem:[%s8 + $0x2c] sm:$0xff]
  %v2429 = vld [vmem:[%s8 + $0x34] sm:$0xf]
  %v2430 = vld [vmem:[%s8 + $0x38] sm:$0xff]
  %v2431 = vld [vmem:[%s8 + $0x40] sm:$0xff]
  %v2432 = vld [vmem:[%s8 + $0x48] sm:$0xff]
  %v2433 = vld [vmem:[%s8 + $0x50] sm:$0xf]
  %v2434 = vld [vmem:[%s8 + $0x54] sm:$0xff]
  %v2435 = vld [vmem:[%s8 + $0x5c] sm:$0xff]
  %v2436 = vld [vmem:[%s8 + $0x64] sm:$0xff]
  %v2437 = vld [vmem:[%s8 + $0x6c] sm:$0xf]
  %v2438 = vld [vmem:[%s8 + $0x70] sm:$0xff]
  %v2439 = vld [vmem:[%s8 + $0x78] sm:$0xff]
  %v2440 = vld [vmem:[%s8 + $0x80] sm:$0xff]
  %v2441 = vld [vmem:[%s8 + $0x88] sm:$0xf]
  %v2442 = vld [vmem:[%s8 + $0x8c] sm:$0xff]
  %v2443 = vld [vmem:[%s8 + $0x94] sm:$0xff]
  %v2444 = vld [vmem:[%s8 + $0x9c] sm:$0xff]
  %v2445 = vld [vmem:[%s8 + $0xa4] sm:$0xf]
  %v2446 = vld [vmem:[%s8 + $0xa8] sm:$0xff]
  %v2447 = vld [vmem:[%s8 + $0xb0] sm:$0xff]
  %v2448 = vld [vmem:[%s8 + $0xb8] sm:$0xff]
  %v2449 = vld [vmem:[%s8 + $0xc0] sm:$0xf]
  %v2450 = vld [vmem:[%s8 + $0xc4] sm:$0xff]
  %v2451 = vld [vmem:[%s8 + $0xcc] sm:$0xff]
  %v2452 = vld [vmem:[%s8 + $0xd4] sm:$0xff]
  %v2453 = vld [vmem:[%s8 + $0xdc] sm:$0xf]
  %v2454 = vld [vmem:[%s8 + $0xe0] sm:$0xff]
  %v2455 = vld [vmem:[%s8 + $0xe8] sm:$0xff]
  %v2456 = vld [vmem:[%s8 + $0xf0] sm:$0xff]
  %v2457 = vld [vmem:[%s8 + $0xf8] sm:$0xf]
  %v2458 = vld [vmem:[%s8 + $0xfc] sm:$0xff]
  %v2459 = vld [vmem:[%s8 + $0x104] sm:$0xff]
  %v2460 = vld [vmem:[%s8 + $0x10c] sm:$0xff]
  %v2461 = vld [vmem:[%s8 + $0x114] sm:$0xf]
  %v2462 = vld [vmem:[%s8 + $0x118] sm:$0xff]
  %v2463 = vld [vmem:[%s8 + $0x120] sm:$0xff]
  %v2464 = vld [vmem:[%s8 + $0x128] sm:$0xff]
  %v2465 = vld [vmem:[%s8 + $0x130] sm:$0xf]
  %v2466 = vld [vmem:[%s8 + $0x134] sm:$0xff]
  %v2467 = vld [vmem:[%s8 + $0x13c] sm:$0xff]
  %v2468 = vld [vmem:[%s8 + $0x144] sm:$0xff]
  %v2469 = vld [vmem:[%s8 + $0x14c] sm:$0xf]
  %v2470 = vld [vmem:[%s8 + $0x150] sm:$0xff]
  %v2471 = vld [vmem:[%s8 + $0x158] sm:$0xff]
  %v2472 = vld [vmem:[%s8 + $0x160] sm:$0xff]
  %v2473 = vld [vmem:[%s8 + $0x168] sm:$0xf]
  %v2474 = vld [vmem:[%s8 + $0x16c] sm:$0xff]
  %v2475 = vld [vmem:[%s8 + $0x174] sm:$0xff]
  %v2476 = vld [vmem:[%s8 + $0x17c] sm:$0xff]
  %v2477 = vld [vmem:[%s8 + $0x184] sm:$0xf]
  %v2478 = vld [vmem:[%s8 + $0x188] sm:$0xff]
  %v2479 = vld [vmem:[%s8 + $0x190] sm:$0xff]
  %v2480 = vld [vmem:[%s8 + $0x198] sm:$0xff]
  %v2481 = vld [vmem:[%s8 + $0x1a0] sm:$0xf]
  %v2482 = vld [vmem:[%s8 + $0x1a4] sm:$0xff]
  %v2483 = vld [vmem:[%s8 + $0x1ac] sm:$0xff]
  %v2484 = vld [vmem:[%s8 + $0x1b4] sm:$0xff]
  %v2485 = vld [vmem:[%s8 + $0x1bc] sm:$0xf]
  %v2486 = vld [vmem:[%s8 + $0x1c0] sm:$0xff]
  %v2487 = vld [vmem:[%s8 + $0x1c8] sm:$0xff]
  %v2488 = vld [vmem:[%s8 + $0x1d0] sm:$0xff]
  %v2489 = vld [vmem:[%s8 + $0x1d8] sm:$0xf]
  %v2490 = vld [vmem:[%s8 + $0x1dc] sm:$0xff]
  %v2491 = vld [vmem:[%s8 + $0x1e4] sm:$0xff]
  %v2492 = vld [vmem:[%s8 + $0x1ec] sm:$0xff]
  %v2493 = vld [vmem:[%s8 + $0x1f4] sm:$0xf]
  %v2494 = vld [vmem:[%s8 + $0x1f8] sm:$0xff]
  %v2495 = vld [vmem:[%s8 + $0x200] sm:$0xff]
  %v2496 = vld [vmem:[%s8 + $0x208] sm:$0xff]
  %v2497 = vld [vmem:[%s8 + $0x210] sm:$0xf]
  %v2498 = vld [vmem:[%s8 + $0x214] sm:$0xff]
  %v2499 = vld [vmem:[%s8 + $0x21c] sm:$0xff]
  %v2500 = vld [vmem:[%s8 + $0x224] sm:$0xff]
  %v2501 = vld [vmem:[%s8 + $0x22c] sm:$0xf]
  %v2502 = vld [vmem:[%s8 + $0x230] sm:$0xff]
  %v2503 = vld [vmem:[%s8 + $0x238] sm:$0xff]
  %v2504 = vld [vmem:[%s8 + $0x240] sm:$0xff]
  %v2505 = vld [vmem:[%s8 + $0x248] sm:$0xf]
  %v2506 = vld [vmem:[%s8 + $0x24c] sm:$0xff]
  %v2507 = vld [vmem:[%s8 + $0x254] sm:$0xff]
  %v2508 = vld [vmem:[%s8 + $0x25c] sm:$0xff]
  %v2509 = vld [vmem:[%s8 + $0x264] sm:$0xf]
  %v2510 = vld [vmem:[%s8 + $0x268] sm:$0xff]
  %v2511 = vld [vmem:[%s8 + $0x270] sm:$0xff]
  %v2512 = vld [vmem:[%s8 + $0x278] sm:$0xff]
  %v2513 = vld [vmem:[%s8 + $0x280] sm:$0xf]
  %v2514 = vld [vmem:[%s8 + $0x284] sm:$0xff]
  %v2515 = vld [vmem:[%s8 + $0x28c] sm:$0xff]
  %v2516 = vld [vmem:[%s8 + $0x294] sm:$0xff]
  %v2517 = vld [vmem:[%s8 + $0x29c] sm:$0xf]
  %v2518 = vld [vmem:[%s8 + $0x2a0] sm:$0xff]
  %v2519 = vld [vmem:[%s8 + $0x2a8] sm:$0xff]
  %v2520 = vld [vmem:[%s8 + $0x2b0] sm:$0xff]
  %v2521 = vld [vmem:[%s8 + $0x2b8] sm:$0xf]
  %v2522 = vld [vmem:[%s8 + $0x2bc] sm:$0xff]
  %v2523 = vld [vmem:[%s8 + $0x2c4] sm:$0xff]
  %v2524 = vld [vmem:[%s8 + $0x2cc] sm:$0xff]
  %v2525 = vld [vmem:[%s8 + $0x2d4] sm:$0xf]
  %v2526 = vld [vmem:[%s8 + $0x2d8] sm:$0xff]
  %v2527 = vld [vmem:[%s8 + $0x2e0] sm:$0xff]
  %v2528 = vld [vmem:[%s8 + $0x2e8] sm:$0xff]
  %v2529 = vld [vmem:[%s8 + $0x2f0] sm:$0xf]
  %v2530 = vld [vmem:[%s8 + $0x2f4] sm:$0xff]
  %v2531 = vld [vmem:[%s8 + $0x2fc] sm:$0xff]
  %v2532 = vld [vmem:[%s8 + $0x304] sm:$0xff]
  %v2533 = vld [vmem:[%s8 + $0x30c] sm:$0xf]
  %v2534 = vld [vmem:[%s8 + $0x310] sm:$0xff]
  %v2535 = vld [vmem:[%s8 + $0x318] sm:$0xff]
  %v2536 = vld [vmem:[%s8 + $0x320] sm:$0xff]
  %v2537 = vld [vmem:[%s8 + $0x328] sm:$0xf]
  %v2538 = vld [vmem:[%s8 + $0x32c] sm:$0xff]
  %v2539 = vld [vmem:[%s8 + $0x334] sm:$0xff]
  %v2540 = vld [vmem:[%s8 + $0x33c] sm:$0xff]
  %v2541 = vld [vmem:[%s8 + $0x344] sm:$0xf]
  %v2542 = vld [vmem:[%s8 + $0x348] sm:$0xff]
  %v2543 = vld [vmem:[%s8 + $0x350] sm:$0xff]
  %v2544 = vld [vmem:[%s8 + $0x358] sm:$0xff]
  %v2545 = vld [vmem:[%s8 + $0x360] sm:$0xf]
  %v2546 = vld [vmem:[%s8 + $0x364] sm:$0xff]
  %v2547 = vld [vmem:[%s8 + $0x36c] sm:$0xff]
  %v2548 = vld [vmem:[%s8 + $0x374] sm:$0xff]
  %v2549 = vld [vmem:[%s8 + $0x37c] sm:$0xf]
  %v2550 = vld [vmem:[%s8 + $0x380] sm:$0xff]
  %v2551 = vld [vmem:[%s8 + $0x388] sm:$0xff]
  %v2552 = vld [vmem:[%s8 + $0x390] sm:$0xff]
  %v2553 = vld [vmem:[%s8 + $0x398] sm:$0xf]
  %v2554 = vld [vmem:[%s8 + $0x39c] sm:$0xff]
  %v2555 = vld [vmem:[%s8 + $0x3a4] sm:$0xff]
  %v2556 = vld [vmem:[%s8 + $0x3ac] sm:$0xff]
  %v2557 = vld [vmem:[%s8 + $0x3b4] sm:$0xf]
  %v2558 = vld [vmem:[%s8 + $0x3b8] sm:$0xff]
  %v2559 = vld [vmem:[%s8 + $0x3c0] sm:$0xff]
  %v2560 = vld [vmem:[%s8 + $0x3c8] sm:$0xff]
  %v2561 = vld [vmem:[%s8 + $0x3d0] sm:$0xf]
  %v2562 = vld [vmem:[%s8 + $0x3d4] sm:$0xff]
  %v2563 = vld [vmem:[%s8 + $0x3dc] sm:$0xff]
  %v2564 = vld [vmem:[%s8 + $0x3e4] sm:$0xff]
  %v2565 = vld [vmem:[%s8 + $0x3ec] sm:$0xf]
  %v2566 = vld [vmem:[%s8 + $0x3f0] sm:$0xff]
  %v2567 = vld [vmem:[%s8 + $0x3f8] sm:$0xff]
  %v2568 = vld [vmem:[%s8 + $0x400] sm:$0xff]
  %v2569 = vld [vmem:[%s8 + $0x408] sm:$0xf]
  %v2570 = vld [vmem:[%s8 + $0x40c] sm:$0xff]
  %v2571 = vld [vmem:[%s8 + $0x414] sm:$0xff]
  %v2572 = vld [vmem:[%s8 + $0x41c] sm:$0xff]
  %v2573 = vld [vmem:[%s8 + $0x424] sm:$0xf]
  %v2574 = vld [vmem:[%s8 + $0x428] sm:$0xff]
  %v2575 = vld [vmem:[%s8 + $0x430] sm:$0xff]
  %v2576 = vld [vmem:[%s8 + $0x438] sm:$0xff]
  %v2577 = vld [vmem:[%s8 + $0x440] sm:$0xf]
  %v2578 = vld [vmem:[%s8 + $0x444] sm:$0xff]
  %v2579 = vld [vmem:[%s8 + $0x44c] sm:$0xff]
  %v2580 = vld [vmem:[%s8 + $0x454] sm:$0xff]
  %v2581 = vld [vmem:[%s8 + $0x45c] sm:$0xf]
  %v2582 = vld [vmem:[%s8 + $0x460] sm:$0xff]
  %v2583 = vld [vmem:[%s8 + $0x468] sm:$0xff]
  %v2584 = vld [vmem:[%s8 + $0x470] sm:$0xff]
  %v2585 = vld [vmem:[%s8 + $0x478] sm:$0xf]
  %v2586 = vld [vmem:[%s8 + $0x47c] sm:$0xff]
  %v2587 = vld [vmem:[%s8 + $0x484] sm:$0xff]
  %v2588 = vld [vmem:[%s8 + $0x48c] sm:$0xff]
  %v2589 = vld [vmem:[%s8 + $0x494] sm:$0xf]
  %v2590 = vld [vmem:[%s8 + $0x498] sm:$0xff]
  %v2591 = vld [vmem:[%s8 + $0x4a0] sm:$0xff]
  %v2592 = vld [vmem:[%s8 + $0x4a8] sm:$0xff]
  %v2593 = vld [vmem:[%s8 + $0x4b0] sm:$0xf]
  %v2594 = vld [vmem:[%s8 + $0x4b4] sm:$0xff]
  %v2595 = vld [vmem:[%s8 + $0x4bc] sm:$0xff]
  %v2596 = vld [vmem:[%s8 + $0x4c4] sm:$0xff]
  %v2597 = vld [vmem:[%s8 + $0x4cc] sm:$0xf]
  %v2598 = vld [vmem:[%s8 + $0x4d0] sm:$0xff]
  %v2599 = vld [vmem:[%s8 + $0x4d8] sm:$0xff]
  %v2600 = vld [vmem:[%s8 + $0x4e0] sm:$0xff]
  %v2601 = vld [vmem:[%s8 + $0x4e8] sm:$0xf]
  %v2602 = vld [vmem:[%s8 + $0x4ec] sm:$0xff]
  %v2603 = vld [vmem:[%s8 + $0x4f4] sm:$0xff]
  %v2604 = vld [vmem:[%s8 + $0x4fc] sm:$0xff]
  %v2605 = vld [vmem:[%s8 + $0x504] sm:$0xf]
  %v2606 = vld [vmem:[%s8 + $0x508] sm:$0xff]
  %v2607 = vld [vmem:[%s8 + $0x510] sm:$0xff]
  %v2608 = vld [vmem:[%s8 + $0x518] sm:$0xff]
  %v2609 = vld [vmem:[%s8 + $0x520] sm:$0xf]
  %v2610 = vld [vmem:[%s8 + $0x524] sm:$0xff]
  %v2611 = vld [vmem:[%s8 + $0x52c] sm:$0xff]
  %v2612 = vld [vmem:[%s8 + $0x534] sm:$0xff]
  %v2613 = vld [vmem:[%s8 + $0x53c] sm:$0xf]
  %v2614 = vld [vmem:[%s8 + $0x540] sm:$0xff]
  %v2615 = vld [vmem:[%s8 + $0x548] sm:$0xff]
  %v2616 = vld [vmem:[%s8 + $0x550] sm:$0xff]
  %v2617 = vld [vmem:[%s8 + $0x558] sm:$0xf]
  %v2618 = vld [vmem:[%s8 + $0x55c] sm:$0xff]
  %v2619 = vld [vmem:[%s8 + $0x564] sm:$0xff]
  %v2620 = vld [vmem:[%s8 + $0x56c] sm:$0xff]
  %v2621 = vld [vmem:[%s8 + $0x574] sm:$0xf]
  %v2622 = vld [vmem:[%s8 + $0x578] sm:$0xff]
  %v2623 = vld [vmem:[%s8 + $0x580] sm:$0xff]
  %v2624 = vld [vmem:[%s8 + $0x588] sm:$0xff]
  %v2625 = vld [vmem:[%s8 + $0x590] sm:$0xf]
  %v2626 = vld [vmem:[%s8 + $0x594] sm:$0xff]
  %v2627 = vld [vmem:[%s8 + $0x59c] sm:$0xff]
  %v2628 = vld [vmem:[%s8 + $0x5a4] sm:$0xff]
  %v2629 = vld [vmem:[%s8 + $0x5ac] sm:$0xf]
  %v2630 = vld [vmem:[%s8 + $0x5b0] sm:$0xff]
  %v2631 = vld [vmem:[%s8 + $0x5b8] sm:$0xff]
  %v2632 = vld [vmem:[%s8 + $0x5c0] sm:$0xff]
  %v2633 = vld [vmem:[%s8 + $0x5c8] sm:$0xf]
  %v2634 = vld [vmem:[%s8 + $0x5cc] sm:$0xff]
  %v2635 = vld [vmem:[%s8 + $0x5d4] sm:$0xff]
  %v2636 = vld [vmem:[%s8 + $0x5dc] sm:$0xff]
  %v2637 = vld [vmem:[%s8 + $0x5e4] sm:$0xf]
  %v2638 = vld [vmem:[%s8 + $0x5e8] sm:$0xff]
  %v2639 = vld [vmem:[%s8 + $0x5f0] sm:$0xff]
  %v2640 = vld [vmem:[%s8 + $0x5f8] sm:$0xff]
  %v2641 = vld [vmem:[%s8 + $0x600] sm:$0xf]
  %v2642 = vld [vmem:[%s8 + $0x604] sm:$0xff]
  %v2643 = vld [vmem:[%s8 + $0x60c] sm:$0xff]
  %v2644 = vld [vmem:[%s8 + $0x614] sm:$0xff]
  %v2645 = vld [vmem:[%s8 + $0x61c] sm:$0xf]
  %v2646 = vld [vmem:[%s8 + $0x620] sm:$0xff]
  %v2647 = vld [vmem:[%s8 + $0x628] sm:$0xff]
  %v2648 = vld [vmem:[%s8 + $0x630] sm:$0xff]
  %v2649 = vld [vmem:[%s8 + $0x638] sm:$0xf]
  %v2650 = vld [vmem:[%s8 + $0x63c] sm:$0xff]
  %v2651 = vld [vmem:[%s8 + $0x644] sm:$0xff]
  %v2652 = vld [vmem:[%s8 + $0x64c] sm:$0xff]
  %v2653 = vld [vmem:[%s8 + $0x654] sm:$0xf]
  %v2654 = vld [vmem:[%s8 + $0x658] sm:$0xff]
  %v2655 = vld [vmem:[%s8 + $0x660] sm:$0xff]
  %v2656 = vld [vmem:[%s8 + $0x668] sm:$0xff]
  %v2657 = vld [vmem:[%s8 + $0x670] sm:$0xf]
  %v2658 = vld [vmem:[%s8 + $0x674] sm:$0xff]
  %v2659 = vld [vmem:[%s8 + $0x67c] sm:$0xff]
  %v2660 = vld [vmem:[%s8 + $0x684] sm:$0xff]
  %v2661 = vld [vmem:[%s8 + $0x68c] sm:$0xf]
  %v2662 = vld [vmem:[%s8 + $0x690] sm:$0xff]
  %v2663 = vld [vmem:[%s8 + $0x698] sm:$0xff]
  %v2664 = vld [vmem:[%s8 + $0x6a0] sm:$0xff]
  %v2665 = vld [vmem:[%s8 + $0x6a8] sm:$0xf]
  %v2666 = vld [vmem:[%s8 + $0x6ac] sm:$0xff]
  %v2667 = vld [vmem:[%s8 + $0x6b4] sm:$0xff]
  %v2668 = vld [vmem:[%s8 + $0x6bc] sm:$0xff]
  %v2669 = vld [vmem:[%s8 + $0x6c4] sm:$0xf]
  %v2670 = vld [vmem:[%s8 + $0x6c8] sm:$0xff]
  %v2671 = vld [vmem:[%s8 + $0x6d0] sm:$0xff]
  %v2672 = vld [vmem:[%s8 + $0x6d8] sm:$0xff]
  %v2673 = vld [vmem:[%s8 + $0x6e0] sm:$0xf]
  %v2674 = vld [vmem:[%s8 + $0x6e4] sm:$0xff]
  %v2675 = vld [vmem:[%s8 + $0x6ec] sm:$0xff]
  %v2676 = vld [vmem:[%s8 + $0x6f4] sm:$0xff]
  %v2677 = vld [vmem:[%s8 + $0x6fc] sm:$0xf]
  %v2678 = vld [vmem:[%s9] sm:$0x7f]
  %v2680 = vlaneseq
  %v2681 = vshrl.u32 %v2680, 7
  %v2682 = vsub.s32 0, %v2681
  %v2683 = vrot.slane %v2678, %v2682
  %v2684 = vlaneseq
  %v2685 = vshrl.u32 %v2684, 7
  %v2686 = vsub.s32 1, %v2685
  %v2687 = vrot.slane %v2678, %v2686
  %v2688 = vlaneseq
  %v2689 = vshrl.u32 %v2688, 7
  %v2690 = vsub.s32 2, %v2689
  %v2691 = vrot.slane %v2678, %v2690
  %v2692 = vlaneseq
  %v2693 = vshrl.u32 %v2692, 7
  %v2694 = vsub.s32 3, %v2693
  %v2695 = vrot.slane %v2678, %v2694
  %v2696 = vlaneseq
  %v2697 = vshrl.u32 %v2696, 7
  %v2698 = vsub.s32 4, %v2697
  %v2699 = vrot.slane %v2678, %v2698
  %v2700 = vlaneseq
  %v2701 = vshrl.u32 %v2700, 7
  %v2702 = vsub.s32 5, %v2701
  %v2703 = vrot.slane %v2678, %v2702
  %v2704 = vlaneseq
  %v2705 = vshrl.u32 %v2704, 7
  %v2706 = vsub.s32 6, %v2705
  %v2707 = vrot.slane %v2678, %v2706
  %v2971 = vunpack.c.l.b16 %v2422
  %v2972 = vunpack.c.h.b16 %v2422
  %v2973 = vunpack.c.l.b16 %v2423
  %v2974 = vunpack.c.h.b16 %v2423
  %v2975 = vunpack.c.l.b16 %v2424
  %v2976 = vunpack.c.h.b16 %v2424
  %v2977 = vunpack.c.l.b16 %v2425
  %v2978 = vunpack.c.l.b16 %v2426
  %v2979 = vunpack.c.h.b16 %v2426
  %v2980 = vunpack.c.l.b16 %v2427
  %v2981 = vunpack.c.h.b16 %v2427
  %v2982 = vunpack.c.l.b16 %v2428
  %v2983 = vunpack.c.h.b16 %v2428
  %v2984 = vunpack.c.l.b16 %v2429
  %v2985 = vunpack.c.l.b16 %v2430
  %v2986 = vunpack.c.h.b16 %v2430
  %v2987 = vunpack.c.l.b16 %v2431
  %v2988 = vunpack.c.h.b16 %v2431
  %v2989 = vunpack.c.l.b16 %v2432
  %v2990 = vunpack.c.h.b16 %v2432
  %v2991 = vunpack.c.l.b16 %v2433
  %v2992 = vunpack.c.l.b16 %v2434
  %v2993 = vunpack.c.h.b16 %v2434
  %v2994 = vunpack.c.l.b16 %v2435
  %v2995 = vunpack.c.h.b16 %v2435
  %v2996 = vunpack.c.l.b16 %v2436
  %v2997 = vunpack.c.h.b16 %v2436
  %v2998 = vunpack.c.l.b16 %v2437
  %v2999 = vunpack.c.l.b16 %v2438
  %v3000 = vunpack.c.h.b16 %v2438
  %v3001 = vunpack.c.l.b16 %v2439
  %v3002 = vunpack.c.h.b16 %v2439
  %v3003 = vunpack.c.l.b16 %v2440
  %v3004 = vunpack.c.h.b16 %v2440
  %v3005 = vunpack.c.l.b16 %v2441
  %v3006 = vunpack.c.l.b16 %v2442
  %v3007 = vunpack.c.h.b16 %v2442
  %v3008 = vunpack.c.l.b16 %v2443
  %v3009 = vunpack.c.h.b16 %v2443
  %v3010 = vunpack.c.l.b16 %v2444
  %v3011 = vunpack.c.h.b16 %v2444
  %v3012 = vunpack.c.l.b16 %v2445
  %v3013 = vunpack.c.l.b16 %v2446
  %v3014 = vunpack.c.h.b16 %v2446
  %v3015 = vunpack.c.l.b16 %v2447
  %v3016 = vunpack.c.h.b16 %v2447
  %v3017 = vunpack.c.l.b16 %v2448
  %v3018 = vunpack.c.h.b16 %v2448
  %v3019 = vunpack.c.l.b16 %v2449
  %v3020 = vunpack.c.l.b16 %v2450
  %v3021 = vunpack.c.h.b16 %v2450
  %v3022 = vunpack.c.l.b16 %v2451
  %v3023 = vunpack.c.h.b16 %v2451
  %v3024 = vunpack.c.l.b16 %v2452
  %v3025 = vunpack.c.h.b16 %v2452
  %v3026 = vunpack.c.l.b16 %v2453
  %v3027 = vunpack.c.l.b16 %v2454
  %v3028 = vunpack.c.h.b16 %v2454
  %v3029 = vunpack.c.l.b16 %v2455
  %v3030 = vunpack.c.h.b16 %v2455
  %v3031 = vunpack.c.l.b16 %v2456
  %v3032 = vunpack.c.h.b16 %v2456
  %v3033 = vunpack.c.l.b16 %v2457
  %v3034 = vunpack.c.l.b16 %v2458
  %v3035 = vunpack.c.h.b16 %v2458
  %v3036 = vunpack.c.l.b16 %v2459
  %v3037 = vunpack.c.h.b16 %v2459
  %v3038 = vunpack.c.l.b16 %v2460
  %v3039 = vunpack.c.h.b16 %v2460
  %v3040 = vunpack.c.l.b16 %v2461
  %v3041 = vunpack.c.l.b16 %v2462
  %v3042 = vunpack.c.h.b16 %v2462
  %v3043 = vunpack.c.l.b16 %v2463
  %v3044 = vunpack.c.h.b16 %v2463
  %v3045 = vunpack.c.l.b16 %v2464
  %v3046 = vunpack.c.h.b16 %v2464
  %v3047 = vunpack.c.l.b16 %v2465
  %v3048 = vunpack.c.l.b16 %v2466
  %v3049 = vunpack.c.h.b16 %v2466
  %v3050 = vunpack.c.l.b16 %v2467
  %v3051 = vunpack.c.h.b16 %v2467
  %v3052 = vunpack.c.l.b16 %v2468
  %v3053 = vunpack.c.h.b16 %v2468
  %v3054 = vunpack.c.l.b16 %v2469
  %v3055 = vunpack.c.l.b16 %v2470
  %v3056 = vunpack.c.h.b16 %v2470
  %v3057 = vunpack.c.l.b16 %v2471
  %v3058 = vunpack.c.h.b16 %v2471
  %v3059 = vunpack.c.l.b16 %v2472
  %v3060 = vunpack.c.h.b16 %v2472
  %v3061 = vunpack.c.l.b16 %v2473
  %v3062 = vunpack.c.l.b16 %v2474
  %v3063 = vunpack.c.h.b16 %v2474
  %v3064 = vunpack.c.l.b16 %v2475
  %v3065 = vunpack.c.h.b16 %v2475
  %v3066 = vunpack.c.l.b16 %v2476
  %v3067 = vunpack.c.h.b16 %v2476
  %v3068 = vunpack.c.l.b16 %v2477
  %v3069 = vunpack.c.l.b16 %v2478
  %v3070 = vunpack.c.h.b16 %v2478
  %v3071 = vunpack.c.l.b16 %v2479
  %v3072 = vunpack.c.h.b16 %v2479
  %v3073 = vunpack.c.l.b16 %v2480
  %v3074 = vunpack.c.h.b16 %v2480
  %v3075 = vunpack.c.l.b16 %v2481
  %v3076 = vunpack.c.l.b16 %v2482
  %v3077 = vunpack.c.h.b16 %v2482
  %v3078 = vunpack.c.l.b16 %v2483
  %v3079 = vunpack.c.h.b16 %v2483
  %v3080 = vunpack.c.l.b16 %v2484
  %v3081 = vunpack.c.h.b16 %v2484
  %v3082 = vunpack.c.l.b16 %v2485
  %v3083 = vunpack.c.l.b16 %v2486
  %v3084 = vunpack.c.h.b16 %v2486
  %v3085 = vunpack.c.l.b16 %v2487
  %v3086 = vunpack.c.h.b16 %v2487
  %v3087 = vunpack.c.l.b16 %v2488
  %v3088 = vunpack.c.h.b16 %v2488
  %v3089 = vunpack.c.l.b16 %v2489
  %v3090 = vunpack.c.l.b16 %v2490
  %v3091 = vunpack.c.h.b16 %v2490
  %v3092 = vunpack.c.l.b16 %v2491
  %v3093 = vunpack.c.h.b16 %v2491
  %v3094 = vunpack.c.l.b16 %v2492
  %v3095 = vunpack.c.h.b16 %v2492
  %v3096 = vunpack.c.l.b16 %v2493
  %v3097 = vunpack.c.l.b16 %v2494
  %v3098 = vunpack.c.h.b16 %v2494
  %v3099 = vunpack.c.l.b16 %v2495
  %v3100 = vunpack.c.h.b16 %v2495
  %v3101 = vunpack.c.l.b16 %v2496
  %v3102 = vunpack.c.h.b16 %v2496
  %v3103 = vunpack.c.l.b16 %v2497
  %v3104 = vunpack.c.l.b16 %v2498
  %v3105 = vunpack.c.h.b16 %v2498
  %v3106 = vunpack.c.l.b16 %v2499
  %v3107 = vunpack.c.h.b16 %v2499
  %v3108 = vunpack.c.l.b16 %v2500
  %v3109 = vunpack.c.h.b16 %v2500
  %v3110 = vunpack.c.l.b16 %v2501
  %v3111 = vunpack.c.l.b16 %v2502
  %v3112 = vunpack.c.h.b16 %v2502
  %v3113 = vunpack.c.l.b16 %v2503
  %v3114 = vunpack.c.h.b16 %v2503
  %v3115 = vunpack.c.l.b16 %v2504
  %v3116 = vunpack.c.h.b16 %v2504
  %v3117 = vunpack.c.l.b16 %v2505
  %v3118 = vunpack.c.l.b16 %v2506
  %v3119 = vunpack.c.h.b16 %v2506
  %v3120 = vunpack.c.l.b16 %v2507
  %v3121 = vunpack.c.h.b16 %v2507
  %v3122 = vunpack.c.l.b16 %v2508
  %v3123 = vunpack.c.h.b16 %v2508
  %v3124 = vunpack.c.l.b16 %v2509
  %v3125 = vunpack.c.l.b16 %v2510
  %v3126 = vunpack.c.h.b16 %v2510
  %v3127 = vunpack.c.l.b16 %v2511
  %v3128 = vunpack.c.h.b16 %v2511
  %v3129 = vunpack.c.l.b16 %v2512
  %v3130 = vunpack.c.h.b16 %v2512
  %v3131 = vunpack.c.l.b16 %v2513
  %v3132 = vunpack.c.l.b16 %v2514
  %v3133 = vunpack.c.h.b16 %v2514
  %v3134 = vunpack.c.l.b16 %v2515
  %v3135 = vunpack.c.h.b16 %v2515
  %v3136 = vunpack.c.l.b16 %v2516
  %v3137 = vunpack.c.h.b16 %v2516
  %v3138 = vunpack.c.l.b16 %v2517
  %v3139 = vunpack.c.l.b16 %v2518
  %v3140 = vunpack.c.h.b16 %v2518
  %v3141 = vunpack.c.l.b16 %v2519
  %v3142 = vunpack.c.h.b16 %v2519
  %v3143 = vunpack.c.l.b16 %v2520
  %v3144 = vunpack.c.h.b16 %v2520
  %v3145 = vunpack.c.l.b16 %v2521
  %v3146 = vunpack.c.l.b16 %v2522
  %v3147 = vunpack.c.h.b16 %v2522
  %v3148 = vunpack.c.l.b16 %v2523
  %v3149 = vunpack.c.h.b16 %v2523
  %v3150 = vunpack.c.l.b16 %v2524
  %v3151 = vunpack.c.h.b16 %v2524
  %v3152 = vunpack.c.l.b16 %v2525
  %v3153 = vunpack.c.l.b16 %v2526
  %v3154 = vunpack.c.h.b16 %v2526
  %v3155 = vunpack.c.l.b16 %v2527
  %v3156 = vunpack.c.h.b16 %v2527
  %v3157 = vunpack.c.l.b16 %v2528
  %v3158 = vunpack.c.h.b16 %v2528
  %v3159 = vunpack.c.l.b16 %v2529
  %v3160 = vunpack.c.l.b16 %v2530
  %v3161 = vunpack.c.h.b16 %v2530
  %v3162 = vunpack.c.l.b16 %v2531
  %v3163 = vunpack.c.h.b16 %v2531
  %v3164 = vunpack.c.l.b16 %v2532
  %v3165 = vunpack.c.h.b16 %v2532
  %v3166 = vunpack.c.l.b16 %v2533
  %v3167 = vunpack.c.l.b16 %v2534
  %v3168 = vunpack.c.h.b16 %v2534
  %v3169 = vunpack.c.l.b16 %v2535
  %v3170 = vunpack.c.h.b16 %v2535
  %v3171 = vunpack.c.l.b16 %v2536
  %v3172 = vunpack.c.h.b16 %v2536
  %v3173 = vunpack.c.l.b16 %v2537
  %v3174 = vunpack.c.l.b16 %v2538
  %v3175 = vunpack.c.h.b16 %v2538
  %v3176 = vunpack.c.l.b16 %v2539
  %v3177 = vunpack.c.h.b16 %v2539
  %v3178 = vunpack.c.l.b16 %v2540
  %v3179 = vunpack.c.h.b16 %v2540
  %v3180 = vunpack.c.l.b16 %v2541
  %v3181 = vunpack.c.l.b16 %v2542
  %v3182 = vunpack.c.h.b16 %v2542
  %v3183 = vunpack.c.l.b16 %v2543
  %v3184 = vunpack.c.h.b16 %v2543
  %v3185 = vunpack.c.l.b16 %v2544
  %v3186 = vunpack.c.h.b16 %v2544
  %v3187 = vunpack.c.l.b16 %v2545
  %v3188 = vunpack.c.l.b16 %v2546
  %v3189 = vunpack.c.h.b16 %v2546
  %v3190 = vunpack.c.l.b16 %v2547
  %v3191 = vunpack.c.h.b16 %v2547
  %v3192 = vunpack.c.l.b16 %v2548
  %v3193 = vunpack.c.h.b16 %v2548
  %v3194 = vunpack.c.l.b16 %v2549
  %v3195 = vunpack.c.l.b16 %v2550
  %v3196 = vunpack.c.h.b16 %v2550
  %v3197 = vunpack.c.l.b16 %v2551
  %v3198 = vunpack.c.h.b16 %v2551
  %v3199 = vunpack.c.l.b16 %v2552
  %v3200 = vunpack.c.h.b16 %v2552
  %v3201 = vunpack.c.l.b16 %v2553
  %v3202 = vunpack.c.l.b16 %v2554
  %v3203 = vunpack.c.h.b16 %v2554
  %v3204 = vunpack.c.l.b16 %v2555
  %v3205 = vunpack.c.h.b16 %v2555
  %v3206 = vunpack.c.l.b16 %v2556
  %v3207 = vunpack.c.h.b16 %v2556
  %v3208 = vunpack.c.l.b16 %v2557
  %v3209 = vunpack.c.l.b16 %v2558
  %v3210 = vunpack.c.h.b16 %v2558
  %v3211 = vunpack.c.l.b16 %v2559
  %v3212 = vunpack.c.h.b16 %v2559
  %v3213 = vunpack.c.l.b16 %v2560
  %v3214 = vunpack.c.h.b16 %v2560
  %v3215 = vunpack.c.l.b16 %v2561
  %v3216 = vunpack.c.l.b16 %v2562
  %v3217 = vunpack.c.h.b16 %v2562
  %v3218 = vunpack.c.l.b16 %v2563
  %v3219 = vunpack.c.h.b16 %v2563
  %v3220 = vunpack.c.l.b16 %v2564
  %v3221 = vunpack.c.h.b16 %v2564
  %v3222 = vunpack.c.l.b16 %v2565
  %v3223 = vunpack.c.l.b16 %v2566
  %v3224 = vunpack.c.h.b16 %v2566
  %v3225 = vunpack.c.l.b16 %v2567
  %v3226 = vunpack.c.h.b16 %v2567
  %v3227 = vunpack.c.l.b16 %v2568
  %v3228 = vunpack.c.h.b16 %v2568
  %v3229 = vunpack.c.l.b16 %v2569
  %v3230 = vunpack.c.l.b16 %v2570
  %v3231 = vunpack.c.h.b16 %v2570
  %v3232 = vunpack.c.l.b16 %v2571
  %v3233 = vunpack.c.h.b16 %v2571
  %v3234 = vunpack.c.l.b16 %v2572
  %v3235 = vunpack.c.h.b16 %v2572
  %v3236 = vunpack.c.l.b16 %v2573
  %v3237 = vunpack.c.l.b16 %v2574
  %v3238 = vunpack.c.h.b16 %v2574
  %v3239 = vunpack.c.l.b16 %v2575
  %v3240 = vunpack.c.h.b16 %v2575
  %v3241 = vunpack.c.l.b16 %v2576
  %v3242 = vunpack.c.h.b16 %v2576
  %v3243 = vunpack.c.l.b16 %v2577
  %v3244 = vunpack.c.l.b16 %v2578
  %v3245 = vunpack.c.h.b16 %v2578
  %v3246 = vunpack.c.l.b16 %v2579
  %v3247 = vunpack.c.h.b16 %v2579
  %v3248 = vunpack.c.l.b16 %v2580
  %v3249 = vunpack.c.h.b16 %v2580
  %v3250 = vunpack.c.l.b16 %v2581
  %v3251 = vunpack.c.l.b16 %v2582
  %v3252 = vunpack.c.h.b16 %v2582
  %v3253 = vunpack.c.l.b16 %v2583
  %v3254 = vunpack.c.h.b16 %v2583
  %v3255 = vunpack.c.l.b16 %v2584
  %v3256 = vunpack.c.h.b16 %v2584
  %v3257 = vunpack.c.l.b16 %v2585
  %v3258 = vunpack.c.l.b16 %v2586
  %v3259 = vunpack.c.h.b16 %v2586
  %v3260 = vunpack.c.l.b16 %v2587
  %v3261 = vunpack.c.h.b16 %v2587
  %v3262 = vunpack.c.l.b16 %v2588
  %v3263 = vunpack.c.h.b16 %v2588
  %v3264 = vunpack.c.l.b16 %v2589
  %v3265 = vunpack.c.l.b16 %v2590
  %v3266 = vunpack.c.h.b16 %v2590
  %v3267 = vunpack.c.l.b16 %v2591
  %v3268 = vunpack.c.h.b16 %v2591
  %v3269 = vunpack.c.l.b16 %v2592
  %v3270 = vunpack.c.h.b16 %v2592
  %v3271 = vunpack.c.l.b16 %v2593
  %v3272 = vunpack.c.l.b16 %v2594
  %v3273 = vunpack.c.h.b16 %v2594
  %v3274 = vunpack.c.l.b16 %v2595
  %v3275 = vunpack.c.h.b16 %v2595
  %v3276 = vunpack.c.l.b16 %v2596
  %v3277 = vunpack.c.h.b16 %v2596
  %v3278 = vunpack.c.l.b16 %v2597
  %v3279 = vunpack.c.l.b16 %v2598
  %v3280 = vunpack.c.h.b16 %v2598
  %v3281 = vunpack.c.l.b16 %v2599
  %v3282 = vunpack.c.h.b16 %v2599
  %v3283 = vunpack.c.l.b16 %v2600
  %v3284 = vunpack.c.h.b16 %v2600
  %v3285 = vunpack.c.l.b16 %v2601
  %v3286 = vunpack.c.l.b16 %v2602
  %v3287 = vunpack.c.h.b16 %v2602
  %v3288 = vunpack.c.l.b16 %v2603
  %v3289 = vunpack.c.h.b16 %v2603
  %v3290 = vunpack.c.l.b16 %v2604
  %v3291 = vunpack.c.h.b16 %v2604
  %v3292 = vunpack.c.l.b16 %v2605
  %v3293 = vunpack.c.l.b16 %v2606
  %v3294 = vunpack.c.h.b16 %v2606
  %v3295 = vunpack.c.l.b16 %v2607
  %v3296 = vunpack.c.h.b16 %v2607
  %v3297 = vunpack.c.l.b16 %v2608
  %v3298 = vunpack.c.h.b16 %v2608
  %v3299 = vunpack.c.l.b16 %v2609
  %v3300 = vunpack.c.l.b16 %v2610
  %v3301 = vunpack.c.h.b16 %v2610
  %v3302 = vunpack.c.l.b16 %v2611
  %v3303 = vunpack.c.h.b16 %v2611
  %v3304 = vunpack.c.l.b16 %v2612
  %v3305 = vunpack.c.h.b16 %v2612
  %v3306 = vunpack.c.l.b16 %v2613
  %v3307 = vunpack.c.l.b16 %v2614
  %v3308 = vunpack.c.h.b16 %v2614
  %v3309 = vunpack.c.l.b16 %v2615
  %v3310 = vunpack.c.h.b16 %v2615
  %v3311 = vunpack.c.l.b16 %v2616
  %v3312 = vunpack.c.h.b16 %v2616
  %v3313 = vunpack.c.l.b16 %v2617
  %v3314 = vunpack.c.l.b16 %v2618
  %v3315 = vunpack.c.h.b16 %v2618
  %v3316 = vunpack.c.l.b16 %v2619
  %v3317 = vunpack.c.h.b16 %v2619
  %v3318 = vunpack.c.l.b16 %v2620
  %v3319 = vunpack.c.h.b16 %v2620
  %v3320 = vunpack.c.l.b16 %v2621
  %v3321 = vunpack.c.l.b16 %v2622
  %v3322 = vunpack.c.h.b16 %v2622
  %v3323 = vunpack.c.l.b16 %v2623
  %v3324 = vunpack.c.h.b16 %v2623
  %v3325 = vunpack.c.l.b16 %v2624
  %v3326 = vunpack.c.h.b16 %v2624
  %v3327 = vunpack.c.l.b16 %v2625
  %v3328 = vunpack.c.l.b16 %v2626
  %v3329 = vunpack.c.h.b16 %v2626
  %v3330 = vunpack.c.l.b16 %v2627
  %v3331 = vunpack.c.h.b16 %v2627
  %v3332 = vunpack.c.l.b16 %v2628
  %v3333 = vunpack.c.h.b16 %v2628
  %v3334 = vunpack.c.l.b16 %v2629
  %v3335 = vunpack.c.l.b16 %v2630
  %v3336 = vunpack.c.h.b16 %v2630
  %v3337 = vunpack.c.l.b16 %v2631
  %v3338 = vunpack.c.h.b16 %v2631
  %v3339 = vunpack.c.l.b16 %v2632
  %v3340 = vunpack.c.h.b16 %v2632
  %v3341 = vunpack.c.l.b16 %v2633
  %v3342 = vunpack.c.l.b16 %v2634
  %v3343 = vunpack.c.h.b16 %v2634
  %v3344 = vunpack.c.l.b16 %v2635
  %v3345 = vunpack.c.h.b16 %v2635
  %v3346 = vunpack.c.l.b16 %v2636
  %v3347 = vunpack.c.h.b16 %v2636
  %v3348 = vunpack.c.l.b16 %v2637
  %v3349 = vunpack.c.l.b16 %v2638
  %v3350 = vunpack.c.h.b16 %v2638
  %v3351 = vunpack.c.l.b16 %v2639
  %v3352 = vunpack.c.h.b16 %v2639
  %v3353 = vunpack.c.l.b16 %v2640
  %v3354 = vunpack.c.h.b16 %v2640
  %v3355 = vunpack.c.l.b16 %v2641
  %v3356 = vunpack.c.l.b16 %v2642
  %v3357 = vunpack.c.h.b16 %v2642
  %v3358 = vunpack.c.l.b16 %v2643
  %v3359 = vunpack.c.h.b16 %v2643
  %v3360 = vunpack.c.l.b16 %v2644
  %v3361 = vunpack.c.h.b16 %v2644
  %v3362 = vunpack.c.l.b16 %v2645
  %v3363 = vunpack.c.l.b16 %v2646
  %v3364 = vunpack.c.h.b16 %v2646
  %v3365 = vunpack.c.l.b16 %v2647
  %v3366 = vunpack.c.h.b16 %v2647
  %v3367 = vunpack.c.l.b16 %v2648
  %v3368 = vunpack.c.h.b16 %v2648
  %v3369 = vunpack.c.l.b16 %v2649
  %v3370 = vunpack.c.l.b16 %v2650
  %v3371 = vunpack.c.h.b16 %v2650
  %v3372 = vunpack.c.l.b16 %v2651
  %v3373 = vunpack.c.h.b16 %v2651
  %v3374 = vunpack.c.l.b16 %v2652
  %v3375 = vunpack.c.h.b16 %v2652
  %v3376 = vunpack.c.l.b16 %v2653
  %v3377 = vunpack.c.l.b16 %v2654
  %v3378 = vunpack.c.h.b16 %v2654
  %v3379 = vunpack.c.l.b16 %v2655
  %v3380 = vunpack.c.h.b16 %v2655
  %v3381 = vunpack.c.l.b16 %v2656
  %v3382 = vunpack.c.h.b16 %v2656
  %v3383 = vunpack.c.l.b16 %v2657
  %v3384 = vunpack.c.l.b16 %v2658
  %v3385 = vunpack.c.h.b16 %v2658
  %v3386 = vunpack.c.l.b16 %v2659
  %v3387 = vunpack.c.h.b16 %v2659
  %v3388 = vunpack.c.l.b16 %v2660
  %v3389 = vunpack.c.h.b16 %v2660
  %v3390 = vunpack.c.l.b16 %v2661
  %v3391 = vunpack.c.l.b16 %v2662
  %v3392 = vunpack.c.h.b16 %v2662
  %v3393 = vunpack.c.l.b16 %v2663
  %v3394 = vunpack.c.h.b16 %v2663
  %v3395 = vunpack.c.l.b16 %v2664
  %v3396 = vunpack.c.h.b16 %v2664
  %v3397 = vunpack.c.l.b16 %v2665
  %v3398 = vunpack.c.l.b16 %v2666
  %v3399 = vunpack.c.h.b16 %v2666
  %v3400 = vunpack.c.l.b16 %v2667
  %v3401 = vunpack.c.h.b16 %v2667
  %v3402 = vunpack.c.l.b16 %v2668
  %v3403 = vunpack.c.h.b16 %v2668
  %v3404 = vunpack.c.l.b16 %v2669
  %v3405 = vunpack.c.l.b16 %v2670
  %v3406 = vunpack.c.h.b16 %v2670
  %v3407 = vunpack.c.l.b16 %v2671
  %v3408 = vunpack.c.h.b16 %v2671
  %v3409 = vunpack.c.l.b16 %v2672
  %v3410 = vunpack.c.h.b16 %v2672
  %v3411 = vunpack.c.l.b16 %v2673
  %v3412 = vunpack.c.l.b16 %v2674
  %v3413 = vunpack.c.h.b16 %v2674
  %v3414 = vunpack.c.l.b16 %v2675
  %v3415 = vunpack.c.h.b16 %v2675
  %v3416 = vunpack.c.l.b16 %v2676
  %v3417 = vunpack.c.h.b16 %v2676
  %v3418 = vunpack.c.l.b16 %v2677
  %v3419 = vpack.c.b16 %v2978, %v2971
  %v3420 = vpack.c.b16 %v2979, %v2972
  %v3421 = vpack.c.b16 %v2980, %v2973
  %v3422 = vpack.c.b16 %v2981, %v2974
  %v3423 = vpack.c.b16 %v2982, %v2975
  %v3424 = vpack.c.b16 %v2983, %v2976
  %v3425 = vpack.c.b16 %v2984, %v2977
  %v3426 = vpack.c.b16 %v2992, %v2985
  %v3427 = vpack.c.b16 %v2993, %v2986
  %v3428 = vpack.c.b16 %v2994, %v2987
  %v3429 = vpack.c.b16 %v2995, %v2988
  %v3430 = vpack.c.b16 %v2996, %v2989
  %v3431 = vpack.c.b16 %v2997, %v2990
  %v3432 = vpack.c.b16 %v2998, %v2991
  %v3433 = vpack.c.b16 %v3006, %v2999
  %v3434 = vpack.c.b16 %v3007, %v3000
  %v3435 = vpack.c.b16 %v3008, %v3001
  %v3436 = vpack.c.b16 %v3009, %v3002
  %v3437 = vpack.c.b16 %v3010, %v3003
  %v3438 = vpack.c.b16 %v3011, %v3004
  %v3439 = vpack.c.b16 %v3012, %v3005
  %v3440 = vpack.c.b16 %v3020, %v3013
  %v3441 = vpack.c.b16 %v3021, %v3014
  %v3442 = vpack.c.b16 %v3022, %v3015
  %v3443 = vpack.c.b16 %v3023, %v3016
  %v3444 = vpack.c.b16 %v3024, %v3017
  %v3445 = vpack.c.b16 %v3025, %v3018
  %v3446 = vpack.c.b16 %v3026, %v3019
  %v3447 = vpack.c.b16 %v3034, %v3027
  %v3448 = vpack.c.b16 %v3035, %v3028
  %v3449 = vpack.c.b16 %v3036, %v3029
  %v3450 = vpack.c.b16 %v3037, %v3030
  %v3451 = vpack.c.b16 %v3038, %v3031
  %v3452 = vpack.c.b16 %v3039, %v3032
  %v3453 = vpack.c.b16 %v3040, %v3033
  %v3454 = vpack.c.b16 %v3048, %v3041
  %v3455 = vpack.c.b16 %v3049, %v3042
  %v3456 = vpack.c.b16 %v3050, %v3043
  %v3457 = vpack.c.b16 %v3051, %v3044
  %v3458 = vpack.c.b16 %v3052, %v3045
  %v3459 = vpack.c.b16 %v3053, %v3046
  %v3460 = vpack.c.b16 %v3054, %v3047
  %v3461 = vpack.c.b16 %v3062, %v3055
  %v3462 = vpack.c.b16 %v3063, %v3056
  %v3463 = vpack.c.b16 %v3064, %v3057
  %v3464 = vpack.c.b16 %v3065, %v3058
  %v3465 = vpack.c.b16 %v3066, %v3059
  %v3466 = vpack.c.b16 %v3067, %v3060
  %v3467 = vpack.c.b16 %v3068, %v3061
  %v3468 = vpack.c.b16 %v3076, %v3069
  %v3469 = vpack.c.b16 %v3077, %v3070
  %v3470 = vpack.c.b16 %v3078, %v3071
  %v3471 = vpack.c.b16 %v3079, %v3072
  %v3472 = vpack.c.b16 %v3080, %v3073
  %v3473 = vpack.c.b16 %v3081, %v3074
  %v3474 = vpack.c.b16 %v3082, %v3075
  %v3475 = vpack.c.b16 %v3090, %v3083
  %v3476 = vpack.c.b16 %v3091, %v3084
  %v3477 = vpack.c.b16 %v3092, %v3085
  %v3478 = vpack.c.b16 %v3093, %v3086
  %v3479 = vpack.c.b16 %v3094, %v3087
  %v3480 = vpack.c.b16 %v3095, %v3088
  %v3481 = vpack.c.b16 %v3096, %v3089
  %v3482 = vpack.c.b16 %v3104, %v3097
  %v3483 = vpack.c.b16 %v3105, %v3098
  %v3484 = vpack.c.b16 %v3106, %v3099
  %v3485 = vpack.c.b16 %v3107, %v3100
  %v3486 = vpack.c.b16 %v3108, %v3101
  %v3487 = vpack.c.b16 %v3109, %v3102
  %v3488 = vpack.c.b16 %v3110, %v3103
  %v3489 = vpack.c.b16 %v3118, %v3111
  %v3490 = vpack.c.b16 %v3119, %v3112
  %v3491 = vpack.c.b16 %v3120, %v3113
  %v3492 = vpack.c.b16 %v3121, %v3114
  %v3493 = vpack.c.b16 %v3122, %v3115
  %v3494 = vpack.c.b16 %v3123, %v3116
  %v3495 = vpack.c.b16 %v3124, %v3117
  %v3496 = vpack.c.b16 %v3132, %v3125
  %v3497 = vpack.c.b16 %v3133, %v3126
  %v3498 = vpack.c.b16 %v3134, %v3127
  %v3499 = vpack.c.b16 %v3135, %v3128
  %v3500 = vpack.c.b16 %v3136, %v3129
  %v3501 = vpack.c.b16 %v3137, %v3130
  %v3502 = vpack.c.b16 %v3138, %v3131
  %v3503 = vpack.c.b16 %v3146, %v3139
  %v3504 = vpack.c.b16 %v3147, %v3140
  %v3505 = vpack.c.b16 %v3148, %v3141
  %v3506 = vpack.c.b16 %v3149, %v3142
  %v3507 = vpack.c.b16 %v3150, %v3143
  %v3508 = vpack.c.b16 %v3151, %v3144
  %v3509 = vpack.c.b16 %v3152, %v3145
  %v3510 = vpack.c.b16 %v3160, %v3153
  %v3511 = vpack.c.b16 %v3161, %v3154
  %v3512 = vpack.c.b16 %v3162, %v3155
  %v3513 = vpack.c.b16 %v3163, %v3156
  %v3514 = vpack.c.b16 %v3164, %v3157
  %v3515 = vpack.c.b16 %v3165, %v3158
  %v3516 = vpack.c.b16 %v3166, %v3159
  %v3517 = vpack.c.b16 %v3174, %v3167
  %v3518 = vpack.c.b16 %v3175, %v3168
  %v3519 = vpack.c.b16 %v3176, %v3169
  %v3520 = vpack.c.b16 %v3177, %v3170
  %v3521 = vpack.c.b16 %v3178, %v3171
  %v3522 = vpack.c.b16 %v3179, %v3172
  %v3523 = vpack.c.b16 %v3180, %v3173
  %v3524 = vpack.c.b16 %v3188, %v3181
  %v3525 = vpack.c.b16 %v3189, %v3182
  %v3526 = vpack.c.b16 %v3190, %v3183
  %v3527 = vpack.c.b16 %v3191, %v3184
  %v3528 = vpack.c.b16 %v3192, %v3185
  %v3529 = vpack.c.b16 %v3193, %v3186
  %v3530 = vpack.c.b16 %v3194, %v3187
  %v3531 = vpack.c.b16 %v3202, %v3195
  %v3532 = vpack.c.b16 %v3203, %v3196
  %v3533 = vpack.c.b16 %v3204, %v3197
  %v3534 = vpack.c.b16 %v3205, %v3198
  %v3535 = vpack.c.b16 %v3206, %v3199
  %v3536 = vpack.c.b16 %v3207, %v3200
  %v3537 = vpack.c.b16 %v3208, %v3201
  %v3538 = vpack.c.b16 %v3216, %v3209
  %v3539 = vpack.c.b16 %v3217, %v3210
  %v3540 = vpack.c.b16 %v3218, %v3211
  %v3541 = vpack.c.b16 %v3219, %v3212
  %v3542 = vpack.c.b16 %v3220, %v3213
  %v3543 = vpack.c.b16 %v3221, %v3214
  %v3544 = vpack.c.b16 %v3222, %v3215
  %v3545 = vpack.c.b16 %v3230, %v3223
  %v3546 = vpack.c.b16 %v3231, %v3224
  %v3547 = vpack.c.b16 %v3232, %v3225
  %v3548 = vpack.c.b16 %v3233, %v3226
  %v3549 = vpack.c.b16 %v3234, %v3227
  %v3550 = vpack.c.b16 %v3235, %v3228
  %v3551 = vpack.c.b16 %v3236, %v3229
  %v3552 = vpack.c.b16 %v3244, %v3237
  %v3553 = vpack.c.b16 %v3245, %v3238
  %v3554 = vpack.c.b16 %v3246, %v3239
  %v3555 = vpack.c.b16 %v3247, %v3240
  %v3556 = vpack.c.b16 %v3248, %v3241
  %v3557 = vpack.c.b16 %v3249, %v3242
  %v3558 = vpack.c.b16 %v3250, %v3243
  %v3559 = vpack.c.b16 %v3258, %v3251
  %v3560 = vpack.c.b16 %v3259, %v3252
  %v3561 = vpack.c.b16 %v3260, %v3253
  %v3562 = vpack.c.b16 %v3261, %v3254
  %v3563 = vpack.c.b16 %v3262, %v3255
  %v3564 = vpack.c.b16 %v3263, %v3256
  %v3565 = vpack.c.b16 %v3264, %v3257
  %v3566 = vpack.c.b16 %v3272, %v3265
  %v3567 = vpack.c.b16 %v3273, %v3266
  %v3568 = vpack.c.b16 %v3274, %v3267
  %v3569 = vpack.c.b16 %v3275, %v3268
  %v3570 = vpack.c.b16 %v3276, %v3269
  %v3571 = vpack.c.b16 %v3277, %v3270
  %v3572 = vpack.c.b16 %v3278, %v3271
  %v3573 = vpack.c.b16 %v3286, %v3279
  %v3574 = vpack.c.b16 %v3287, %v3280
  %v3575 = vpack.c.b16 %v3288, %v3281
  %v3576 = vpack.c.b16 %v3289, %v3282
  %v3577 = vpack.c.b16 %v3290, %v3283
  %v3578 = vpack.c.b16 %v3291, %v3284
  %v3579 = vpack.c.b16 %v3292, %v3285
  %v3580 = vpack.c.b16 %v3300, %v3293
  %v3581 = vpack.c.b16 %v3301, %v3294
  %v3582 = vpack.c.b16 %v3302, %v3295
  %v3583 = vpack.c.b16 %v3303, %v3296
  %v3584 = vpack.c.b16 %v3304, %v3297
  %v3585 = vpack.c.b16 %v3305, %v3298
  %v3586 = vpack.c.b16 %v3306, %v3299
  %v3587 = vpack.c.b16 %v3314, %v3307
  %v3588 = vpack.c.b16 %v3315, %v3308
  %v3589 = vpack.c.b16 %v3316, %v3309
  %v3590 = vpack.c.b16 %v3317, %v3310
  %v3591 = vpack.c.b16 %v3318, %v3311
  %v3592 = vpack.c.b16 %v3319, %v3312
  %v3593 = vpack.c.b16 %v3320, %v3313
  %v3594 = vpack.c.b16 %v3328, %v3321
  %v3595 = vpack.c.b16 %v3329, %v3322
  %v3596 = vpack.c.b16 %v3330, %v3323
  %v3597 = vpack.c.b16 %v3331, %v3324
  %v3598 = vpack.c.b16 %v3332, %v3325
  %v3599 = vpack.c.b16 %v3333, %v3326
  %v3600 = vpack.c.b16 %v3334, %v3327
  %v3601 = vpack.c.b16 %v3342, %v3335
  %v3602 = vpack.c.b16 %v3343, %v3336
  %v3603 = vpack.c.b16 %v3344, %v3337
  %v3604 = vpack.c.b16 %v3345, %v3338
  %v3605 = vpack.c.b16 %v3346, %v3339
  %v3606 = vpack.c.b16 %v3347, %v3340
  %v3607 = vpack.c.b16 %v3348, %v3341
  %v3608 = vpack.c.b16 %v3356, %v3349
  %v3609 = vpack.c.b16 %v3357, %v3350
  %v3610 = vpack.c.b16 %v3358, %v3351
  %v3611 = vpack.c.b16 %v3359, %v3352
  %v3612 = vpack.c.b16 %v3360, %v3353
  %v3613 = vpack.c.b16 %v3361, %v3354
  %v3614 = vpack.c.b16 %v3362, %v3355
  %v3615 = vpack.c.b16 %v3370, %v3363
  %v3616 = vpack.c.b16 %v3371, %v3364
  %v3617 = vpack.c.b16 %v3372, %v3365
  %v3618 = vpack.c.b16 %v3373, %v3366
  %v3619 = vpack.c.b16 %v3374, %v3367
  %v3620 = vpack.c.b16 %v3375, %v3368
  %v3621 = vpack.c.b16 %v3376, %v3369
  %v3622 = vpack.c.b16 %v3384, %v3377
  %v3623 = vpack.c.b16 %v3385, %v3378
  %v3624 = vpack.c.b16 %v3386, %v3379
  %v3625 = vpack.c.b16 %v3387, %v3380
  %v3626 = vpack.c.b16 %v3388, %v3381
  %v3627 = vpack.c.b16 %v3389, %v3382
  %v3628 = vpack.c.b16 %v3390, %v3383
  %v3629 = vpack.c.b16 %v3398, %v3391
  %v3630 = vpack.c.b16 %v3399, %v3392
  %v3631 = vpack.c.b16 %v3400, %v3393
  %v3632 = vpack.c.b16 %v3401, %v3394
  %v3633 = vpack.c.b16 %v3402, %v3395
  %v3634 = vpack.c.b16 %v3403, %v3396
  %v3635 = vpack.c.b16 %v3404, %v3397
  %v3636 = vpack.c.b16 %v3412, %v3405
  %v3637 = vpack.c.b16 %v3413, %v3406
  %v3638 = vpack.c.b16 %v3414, %v3407
  %v3639 = vpack.c.b16 %v3415, %v3408
  %v3640 = vpack.c.b16 %v3416, %v3409
  %v3641 = vpack.c.b16 %v3417, %v3410
  %v3642 = vpack.c.b16 %v3418, %v3411
  %3867 = vmatprep.subr.bf16.mxu0 %v3469
  %3868 = vmatpush1.bf16.msra.mxu0 %v3468
  %3869 = vmatprep.subr.bf16.mxu0 %v3462
  %3870 = vmatpush1.bf16.msra.mxu0 %v3461
  %3871 = vmatprep.subr.bf16.mxu0 %v3455
  %3872 = vmatpush1.bf16.msra.mxu0 %v3454
  %3873 = vmatprep.subr.bf16.mxu0 %v3448
  %3874 = vmatpush1.bf16.msra.mxu0 %v3447
  %3875 = vmatprep.subr.bf16.mxu0 %v3441
  %3876 = vmatpush1.bf16.msra.mxu0 %v3440
  %3877 = vmatprep.subr.bf16.mxu0 %v3434
  %3878 = vmatpush1.bf16.msra.mxu0 %v3433
  %3879 = vmatprep.subr.bf16.mxu0 %v3427
  %3880 = vmatpush1.bf16.msra.mxu0 %v3426
  %3881 = vmatprep.subr.bf16.mxu0 %v3420
  %3882 = vmatpush1.bf16.msra.mxu0 %v3419
  %3883 = vmatprep.subr.bf16.mxu0 %v3525
  %3884 = vmatpush2.bf16.msra.mxu0 %v3524
  %3885 = vmatprep.subr.bf16.mxu0 %v3518
  %3886 = vmatpush2.bf16.msra.mxu0 %v3517
  %3887 = vmatprep.subr.bf16.mxu0 %v3511
  %3888 = vmatpush2.bf16.msra.mxu0 %v3510
  %3889 = vmatprep.subr.bf16.mxu0 %v3504
  %3890 = vmatpush2.bf16.msra.mxu0 %v3503
  %3891 = vmatprep.subr.bf16.mxu0 %v3497
  %3892 = vmatpush2.bf16.msra.mxu0 %v3496
  %3893 = vmatprep.subr.bf16.mxu0 %v3490
  %3894 = vmatpush2.bf16.msra.mxu0 %v3489
  %3895 = vmatprep.subr.bf16.mxu0 %v3483
  %3896 = vmatpush2.bf16.msra.mxu0 %v3482
  %3897 = vmatprep.subr.bf16.mxu0 %v3476
  %3898 = vmatpush2.bf16.msra.mxu0 %v3475
  %3899 = vmatprep.mubr.bf16.mxu0 %v2419
  %3900 = vmatmul.mubr.bf16.gmra.mxu0 %v2418
  %v3901 = vpop.f32.mrf.mxu0
  %v3902 = vadd.f32 %v2683, %v3901
  %v3903 = vpop.f32.mrf.mxu0
  %v3904 = vadd.f32 %v2687, %v3903
  %v3905 = vpop.f32.mrf.mxu0
  %v3906 = vadd.f32 %v2683, %v3905
  %v3907 = vpop.f32.mrf.mxu0
  %v3908 = vadd.f32 %v2687, %v3907
  %3909 = vdwg.mxu0
  %3910 = vmatprep.subr.bf16.mxu0 %v3581
  %3911 = vmatpush1.bf16.msra.mxu0 %v3580
  %3912 = vmatprep.subr.bf16.mxu0 %v3574
  %3913 = vmatpush1.bf16.msra.mxu0 %v3573
  %3914 = vmatprep.subr.bf16.mxu0 %v3567
  %3915 = vmatpush1.bf16.msra.mxu0 %v3566
  %3916 = vmatprep.subr.bf16.mxu0 %v3560
  %3917 = vmatpush1.bf16.msra.mxu0 %v3559
  %3918 = vmatprep.subr.bf16.mxu0 %v3553
  %3919 = vmatpush1.bf16.msra.mxu0 %v3552
  %3920 = vmatprep.subr.bf16.mxu0 %v3546
  %3921 = vmatpush1.bf16.msra.mxu0 %v3545
  %3922 = vmatprep.subr.bf16.mxu0 %v3539
  %3923 = vmatpush1.bf16.msra.mxu0 %v3538
  %3924 = vmatprep.subr.bf16.mxu0 %v3532
  %3925 = vmatpush1.bf16.msra.mxu0 %v3531
  %3926 = vmatprep.subr.bf16.mxu0 %v3637
  %3927 = vmatpush2.bf16.msra.mxu0 %v3636
  %3928 = vmatprep.subr.bf16.mxu0 %v3630
  %3929 = vmatpush2.bf16.msra.mxu0 %v3629
  %3930 = vmatprep.subr.bf16.mxu0 %v3623
  %3931 = vmatpush2.bf16.msra.mxu0 %v3622
  %3932 = vmatprep.subr.bf16.mxu0 %v3616
  %3933 = vmatpush2.bf16.msra.mxu0 %v3615
  %3934 = vmatprep.subr.bf16.mxu0 %v3609
  %3935 = vmatpush2.bf16.msra.mxu0 %v3608
  %3936 = vmatprep.subr.bf16.mxu0 %v3602
  %3937 = vmatpush2.bf16.msra.mxu0 %v3601
  %3938 = vmatprep.subr.bf16.mxu0 %v3595
  %3939 = vmatpush2.bf16.msra.mxu0 %v3594
  %3940 = vmatprep.subr.bf16.mxu0 %v3588
  %3941 = vmatpush2.bf16.msra.mxu0 %v3587
  %3942 = vmatprep.mubr.bf16.mxu0 %v2421
  %3943 = vmatmul.mubr.bf16.gmra.mxu0 %v2420
  %v3944 = vpop.f32.mrf.mxu0
  %v3945 = vadd.f32 %v3902, %v3944
  %v3946 = vpop.f32.mrf.mxu0
  %v3947 = vadd.f32 %v3904, %v3946
  %v3948 = vpop.f32.mrf.mxu0
  %v3949 = vadd.f32 %v3906, %v3948
  %v3950 = vpop.f32.mrf.mxu0
  %v3951 = vadd.f32 %v3908, %v3950
  %3952 = vdwg.mxu0
  %3953 = vmatprep.subr.bf16.mxu0 %v3471
  %3954 = vmatpush1.bf16.msra.mxu0 %v3470
  %3955 = vmatprep.subr.bf16.mxu0 %v3464
  %3956 = vmatpush1.bf16.msra.mxu0 %v3463
  %3957 = vmatprep.subr.bf16.mxu0 %v3457
  %3958 = vmatpush1.bf16.msra.mxu0 %v3456
  %3959 = vmatprep.subr.bf16.mxu0 %v3450
  %3960 = vmatpush1.bf16.msra.mxu0 %v3449
  %3961 = vmatprep.subr.bf16.mxu0 %v3443
  %3962 = vmatpush1.bf16.msra.mxu0 %v3442
  %3963 = vmatprep.subr.bf16.mxu0 %v3436
  %3964 = vmatpush1.bf16.msra.mxu0 %v3435
  %3965 = vmatprep.subr.bf16.mxu0 %v3429
  %3966 = vmatpush1.bf16.msra.mxu0 %v3428
  %3967 = vmatprep.subr.bf16.mxu0 %v3422
  %3968 = vmatpush1.bf16.msra.mxu0 %v3421
  %3969 = vmatprep.subr.bf16.mxu0 %v3527
  %3970 = vmatpush2.bf16.msra.mxu0 %v3526
  %3971 = vmatprep.subr.bf16.mxu0 %v3520
  %3972 = vmatpush2.bf16.msra.mxu0 %v3519
  %3973 = vmatprep.subr.bf16.mxu0 %v3513
  %3974 = vmatpush2.bf16.msra.mxu0 %v3512
  %3975 = vmatprep.subr.bf16.mxu0 %v3506
  %3976 = vmatpush2.bf16.msra.mxu0 %v3505
  %3977 = vmatprep.subr.bf16.mxu0 %v3499
  %3978 = vmatpush2.bf16.msra.mxu0 %v3498
  %3979 = vmatprep.subr.bf16.mxu0 %v3492
  %3980 = vmatpush2.bf16.msra.mxu0 %v3491
  %3981 = vmatprep.subr.bf16.mxu0 %v3485
  %3982 = vmatpush2.bf16.msra.mxu0 %v3484
  %3983 = vmatprep.subr.bf16.mxu0 %v3478
  %3984 = vmatpush2.bf16.msra.mxu0 %v3477
  %3985 = vmatprep.mubr.bf16.mxu0 %v2419
  %3986 = vmatmul.mubr.bf16.gmra.mxu0 %v2418
  %v3987 = vpop.f32.mrf.mxu0
  %v3988 = vadd.f32 %v2691, %v3987
  %v3989 = vpop.f32.mrf.mxu0
  %v3990 = vadd.f32 %v2695, %v3989
  %v3991 = vpop.f32.mrf.mxu0
  %v3992 = vadd.f32 %v2691, %v3991
  %v3993 = vpop.f32.mrf.mxu0
  %v3994 = vadd.f32 %v2695, %v3993
  %3995 = vdwg.mxu0
  %3996 = vmatprep.subr.bf16.mxu0 %v3583
  %3997 = vmatpush1.bf16.msra.mxu0 %v3582
  %3998 = vmatprep.subr.bf16.mxu0 %v3576
  %3999 = vmatpush1.bf16.msra.mxu0 %v3575
  %4000 = vmatprep.subr.bf16.mxu0 %v3569
  %4001 = vmatpush1.bf16.msra.mxu0 %v3568
  %4002 = vmatprep.subr.bf16.mxu0 %v3562
  %4003 = vmatpush1.bf16.msra.mxu0 %v3561
  %4004 = vmatprep.subr.bf16.mxu0 %v3555
  %4005 = vmatpush1.bf16.msra.mxu0 %v3554
  %4006 = vmatprep.subr.bf16.mxu0 %v3548
  %4007 = vmatpush1.bf16.msra.mxu0 %v3547
  %4008 = vmatprep.subr.bf16.mxu0 %v3541
  %4009 = vmatpush1.bf16.msra.mxu0 %v3540
  %4010 = vmatprep.subr.bf16.mxu0 %v3534
  %4011 = vmatpush1.bf16.msra.mxu0 %v3533
  %4012 = vmatprep.subr.bf16.mxu0 %v3639
  %4013 = vmatpush2.bf16.msra.mxu0 %v3638
  %4014 = vmatprep.subr.bf16.mxu0 %v3632
  %4015 = vmatpush2.bf16.msra.mxu0 %v3631
  %4016 = vmatprep.subr.bf16.mxu0 %v3625
  %4017 = vmatpush2.bf16.msra.mxu0 %v3624
  %4018 = vmatprep.subr.bf16.mxu0 %v3618
  %4019 = vmatpush2.bf16.msra.mxu0 %v3617
  %4020 = vmatprep.subr.bf16.mxu0 %v3611
  %4021 = vmatpush2.bf16.msra.mxu0 %v3610
  %4022 = vmatprep.subr.bf16.mxu0 %v3604
  %4023 = vmatpush2.bf16.msra.mxu0 %v3603
  %4024 = vmatprep.subr.bf16.mxu0 %v3597
  %4025 = vmatpush2.bf16.msra.mxu0 %v3596
  %4026 = vmatprep.subr.bf16.mxu0 %v3590
  %4027 = vmatpush2.bf16.msra.mxu0 %v3589
  %4028 = vmatprep.mubr.bf16.mxu0 %v2421
  %4029 = vmatmul.mubr.bf16.gmra.mxu0 %v2420
  %v4030 = vpop.f32.mrf.mxu0
  %v4031 = vadd.f32 %v3988, %v4030
  %v4032 = vpop.f32.mrf.mxu0
  %v4033 = vadd.f32 %v3990, %v4032
  %v4034 = vpop.f32.mrf.mxu0
  %v4035 = vadd.f32 %v3992, %v4034
  %v4036 = vpop.f32.mrf.mxu0
  %v4037 = vadd.f32 %v3994, %v4036
  %4038 = vdwg.mxu0
  %4039 = vmatprep.subr.bf16.mxu0 %v3473
  %4040 = vmatpush1.bf16.msra.mxu0 %v3472
  %4041 = vmatprep.subr.bf16.mxu0 %v3466
  %4042 = vmatpush1.bf16.msra.mxu0 %v3465
  %4043 = vmatprep.subr.bf16.mxu0 %v3459
  %4044 = vmatpush1.bf16.msra.mxu0 %v3458
  %4045 = vmatprep.subr.bf16.mxu0 %v3452
  %4046 = vmatpush1.bf16.msra.mxu0 %v3451
  %4047 = vmatprep.subr.bf16.mxu0 %v3445
  %4048 = vmatpush1.bf16.msra.mxu0 %v3444
  %4049 = vmatprep.subr.bf16.mxu0 %v3438
  %4050 = vmatpush1.bf16.msra.mxu0 %v3437
  %4051 = vmatprep.subr.bf16.mxu0 %v3431
  %4052 = vmatpush1.bf16.msra.mxu0 %v3430
  %4053 = vmatprep.subr.bf16.mxu0 %v3424
  %4054 = vmatpush1.bf16.msra.mxu0 %v3423
  %4055 = vmatprep.subr.bf16.mxu0 %v3529
  %4056 = vmatpush2.bf16.msra.mxu0 %v3528
  %4057 = vmatprep.subr.bf16.mxu0 %v3522
  %4058 = vmatpush2.bf16.msra.mxu0 %v3521
  %4059 = vmatprep.subr.bf16.mxu0 %v3515
  %4060 = vmatpush2.bf16.msra.mxu0 %v3514
  %4061 = vmatprep.subr.bf16.mxu0 %v3508
  %4062 = vmatpush2.bf16.msra.mxu0 %v3507
  %4063 = vmatprep.subr.bf16.mxu0 %v3501
  %4064 = vmatpush2.bf16.msra.mxu0 %v3500
  %4065 = vmatprep.subr.bf16.mxu0 %v3494
  %4066 = vmatpush2.bf16.msra.mxu0 %v3493
  %4067 = vmatprep.subr.bf16.mxu0 %v3487
  %4068 = vmatpush2.bf16.msra.mxu0 %v3486
  %4069 = vmatprep.subr.bf16.mxu0 %v3480
  %4070 = vmatpush2.bf16.msra.mxu0 %v3479
  %4071 = vmatprep.mubr.bf16.mxu0 %v2419
  %4072 = vmatmul.mubr.bf16.gmra.mxu0 %v2418
  %v4073 = vpop.f32.mrf.mxu0
  %v4074 = vadd.f32 %v2699, %v4073
  %v4075 = vpop.f32.mrf.mxu0
  %v4076 = vadd.f32 %v2703, %v4075
  %v4077 = vpop.f32.mrf.mxu0
  %v4078 = vadd.f32 %v2699, %v4077
  %v4079 = vpop.f32.mrf.mxu0
  %v4080 = vadd.f32 %v2703, %v4079
  %4081 = vdwg.mxu0
  %4082 = vmatprep.subr.bf16.mxu0 %v3585
  %4083 = vmatpush1.bf16.msra.mxu0 %v3584
  %4084 = vmatprep.subr.bf16.mxu0 %v3578
  %4085 = vmatpush1.bf16.msra.mxu0 %v3577
  %4086 = vmatprep.subr.bf16.mxu0 %v3571
  %4087 = vmatpush1.bf16.msra.mxu0 %v3570
  %4088 = vmatprep.subr.bf16.mxu0 %v3564
  %4089 = vmatpush1.bf16.msra.mxu0 %v3563
  %4090 = vmatprep.subr.bf16.mxu0 %v3557
  %4091 = vmatpush1.bf16.msra.mxu0 %v3556
  %4092 = vmatprep.subr.bf16.mxu0 %v3550
  %4093 = vmatpush1.bf16.msra.mxu0 %v3549
  %4094 = vmatprep.subr.bf16.mxu0 %v3543
  %4095 = vmatpush1.bf16.msra.mxu0 %v3542
  %4096 = vmatprep.subr.bf16.mxu0 %v3536
  %4097 = vmatpush1.bf16.msra.mxu0 %v3535
  %4098 = vmatprep.subr.bf16.mxu0 %v3641
  %4099 = vmatpush2.bf16.msra.mxu0 %v3640
  %4100 = vmatprep.subr.bf16.mxu0 %v3634
  %4101 = vmatpush2.bf16.msra.mxu0 %v3633
  %4102 = vmatprep.subr.bf16.mxu0 %v3627
  %4103 = vmatpush2.bf16.msra.mxu0 %v3626
  %4104 = vmatprep.subr.bf16.mxu0 %v3620
  %4105 = vmatpush2.bf16.msra.mxu0 %v3619
  %4106 = vmatprep.subr.bf16.mxu0 %v3613
  %4107 = vmatpush2.bf16.msra.mxu0 %v3612
  %4108 = vmatprep.subr.bf16.mxu0 %v3606
  %4109 = vmatpush2.bf16.msra.mxu0 %v3605
  %4110 = vmatprep.subr.bf16.mxu0 %v3599
  %4111 = vmatpush2.bf16.msra.mxu0 %v3598
  %4112 = vmatprep.subr.bf16.mxu0 %v3592
  %4113 = vmatpush2.bf16.msra.mxu0 %v3591
  %4114 = vmatprep.mubr.bf16.mxu0 %v2421
  %4115 = vmatmul.mubr.bf16.gmra.mxu0 %v2420
  %v4116 = vpop.f32.mrf.mxu0
  %v4117 = vadd.f32 %v4074, %v4116
  %v4118 = vpop.f32.mrf.mxu0
  %v4119 = vadd.f32 %v4076, %v4118
  %v4120 = vpop.f32.mrf.mxu0
  %v4121 = vadd.f32 %v4078, %v4120
  %v4122 = vpop.f32.mrf.mxu0
  %v4123 = vadd.f32 %v4080, %v4122
  %4124 = vdwg.mxu0
  %4125 = vmatprep.subr.bf16.mxu0 0
  %4126 = vmatpush1.bf16.msra.mxu0 %v3474
  %4127 = vmatprep.subr.bf16.mxu0 0
  %4128 = vmatpush1.bf16.msra.mxu0 %v3467
  %4129 = vmatprep.subr.bf16.mxu0 0
  %4130 = vmatpush1.bf16.msra.mxu0 %v3460
  %4131 = vmatprep.subr.bf16.mxu0 0
  %4132 = vmatpush1.bf16.msra.mxu0 %v3453
  %4133 = vmatprep.subr.bf16.mxu0 0
  %4134 = vmatpush1.bf16.msra.mxu0 %v3446
  %4135 = vmatprep.subr.bf16.mxu0 0
  %4136 = vmatpush1.bf16.msra.mxu0 %v3439
  %4137 = vmatprep.subr.bf16.mxu0 0
  %4138 = vmatpush1.bf16.msra.mxu0 %v3432
  %4139 = vmatprep.subr.bf16.mxu0 0
  %4140 = vmatpush1.bf16.msra.mxu0 %v3425
  %4141 = vmatprep.subr.bf16.mxu0 0
  %4142 = vmatpush2.bf16.msra.mxu0 %v3530
  %4143 = vmatprep.subr.bf16.mxu0 0
  %4144 = vmatpush2.bf16.msra.mxu0 %v3523
  %4145 = vmatprep.subr.bf16.mxu0 0
  %4146 = vmatpush2.bf16.msra.mxu0 %v3516
  %4147 = vmatprep.subr.bf16.mxu0 0
  %4148 = vmatpush2.bf16.msra.mxu0 %v3509
  %4149 = vmatprep.subr.bf16.mxu0 0
  %4150 = vmatpush2.bf16.msra.mxu0 %v3502
  %4151 = vmatprep.subr.bf16.mxu0 0
  %4152 = vmatpush2.bf16.msra.mxu0 %v3495
  %4153 = vmatprep.subr.bf16.mxu0 0
  %4154 = vmatpush2.bf16.msra.mxu0 %v3488
  %4155 = vmatprep.subr.bf16.mxu0 0
  %4156 = vmatpush2.bf16.msra.mxu0 %v3481
  %4157 = vmatprep.mubr.bf16.mxu0 %v2419
  %4158 = vmatmul.mubr.bf16.gmra.mxu0 %v2418
  %v4159 = vpop.f32.mrf.mxu0
  %v4160 = vadd.f32 %v2707, %v4159
  %v4161 = vpop.f32.mrf.mxu0
  %v4162 = vpop.f32.mrf.mxu0
  %v4163 = vadd.f32 %v2707, %v4162
  %v4164 = vpop.f32.mrf.mxu0
  %4165 = vdwg.mxu0
  %4166 = vmatprep.subr.bf16.mxu0 0
  %4167 = vmatpush1.bf16.msra.mxu0 %v3586
  %4168 = vmatprep.subr.bf16.mxu0 0
  %4169 = vmatpush1.bf16.msra.mxu0 %v3579
  %4170 = vmatprep.subr.bf16.mxu0 0
  %4171 = vmatpush1.bf16.msra.mxu0 %v3572
  %4172 = vmatprep.subr.bf16.mxu0 0
  %4173 = vmatpush1.bf16.msra.mxu0 %v3565
  %4174 = vmatprep.subr.bf16.mxu0 0
  %4175 = vmatpush1.bf16.msra.mxu0 %v3558
  %4176 = vmatprep.subr.bf16.mxu0 0
  %4177 = vmatpush1.bf16.msra.mxu0 %v3551
  %4178 = vmatprep.subr.bf16.mxu0 0
  %4179 = vmatpush1.bf16.msra.mxu0 %v3544
  %4180 = vmatprep.subr.bf16.mxu0 0
  %4181 = vmatpush1.bf16.msra.mxu0 %v3537
  %4182 = vmatprep.subr.bf16.mxu0 0
  %4183 = vmatpush2.bf16.msra.mxu0 %v3642
  %4184 = vmatprep.subr.bf16.mxu0 0
  %4185 = vmatpush2.bf16.msra.mxu0 %v3635
  %4186 = vmatprep.subr.bf16.mxu0 0
  %4187 = vmatpush2.bf16.msra.mxu0 %v3628
  %4188 = vmatprep.subr.bf16.mxu0 0
  %4189 = vmatpush2.bf16.msra.mxu0 %v3621
  %4190 = vmatprep.subr.bf16.mxu0 0
  %4191 = vmatpush2.bf16.msra.mxu0 %v3614
  %4192 = vmatprep.subr.bf16.mxu0 0
  %4193 = vmatpush2.bf16.msra.mxu0 %v3607
  %4194 = vmatprep.subr.bf16.mxu0 0
  %4195 = vmatpush2.bf16.msra.mxu0 %v3600
  %4196 = vmatprep.subr.bf16.mxu0 0
  %4197 = vmatpush2.bf16.msra.mxu0 %v3593
  %4198 = vmatprep.mubr.bf16.mxu0 %v2421
  %4199 = vmatmul.mubr.bf16.gmra.mxu0 %v2420
  %v4200 = vpop.f32.mrf.mxu0
  %v4201 = vadd.f32 %v4160, %v4200
  %v4202 = vpop.f32.mrf.mxu0
  %v4203 = vpop.f32.mrf.mxu0
  %v4204 = vadd.f32 %v4163, %v4203
  %v4205 = vpop.f32.mrf.mxu0
  %4206 = vdwg.mxu0
  %v4207 = vxor.u32 %v3945, 2147483648
  %v4208 = vxor.u32 %v3947, 2147483648
  %v4209 = vxor.u32 %v4031, 2147483648
  %v4210 = vxor.u32 %v4033, 2147483648
  %v4211 = vxor.u32 %v4117, 2147483648
  %v4212 = vxor.u32 %v4119, 2147483648
  %v4213 = vxor.u32 %v4201, 2147483648
  %v4214 = vxor.u32 %v3949, 2147483648
  %v4215 = vxor.u32 %v3951, 2147483648
  %v4216 = vxor.u32 %v4035, 2147483648
  %v4217 = vxor.u32 %v4037, 2147483648
  %v4218 = vxor.u32 %v4121, 2147483648
  %v4219 = vxor.u32 %v4123, 2147483648
  %v4220 = vxor.u32 %v4204, 2147483648
  %v4221 = vmul.f32 %v4207, 1.442695
  %v4222 = vpow.pop %v4221
  %v4223 = vmul.f32 %v4208, 1.442695
  %v4224 = vpow.pop %v4223
  %v4225 = vmul.f32 %v4209, 1.442695
  %v4226 = vpow.pop %v4225
  %v4227 = vmul.f32 %v4210, 1.442695
  %v4228 = vpow.pop %v4227
  %v4229 = vmul.f32 %v4211, 1.442695
  %v4230 = vpow.pop %v4229
  %v4231 = vmul.f32 %v4212, 1.442695
  %v4232 = vpow.pop %v4231
  %v4233 = vmul.f32 %v4213, 1.442695
  %v4234 = vpow.pop %v4233
  %v4235 = vmul.f32 %v4214, 1.442695
  %v4236 = vpow.pop %v4235
  %v4237 = vmul.f32 %v4215, 1.442695
  %v4238 = vpow.pop %v4237
  %v4239 = vmul.f32 %v4216, 1.442695
  %v4240 = vpow.pop %v4239
  %v4241 = vmul.f32 %v4217, 1.442695
  %v4242 = vpow.pop %v4241
  %v4243 = vmul.f32 %v4218, 1.442695
  %v4244 = vpow.pop %v4243
  %v4245 = vmul.f32 %v4219, 1.442695
  %v4246 = vpow.pop %v4245
  %v4247 = vmul.f32 %v4220, 1.442695
  %v4248 = vpow.pop %v4247
  %v4249 = vadd.f32 %v4222, 1.0
  %v4250 = vadd.f32 %v4224, 1.0
  %v4251 = vadd.f32 %v4226, 1.0
  %v4252 = vadd.f32 %v4228, 1.0
  %v4253 = vadd.f32 %v4230, 1.0
  %v4254 = vadd.f32 %v4232, 1.0
  %v4255 = vadd.f32 %v4234, 1.0
  %v4256 = vadd.f32 %v4236, 1.0
  %v4257 = vadd.f32 %v4238, 1.0
  %v4258 = vadd.f32 %v4240, 1.0
  %v4259 = vadd.f32 %v4242, 1.0
  %v4260 = vadd.f32 %v4244, 1.0
  %v4261 = vadd.f32 %v4246, 1.0
  %v4262 = vadd.f32 %v4248, 1.0
  %v4263 = vrcp.pop %v4249
  %v4264 = vmul.f32 1.0, %v4263
  %v4265 = vrcp.pop %v4250
  %v4266 = vmul.f32 1.0, %v4265
  %v4267 = vrcp.pop %v4251
  %v4268 = vmul.f32 1.0, %v4267
  %v4269 = vrcp.pop %v4252
  %v4270 = vmul.f32 1.0, %v4269
  %v4271 = vrcp.pop %v4253
  %v4272 = vmul.f32 1.0, %v4271
  %v4273 = vrcp.pop %v4254
  %v4274 = vmul.f32 1.0, %v4273
  %v4275 = vrcp.pop %v4255
  %v4276 = vmul.f32 1.0, %v4275
  %v4277 = vrcp.pop %v4256
  %v4278 = vmul.f32 1.0, %v4277
  %v4279 = vrcp.pop %v4257
  %v4280 = vmul.f32 1.0, %v4279
  %v4281 = vrcp.pop %v4258
  %v4282 = vmul.f32 1.0, %v4281
  %v4283 = vrcp.pop %v4259
  %v4284 = vmul.f32 1.0, %v4283
  %v4285 = vrcp.pop %v4260
  %v4286 = vmul.f32 1.0, %v4285
  %v4287 = vrcp.pop %v4261
  %v4288 = vmul.f32 1.0, %v4287
  %v4289 = vrcp.pop %v4262
  %v4290 = vmul.f32 1.0, %v4289
  %4291 = vst [vmem:[%s10] sm:$0xff] %v4264
  %4292 = vst [vmem:[%s10 + $0x8] sm:$0xff] %v4266
  %4293 = vst [vmem:[%s10 + $0x10] sm:$0xff] %v4268
  %4294 = vst [vmem:[%s10 + $0x18] sm:$0xff] %v4270
  %4295 = vst [vmem:[%s10 + $0x20] sm:$0xff] %v4272
  %4296 = vst [vmem:[%s10 + $0x28] sm:$0xff] %v4274
  %4297 = vst.msk [vmem:[%s10 + $0x30] sm:$0xff] %vm1255, %v4276
  %4298 = vst [vmem:[%s10 + $0x38] sm:$0xff] %v4278
  %4299 = vst [vmem:[%s10 + $0x40] sm:$0xff] %v4280
  %4300 = vst [vmem:[%s10 + $0x48] sm:$0xff] %v4282
  %4301 = vst [vmem:[%s10 + $0x50] sm:$0xff] %v4284
  %4302 = vst [vmem:[%s10 + $0x58] sm:$0xff] %v4286
  %4303 = vst [vmem:[%s10 + $0x60] sm:$0xff] %v4288
  %4304 = vst.msk [vmem:[%s10 + $0x68] sm:$0xff] %vm1255, %v4290
  // Predicated region
  $region42: #{_vae_forward_impl.1} parent=0 // pred_check
    _
  $region43: #{_vae_forward_impl.1} parent=0 // pred_check_branch
    %4306 = sbr.rel (0) target = $region45
  $region44: #{_vae_forward_impl.1} parent=0 // pred_region
    _
  $region45: #{_vae_forward_impl.1} parent=0 // pred_fallthru
    _
  // Predicated region
  $region46: #{_vae_forward_impl.1} parent=0 // pred_check
    _
  $region47: #{_vae_forward_impl.1} parent=0 // pred_check_branch
    %4308 = sbr.rel (0) target = $region49
  $region48: #{_vae_forward_impl.1} parent=0 // pred_region
    _
  $region49: #{_vae_forward_impl.1} parent=0 // pred_fallthru
    _

</llo_original>
